<compile_context>
chip_gen: v5e
topology: v5e:2x2
jax: 0.10.0
libtpu: 0.0.40
codegen_flags: <defaults>
</compile_context>

<pallas_src>
import jax
import jax.numpy as jnp
import numpy as np
from jax.experimental import pallas as pl
from jax.experimental.pallas import tpu as pltpu

N_EDGES = 9      # edges per message group; torch.split(out, 3) -> three (3,384) chunks
CHUNK = 3
PHI_IN = 32      # phi_input_size
HID = 128
OUT = 384
OUT_ROWS = 4     # 3 v_m rows + 1 s_m row per group in the packed output


def _message_kernel(in1_ref, r2_ref, vw_ref, acc_ref, sel_ref,
                    w1_ref, w2_ref, wb_ref, out_ref):
    f32 = jnp.float32

    # ---- unpack packed bias buffer: rows = [b1 (padded) | b2 | wr | br] ----
    wb = wb_ref[...]
    b1 = wb[0:1, 0:HID]
    b2 = wb[1:2, :]
    wr = wb[2:3, :]
    br = wb[3:4, :]

    # ---- phi MLP: Linear(PHI_IN,128) -> SiLU -> Linear(128,384) ----
    #      bf16 operands into the MXU, f32 accumulation, f32 element-wise.
    h = jnp.dot(in1_ref[...].astype(jnp.bfloat16), w1_ref[...],
                preferred_element_type=f32) + b1
    h = h * jax.nn.sigmoid(h)                                   # SiLU (f32)
    phi_out = jnp.dot(h.astype(jnp.bfloat16), w2_ref[...],
                      preferred_element_type=f32) + b2          # (R, 384)

    # ---- w layer: Linear(1,384)(input2) * f_c as broadcasts (no MXU push) ----
    r2 = r2_ref[...]                                            # (R, 2)
    in2 = r2[:, 0:1]
    f_c = r2[:, 1:2]
    w_out = (in2 * wr + br) * f_c                               # (R, 384)

    out = phi_out * w_out                                       # (R, 384)

    # ---- per-edge weighting [v_j ; ones ; v_norm] per 9-edge group, so one
    #      segmented sum yields both the v and the s reductions.
    combined = out * vw_ref[...]                                # (R, 384)

    # ---- segmented reduction over groups via the precomputed one-hot matrix.
    #      Row 4b+i (i<3) of `pooled` sums chunks 0&2 of group b; row 4b+3 sums
    #      chunk 1.  A lane reduction then gives v_scalar / s_scalar per row.
    pooled = jnp.dot(sel_ref[...], combined,
                     preferred_element_type=f32)                # (Q, 384)
    scal = jnp.sum(pooled, axis=1, keepdims=True)               # (Q, 1)

    # v rows: v_scalar + v_j ; s row: s_scalar + s_j (acc holds [v_j ; s_j]).
    out_ref[...] = scal + acc_ref[...]


def message_block(input1, input2, v_j, s_j, v_norm, params, f_c,
                  *, blocks_per_step=32):
    """Batched PaiNN message block over B independent 9-edge groups.

    input1 (B,9,PHI_IN), input2 (B,9,1), v_j (B,3,384), s_j (B,),
    v_norm (B,3,384), f_c (B,9,1), params = (W1,b1,W2,b2,Wr,br).
    Returns (v_m (B,3,384), s_m (B,)).  B = 1 reproduces the original
    Message_block.forward exactly (one group of 9 edges).
    """
    w1, b1, w2, b2, wr, br = params
    f32 = jnp.float32
    B = input1.shape[0]

    # ---- groups per grid step; tiles must stay (8,128)-aligned when >1 step.
    TB = max(1, min(blocks_per_step, B))
    if TB < B:
        TB = max(8, (TB // 8) * 8)
    Bp = ((B + TB - 1) // TB) * TB
    pad = Bp - B
    if pad:
        def zpad(a):
            return jnp.concatenate(
                [a, jnp.zeros((pad,) + a.shape[1:], a.dtype)], axis=0)
        input1, input2, v_j, v_norm, f_c = map(
            zpad, (input1, input2, v_j, v_norm, f_c))
        s_j = jnp.concatenate([s_j, jnp.zeros((pad,), s_j.dtype)])

    # ---- pack inputs (fewer, lane-dense DMAs) ----
    in1 = input1.reshape(Bp * N_EDGES, PHI_IN).astype(f32)
    r2 = jnp.concatenate([input2.astype(f32), f_c.astype(f32)],
                         axis=-1).reshape(Bp * N_EDGES, 2)
    vw = jnp.concatenate([v_j.astype(f32), jnp.ones((Bp, CHUNK, OUT), f32),
                          v_norm.astype(f32)],
                         axis=1).reshape(Bp * N_EDGES, OUT)
    sj_rows = jnp.broadcast_to(s_j.astype(f32).reshape(Bp, 1, 1), (Bp, 1, OUT))
    acc = jnp.concatenate([v_j.astype(f32), sj_rows],
                          axis=1).reshape(Bp * OUT_ROWS, OUT)

    b1p = jnp.pad(b1.reshape(1, HID).astype(f32), ((0, 0), (0, OUT - HID)))
    wb = jnp.concatenate([b1p, b2.reshape(1, OUT).astype(f32),
                          wr.reshape(1, OUT).astype(f32),
                          br.reshape(1, OUT).astype(f32)], axis=0)  # (4, 384)
    w1b = w1.astype(jnp.bfloat16)      # bf16 MXU operands (f32 accumulate)
    w2b = w2.astype(jnp.bfloat16)

    # ---- precomputed one-hot selection matrix for the segmented reduction ----
    R = TB * N_EDGES      # edge rows per grid step
    Q = TB * OUT_ROWS     # output rows per grid step
    jj = np.arange(Q)[:, None]
    rr = np.arange(R)[None, :]
    same_group = (rr // N_EDGES) == (jj // OUT_ROWS)
    s_edge = (rr % N_EDGES >= CHUNK) & (rr % N_EDGES < 2 * CHUNK)  # chunk-1 rows
    s_out = (jj % OUT_ROWS) == CHUNK                               # s_m output row
    sel = jnp.asarray((same_group & (s_edge == s_out)).astype(np.float32))

    def data_spec(shape):               # blocked along the group axis
        return pl.BlockSpec(shape, lambda g: (g, 0))

    def resident_spec(shape):           # constant index map -> VMEM resident
        return pl.BlockSpec(shape, lambda g: (0, 0))

    out = pl.pallas_call(
        _message_kernel,
        out_shape=jax.ShapeDtypeStruct((Bp * OUT_ROWS, OUT), f32),
        grid=(Bp // TB,),
        in_specs=[
            data_spec((R, PHI_IN)),        # input1 rows
            data_spec((R, 2)),             # [input2 | f_c]
            data_spec((R, OUT)),           # [v_j ; ones ; v_norm]
            data_spec((Q, OUT)),           # [v_j ; s_j] addend (aliased w/ output)
            resident_spec((Q, R)),         # one-hot selection matrix
            resident_spec((PHI_IN, HID)),  # W1 (bf16)
            resident_spec((HID, OUT)),     # W2 (bf16)
            resident_spec((4, OUT)),       # [b1 | b2 | wr | br]
        ],
        out_specs=data_spec((Q, OUT)),
        input_output_aliases={3: 0},       # accumulate into the addend buffer
        compiler_params=pltpu.CompilerParams(
            dimension_semantics=("parallel",)),
    )(in1, r2, vw, acc, sel, w1b, w2b, wb)

    res = out.reshape(Bp, OUT_ROWS, OUT)[:B]
    v_m = res[:, :CHUNK, :]
    s_m = res[:, CHUNK, 0]
    return v_m, s_m


def _reference_block(input1, input2, v_j, s_j, v_norm, params, f_c):
    """Pure-JAX f32 reference mirroring the PyTorch forward (one 9-edge group)."""
    w1, b1, w2, b2, wr, br = params
    h = jax.nn.silu(input1 @ w1 + b1)
    phi_out = h @ w2 + b2
    w_out = (input2 @ wr + br) * f_c
    out = phi_out * w_out
    o0, o1, o2 = out[0:3], out[3:6], out[6:9]
    out1 = o0 * v_j
    s_m = jnp.sum(o1) + s_j
    out3 = o2 * v_norm
    v_m = jnp.sum(out1 + out3) + v_j
    return v_m, s_m


def _reference_block_mixed(input1, input2, v_j, s_j, v_norm, params, f_c):
    """Reference with the same bf16-operand / f32-accumulate matmuls as the kernel."""
    w1, b1, w2, b2, wr, br = params
    bf = jnp.bfloat16
    h = jnp.dot(input1.astype(bf), w1.astype(bf),
                preferred_element_type=jnp.float32) + b1
    h = h * jax.nn.sigmoid(h)
    phi_out = jnp.dot(h.astype(bf), w2.astype(bf),
                      preferred_element_type=jnp.float32) + b2
    w_out = (input2 * wr + br) * f_c
    out = phi_out * w_out
    o0, o1, o2 = out[0:3], out[3:6], out[6:9]
    s_m = jnp.sum(o1) + s_j
    v_m = jnp.sum(o0 * v_j + o2 * v_norm) + v_j
    return v_m, s_m


if __name__ == "__main__":
    key = jax.random.PRNGKey(0)
    ks = jax.random.split(key, 12)
    B = 64                                   # edge-groups batched into one call

    # --- parameters (phi: Linear(32,128), Linear(128,384); w: Linear(1,384)) ---
    w1 = jax.random.normal(ks[0], (PHI_IN, HID), jnp.float32) * 0.1
    b1 = jax.random.normal(ks[1], (1, HID), jnp.float32) * 0.1
    w2 = jax.random.normal(ks[2], (HID, OUT), jnp.float32) * 0.1
    b2 = jax.random.normal(ks[3], (1, OUT), jnp.float32) * 0.1
    wr = jax.random.normal(ks[4], (1, OUT), jnp.float32) * 0.1
    br = jax.random.normal(ks[5], (1, OUT), jnp.float32) * 0.1
    params = (w1, b1, w2, b2, wr, br)

    # --- buffers from w.__init__: f_c = 0.5*cos(pi*r_ij/r_cut) + 1 (per group) ---
    r_cut = 5.0
    r_ij = jax.random.uniform(ks[6], (B, N_EDGES, 1), jnp.float32, 0.5, r_cut)
    f_c = 0.5 * jnp.cos(jnp.pi * r_ij / r_cut) + 1.0

    # --- forward inputs ---
    input1 = jax.random.normal(ks[7], (B, N_EDGES, PHI_IN), jnp.float32)
    input2 = jax.random.normal(ks[8], (B, N_EDGES, 1), jnp.float32)
    v_j = jax.random.normal(ks[9], (B, CHUNK, OUT), jnp.float32)
    v_norm = jax.random.normal(ks[10], (B, CHUNK, OUT), jnp.float32)
    s_j = jax.random.normal(ks[11], (B,), jnp.float32)

    run = jax.jit(message_block)
    v_m, s_m = run(input1, input2, v_j, s_j, v_norm, params, f_c)
    jax.block_until_ready((v_m, s_m))

    # f32 reference of the exact module semantics; tolerance is loosened because
    # the kernel feeds bf16 operands to the MXU (f32 accumulation), per review.
    vmap_ref = jax.vmap(_reference_block, in_axes=(0, 0, 0, 0, 0, None, 0))
    v_ref, s_ref = vmap_ref(input1, input2, v_j, s_j, v_norm, params, f_c)
    np.testing.assert_allclose(np.asarray(v_m), np.asarray(v_ref), rtol=2e-2, atol=2e-1)
    np.testing.assert_allclose(np.asarray(s_m), np.asarray(s_ref), rtol=2e-2, atol=2e-1)

    # Mixed-precision reference (same matmul precision): tight check of the
    # packing / segmented-reduction / grid logic.
    vmap_mix = jax.vmap(_reference_block_mixed, in_axes=(0, 0, 0, 0, 0, None, 0))
    v_mix, s_mix = vmap_mix(input1, input2, v_j, s_j, v_norm, params, f_c)
    np.testing.assert_allclose(np.asarray(v_m), np.asarray(v_mix), rtol=2e-3, atol=2e-2)
    np.testing.assert_allclose(np.asarray(s_m), np.asarray(s_mix), rtol=2e-3, atol=2e-2)

    print("KERNEL_OK")
</pallas_src>

<mosaic_0001>
module attributes {stable_mosaic.version = 11 : i64} {
  func.func @_message_kernel(%arg0: i32, %arg1: memref<288x32xf32, #tpu.memory_space<vmem>>, %arg2: memref<288x2xf32, #tpu.memory_space<vmem>>, %arg3: memref<288x384xf32, #tpu.memory_space<vmem>>, %arg4: memref<128x384xf32, #tpu.memory_space<vmem>>, %arg5: memref<128x288xf32, #tpu.memory_space<vmem>>, %arg6: memref<32x128xbf16, #tpu.memory_space<vmem>>, %arg7: memref<128x384xbf16, #tpu.memory_space<vmem>>, %arg8: memref<4x384xf32, #tpu.memory_space<vmem>>, %arg9: memref<128x384xf32, #tpu.memory_space<vmem>>) attributes {dimension_semantics = [#tpu.dimension_semantics<parallel>], iteration_bounds = array<i64: 2>, scalar_prefetch = 0 : i64, scratch_operands = 0 : i64, tpu.core_type = #tpu.core_type<tc>, window_params = [{transform_indices = @transform_0, window_bounds = array<i64: 288, 32>}, {transform_indices = @transform_1, window_bounds = array<i64: 288, 2>}, {transform_indices = @transform_2, window_bounds = array<i64: 288, 384>}, {transform_indices = @transform_3, window_bounds = array<i64: 128, 384>}, {pipeline_mode = #tpu.pipeline_mode<synchronous>, transform_indices = @transform_4, window_bounds = array<i64: 128, 288>}, {pipeline_mode = #tpu.pipeline_mode<synchronous>, transform_indices = @transform_5, window_bounds = array<i64: 32, 128>}, {pipeline_mode = #tpu.pipeline_mode<synchronous>, transform_indices = @transform_6, window_bounds = array<i64: 128, 384>}, {pipeline_mode = #tpu.pipeline_mode<synchronous>, transform_indices = @transform_7, window_bounds = array<i64: 4, 384>}, {transform_indices = @transform_8, window_bounds = array<i64: 128, 384>}]} {
    %c0 = arith.constant 0 : index
    %c0_0 = arith.constant 0 : index
    %0 = vector.load %arg8[%c0, %c0_0] : memref<4x384xf32, #tpu.memory_space<vmem>>, vector<4x384xf32>
    %1 = vector.extract_strided_slice %0 {offsets = [0, 0], sizes = [1, 128], strides = [1, 1]} : vector<4x384xf32> to vector<1x128xf32>
    %2 = vector.extract_strided_slice %0 {offsets = [1, 0], sizes = [1, 384], strides = [1, 1]} : vector<4x384xf32> to vector<1x384xf32>
    %3 = vector.extract_strided_slice %0 {offsets = [2, 0], sizes = [1, 384], strides = [1, 1]} : vector<4x384xf32> to vector<1x384xf32>
    %4 = vector.extract_strided_slice %0 {offsets = [3, 0], sizes = [1, 384], strides = [1, 1]} : vector<4x384xf32> to vector<1x384xf32>
    %c0_1 = arith.constant 0 : index
    %c0_2 = arith.constant 0 : index
    %5 = vector.load %arg1[%c0_1, %c0_2] : memref<288x32xf32, #tpu.memory_space<vmem>>, vector<288x32xf32>
    %6 = arith.truncf %5 : vector<288x32xf32> to vector<288x32xbf16>
    %c0_3 = arith.constant 0 : index
    %c0_4 = arith.constant 0 : index
    %7 = vector.load %arg6[%c0_3, %c0_4] : memref<32x128xbf16, #tpu.memory_space<vmem>>, vector<32x128xbf16>
    %cst = arith.constant dense<0.000000e+00> : vector<288x128xf32>
    %8 = tpu.matmul %6, %7, %cst {dimension_numbers = #tpu.dot_dimension_numbers<[1], [0], [0], [1], [0, 0, 1, 1], [], []>} : vector<288x32xbf16>, vector<32x128xbf16>, vector<288x128xf32> -> vector<288x128xf32>
    %9 = vector.broadcast %1 : vector<1x128xf32> to vector<288x128xf32>
    %10 = arith.addf %8, %9 : vector<288x128xf32>
    %11 = arith.negf %10 : vector<288x128xf32>
    %12 = math.exp %11 : vector<288x128xf32>
    %cst_5 = arith.constant 1.000000e+00 : f32
    %13 = vector.broadcast %cst_5 : f32 to vector<288x128xf32>
    %14 = arith.addf %13, %12 : vector<288x128xf32>
    %15 = arith.divf %13, %14 : vector<288x128xf32>
    %16 = arith.mulf %10, %15 : vector<288x128xf32>
    %17 = arith.truncf %16 : vector<288x128xf32> to vector<288x128xbf16>
    %c0_6 = arith.constant 0 : index
    %c0_7 = arith.constant 0 : index
    %18 = vector.load %arg7[%c0_6, %c0_7] : memref<128x384xbf16, #tpu.memory_space<vmem>>, vector<128x384xbf16>
    %cst_8 = arith.constant dense<0.000000e+00> : vector<288x384xf32>
    %19 = tpu.matmul %17, %18, %cst_8 {dimension_numbers = #tpu.dot_dimension_numbers<[1], [0], [0], [1], [0, 0, 1, 1], [], []>} : vector<288x128xbf16>, vector<128x384xbf16>, vector<288x384xf32> -> vector<288x384xf32>
    %20 = vector.broadcast %2 : vector<1x384xf32> to vector<288x384xf32>
    %21 = arith.addf %19, %20 : vector<288x384xf32>
    %c0_9 = arith.constant 0 : index
    %c0_10 = arith.constant 0 : index
    %22 = vector.load %arg2[%c0_9, %c0_10] : memref<288x2xf32, #tpu.memory_space<vmem>>, vector<288x2xf32>
    %23 = vector.extract_strided_slice %22 {offsets = [0, 0], sizes = [288, 1], strides = [1, 1]} : vector<288x2xf32> to vector<288x1xf32>
    %24 = vector.extract_strided_slice %22 {offsets = [0, 1], sizes = [288, 1], strides = [1, 1]} : vector<288x2xf32> to vector<288x1xf32>
    %25 = vector.broadcast %23 : vector<288x1xf32> to vector<288x384xf32>
    %26 = vector.broadcast %3 : vector<1x384xf32> to vector<288x384xf32>
    %27 = arith.mulf %25, %26 : vector<288x384xf32>
    %28 = vector.broadcast %4 : vector<1x384xf32> to vector<288x384xf32>
    %29 = arith.addf %27, %28 : vector<288x384xf32>
    %30 = vector.broadcast %24 : vector<288x1xf32> to vector<288x384xf32>
    %31 = arith.mulf %29, %30 : vector<288x384xf32>
    %32 = arith.mulf %21, %31 : vector<288x384xf32>
    %c0_11 = arith.constant 0 : index
    %c0_12 = arith.constant 0 : index
    %33 = vector.load %arg3[%c0_11, %c0_12] : memref<288x384xf32, #tpu.memory_space<vmem>>, vector<288x384xf32>
    %34 = arith.mulf %32, %33 : vector<288x384xf32>
    %c0_13 = arith.constant 0 : index
    %c0_14 = arith.constant 0 : index
    %35 = vector.load %arg5[%c0_13, %c0_14] : memref<128x288xf32, #tpu.memory_space<vmem>>, vector<128x288xf32>
    %cst_15 = arith.constant dense<0.000000e+00> : vector<128x384xf32>
    %36 = tpu.matmul %35, %34, %cst_15 {dimension_numbers = #tpu.dot_dimension_numbers<[1], [0], [0], [1], [0, 0, 1, 1], [], []>} : vector<128x288xf32>, vector<288x384xf32>, vector<128x384xf32> -> vector<128x384xf32>
    %cst_16 = arith.constant dense<0.000000e+00> : vector<128xf32>
    %37 = vector.multi_reduction <add>, %36, %cst_16 [1] : vector<128x384xf32> to vector<128xf32>
    %38 = vector.shape_cast %37 : vector<128xf32> to vector<128x1xf32>
    %c0_17 = arith.constant 0 : index
    %c0_18 = arith.constant 0 : index
    %39 = vector.load %arg4[%c0_17, %c0_18] : memref<128x384xf32, #tpu.memory_space<vmem>>, vector<128x384xf32>
    %40 = vector.broadcast %38 : vector<128x1xf32> to vector<128x384xf32>
    %41 = arith.addf %40, %39 : vector<128x384xf32>
    %c0_19 = arith.constant 0 : index
    %c0_20 = arith.constant 0 : index
    %42 = vector.load %arg9[%c0_19, %c0_20] : memref<128x384xf32, #tpu.memory_space<vmem>>, vector<128x384xf32>
    tpu.vector_store %arg9[%c0_19, %c0_20], %41 {strides = array<i32>} : memref<128x384xf32, #tpu.memory_space<vmem>>, vector<128x384xf32>,
    return
  }
  func.func @transform_0(%arg0: i32) -> (i32, i32) {
    %c0_i32 = arith.constant 0 : i32
    %c0_i32_0 = arith.constant 0 : i32
    return %arg0, %c0_i32 : i32, i32
  }
  func.func @transform_1(%arg0: i32) -> (i32, i32) {
    %c0_i32 = arith.constant 0 : i32
    %c0_i32_0 = arith.constant 0 : i32
    return %arg0, %c0_i32 : i32, i32
  }
  func.func @transform_2(%arg0: i32) -> (i32, i32) {
    %c0_i32 = arith.constant 0 : i32
    %c0_i32_0 = arith.constant 0 : i32
    return %arg0, %c0_i32 : i32, i32
  }
  func.func @transform_3(%arg0: i32) -> (i32, i32) {
    %c0_i32 = arith.constant 0 : i32
    %c0_i32_0 = arith.constant 0 : i32
    return %arg0, %c0_i32 : i32, i32
  }
  func.func @transform_4(%arg0: i32) -> (i32, i32) {
    %c0_i32 = arith.constant 0 : i32
    %c0_i32_0 = arith.constant 0 : i32
    %c0_i32_1 = arith.constant 0 : i32
    return %c0_i32, %c0_i32_0 : i32, i32
  }
  func.func @transform_5(%arg0: i32) -> (i32, i32) {
    %c0_i32 = arith.constant 0 : i32
    %c0_i32_0 = arith.constant 0 : i32
    %c0_i32_1 = arith.constant 0 : i32
    return %c0_i32, %c0_i32_0 : i32, i32
  }
  func.func @transform_6(%arg0: i32) -> (i32, i32) {
    %c0_i32 = arith.constant 0 : i32
    %c0_i32_0 = arith.constant 0 : i32
    %c0_i32_1 = arith.constant 0 : i32
    return %c0_i32, %c0_i32_0 : i32, i32
  }
  func.func @transform_7(%arg0: i32) -> (i32, i32) {
    %c0_i32 = arith.constant 0 : i32
    %c0_i32_0 = arith.constant 0 : i32
    %c0_i32_1 = arith.constant 0 : i32
    return %c0_i32, %c0_i32_0 : i32, i32
  }
  func.func @transform_8(%arg0: i32) -> (i32, i32) {
    %c0_i32 = arith.constant 0 : i32
    %c0_i32_0 = arith.constant 0 : i32
    return %arg0, %c0_i32 : i32, i32
  }
}

</mosaic_0001>

<llo_original>
// kernel: message_block.1
$region0: #{message_block.1}
  #allocation0 [shape = 'u32[]', space=smem, size = 0x4, offset = 0x4, fixed_abs, tag = 'smem constant byte address 0x4 - core index']
  #allocation1 [shape = 'u32[72,128]{1,0:T(1,128)}', space=vmem, size = 0x9000, scoped, tag = 'internal scratch']
  %s0 = inlined_call_operand.vmem [shape: f32[576,32], index: 0, kind: input, shape index: {}]
  %s1 = inlined_call_operand.vmem [shape: f32[576,2], index: 1, kind: input, shape index: {}]
  %s2 = inlined_call_operand.vmem [shape: f32[576,384], index: 2, kind: input, shape index: {}]
  %s3 = inlined_call_operand.vmem [shape: f32[256,384], index: 3, kind: input, shape index: {}, may-alias: {3,8}]
  %s4 = inlined_call_operand.vmem [shape: f32[128,288], index: 4, kind: input, shape index: {}]
  %s5 = inlined_call_operand.vmem [shape: bf16[32,128], index: 5, kind: input, shape index: {}]
  %s6 = inlined_call_operand.vmem [shape: bf16[128,384], index: 6, kind: input, shape index: {}]
  %s7 = inlined_call_operand.vmem [shape: f32[4,384], index: 7, kind: input, shape index: {}]
  %s8 = inlined_call_operand.vmem [shape: f32[256,384], index: 8, kind: output, shape index: {}, may-alias: {3,8}]
  %s9 = sld [smem:[#allocation0]]
  $region65: #{message_block.1} parent=0
    _
  %s11 = ssub.s32 1, %s9
  %s12 = scalar_select 0, %s11, %s9
  loop: start=0, step=1, limit=4
  $region2: #{message_block.1} parent=0 // loop_pre_header
    _
  $region3: #{message_block.1} parent=0 // loop_header
    %s14 = sphi 0, %s18
    %p15 = scmp.ge.s32.totalorder %s14, 4
    %s24 = sphi 0, %s26
    %s27 = sphi 0, %s24
    %s28 = sphi 0, %s27
    %s44 = sphi 0, %s28
    %s50 = sphi 0, %s52
    %s53 = sphi 0, %s50
    %s54 = sphi 0, %s53
    %s70 = sphi 0, %s54
    %s76 = sphi 0, %s78
    %s79 = sphi 0, %s76
    %s80 = sphi 0, %s79
    %s96 = sphi 0, %s80
    %s102 = sphi 0, %s104
    %s105 = sphi 0, %s102
    %s106 = sphi 0, %s105
    %s122 = sphi 0, %s106
    %s126 = sphi 0, %s126
    %s128 = sphi 0, %s126
    %s129 = sphi 0, %s128
    %s143 = sphi 0, %s129
    %s147 = sphi 0, %s147
    %s149 = sphi 0, %s147
    %s150 = sphi 0, %s149
    %s164 = sphi 0, %s150
    %s168 = sphi 0, %s168
    %s170 = sphi 0, %s168
    %s171 = sphi 0, %s170
    %s185 = sphi 0, %s171
    %s189 = sphi 0, %s189
    %s191 = sphi 0, %s189
    %s192 = sphi 0, %s191
    %s206 = sphi 0, %s192
    %s212 = sphi 0, %s214
    %s215 = sphi 0, %s212
    %s216 = sphi 0, %s215
    %s232 = sphi 0, %s216
  $region4: #{message_block.1} parent=0 // loop_header_branch
    %17 = sbr.rel (%p15) target = $region8
  $region5: #{message_block.1} parent=0 // loop_body
    %s19 = ssub.s32 %s14, 1
    %s20 = ssub.s32 %s14, 2
    %s21 = sadd.s32 %s14, 1
    %s22 = ssub.s32 %s14, %s21
    %p23 = scmp.eq.s32.totalorder %s22, 0
    %s25 = sadd.s32 %s24, 1
    %s26 = scalar_select %p23, %s24, %s25
    %p29 = pneg %p23
    %p30 = scmp.eq.s32.totalorder %s14, 1
    %p31 = por %p29, %p30
    %p32 = scmp.ne.s32.totalorder %s24, %s27
    %p33 = scmp.eq.s32.totalorder %s14, 0
    %p34 = por %p32, %p33
    %p35 = scmp.ne.s32.totalorder %s24, %s27
    %p36 = scmp.eq.s32.totalorder %s19, 1
    %p37 = por %p35, %p36
    %p38 = scmp.ne.s32.totalorder %s27, %s28
    %p39 = scmp.eq.s32.totalorder %s19, 0
    %p40 = por %p38, %p39
    %p41 = scmp.ne.s32.totalorder %s27, %s28
    %p42 = scmp.eq.s32.totalorder %s20, 1
    %p43 = por %p41, %p42
    %p45 = scmp.ne.s32.totalorder %s28, %s44
    %p46 = scmp.eq.s32.totalorder %s20, 0
    %p47 = por %p45, %p46
    %s48 = ssub.s32 %s14, %s21
    %p49 = scmp.eq.s32.totalorder %s48, 0
    %s51 = sadd.s32 %s50, 1
    %s52 = scalar_select %p49, %s50, %s51
    %p55 = pneg %p49
    %p56 = scmp.eq.s32.totalorder %s14, 1
    %p57 = por %p55, %p56
    %p58 = scmp.ne.s32.totalorder %s50, %s53
    %p59 = scmp.eq.s32.totalorder %s14, 0
    %p60 = por %p58, %p59
    %p61 = scmp.ne.s32.totalorder %s50, %s53
    %p62 = scmp.eq.s32.totalorder %s19, 1
    %p63 = por %p61, %p62
    %p64 = scmp.ne.s32.totalorder %s53, %s54
    %p65 = scmp.eq.s32.totalorder %s19, 0
    %p66 = por %p64, %p65
    %p67 = scmp.ne.s32.totalorder %s53, %s54
    %p68 = scmp.eq.s32.totalorder %s20, 1
    %p69 = por %p67, %p68
    %p71 = scmp.ne.s32.totalorder %s54, %s70
    %p72 = scmp.eq.s32.totalorder %s20, 0
    %p73 = por %p71, %p72
    %s74 = ssub.s32 %s14, %s21
    %p75 = scmp.eq.s32.totalorder %s74, 0
    %s77 = sadd.s32 %s76, 1
    %s78 = scalar_select %p75, %s76, %s77
    %p81 = pneg %p75
    %p82 = scmp.eq.s32.totalorder %s14, 1
    %p83 = por %p81, %p82
    %p84 = scmp.ne.s32.totalorder %s76, %s79
    %p85 = scmp.eq.s32.totalorder %s14, 0
    %p86 = por %p84, %p85
    %p87 = scmp.ne.s32.totalorder %s76, %s79
    %p88 = scmp.eq.s32.totalorder %s19, 1
    %p89 = por %p87, %p88
    %p90 = scmp.ne.s32.totalorder %s79, %s80
    %p91 = scmp.eq.s32.totalorder %s19, 0
    %p92 = por %p90, %p91
    %p93 = scmp.ne.s32.totalorder %s79, %s80
    %p94 = scmp.eq.s32.totalorder %s20, 1
    %p95 = por %p93, %p94
    %p97 = scmp.ne.s32.totalorder %s80, %s96
    %p98 = scmp.eq.s32.totalorder %s20, 0
    %p99 = por %p97, %p98
    %s100 = ssub.s32 %s14, %s21
    %p101 = scmp.eq.s32.totalorder %s100, 0
    %s103 = sadd.s32 %s102, 1
    %s104 = scalar_select %p101, %s102, %s103
    %p107 = pneg %p101
    %p108 = scmp.eq.s32.totalorder %s14, 1
    %p109 = por %p107, %p108
    %p110 = scmp.ne.s32.totalorder %s102, %s105
    %p111 = scmp.eq.s32.totalorder %s14, 0
    %p112 = por %p110, %p111
    %p113 = scmp.ne.s32.totalorder %s102, %s105
    %p114 = scmp.eq.s32.totalorder %s19, 1
    %p115 = por %p113, %p114
    %p116 = scmp.ne.s32.totalorder %s105, %s106
    %p117 = scmp.eq.s32.totalorder %s19, 0
    %p118 = por %p116, %p117
    %p119 = scmp.ne.s32.totalorder %s105, %s106
    %p120 = scmp.eq.s32.totalorder %s20, 1
    %p121 = por %p119, %p120
    %p123 = scmp.ne.s32.totalorder %s106, %s122
    %p124 = scmp.eq.s32.totalorder %s20, 0
    %p125 = por %p123, %p124
    %s127 = sadd.s32 %s126, 1
    %p130 = scmp.eq.s32.totalorder %s14, 1
    %p131 = scmp.ne.s32.totalorder %s126, %s128
    %p132 = scmp.eq.s32.totalorder %s14, 0
    %p133 = por %p131, %p132
    %p134 = scmp.ne.s32.totalorder %s126, %s128
    %p135 = scmp.eq.s32.totalorder %s19, 1
    %p136 = por %p134, %p135
    %p137 = scmp.ne.s32.totalorder %s128, %s129
    %p138 = scmp.eq.s32.totalorder %s19, 0
    %p139 = por %p137, %p138
    %p140 = scmp.ne.s32.totalorder %s128, %s129
    %p141 = scmp.eq.s32.totalorder %s20, 1
    %p142 = por %p140, %p141
    %p144 = scmp.ne.s32.totalorder %s129, %s143
    %p145 = scmp.eq.s32.totalorder %s20, 0
    %p146 = por %p144, %p145
    %s148 = sadd.s32 %s147, 1
    %p151 = scmp.eq.s32.totalorder %s14, 1
    %p152 = scmp.ne.s32.totalorder %s147, %s149
    %p153 = scmp.eq.s32.totalorder %s14, 0
    %p154 = por %p152, %p153
    %p155 = scmp.ne.s32.totalorder %s147, %s149
    %p156 = scmp.eq.s32.totalorder %s19, 1
    %p157 = por %p155, %p156
    %p158 = scmp.ne.s32.totalorder %s149, %s150
    %p159 = scmp.eq.s32.totalorder %s19, 0
    %p160 = por %p158, %p159
    %p161 = scmp.ne.s32.totalorder %s149, %s150
    %p162 = scmp.eq.s32.totalorder %s20, 1
    %p163 = por %p161, %p162
    %p165 = scmp.ne.s32.totalorder %s150, %s164
    %p166 = scmp.eq.s32.totalorder %s20, 0
    %p167 = por %p165, %p166
    %s169 = sadd.s32 %s168, 1
    %p172 = scmp.eq.s32.totalorder %s14, 1
    %p173 = scmp.ne.s32.totalorder %s168, %s170
    %p174 = scmp.eq.s32.totalorder %s14, 0
    %p175 = por %p173, %p174
    %p176 = scmp.ne.s32.totalorder %s168, %s170
    %p177 = scmp.eq.s32.totalorder %s19, 1
    %p178 = por %p176, %p177
    %p179 = scmp.ne.s32.totalorder %s170, %s171
    %p180 = scmp.eq.s32.totalorder %s19, 0
    %p181 = por %p179, %p180
    %p182 = scmp.ne.s32.totalorder %s170, %s171
    %p183 = scmp.eq.s32.totalorder %s20, 1
    %p184 = por %p182, %p183
    %p186 = scmp.ne.s32.totalorder %s171, %s185
    %p187 = scmp.eq.s32.totalorder %s20, 0
    %p188 = por %p186, %p187
    %s190 = sadd.s32 %s189, 1
    %p193 = scmp.eq.s32.totalorder %s14, 1
    %p194 = scmp.ne.s32.totalorder %s189, %s191
    %p195 = scmp.eq.s32.totalorder %s14, 0
    %p196 = por %p194, %p195
    %p197 = scmp.ne.s32.totalorder %s189, %s191
    %p198 = scmp.eq.s32.totalorder %s19, 1
    %p199 = por %p197, %p198
    %p200 = scmp.ne.s32.totalorder %s191, %s192
    %p201 = scmp.eq.s32.totalorder %s19, 0
    %p202 = por %p200, %p201
    %p203 = scmp.ne.s32.totalorder %s191, %s192
    %p204 = scmp.eq.s32.totalorder %s20, 1
    %p205 = por %p203, %p204
    %p207 = scmp.ne.s32.totalorder %s192, %s206
    %p208 = scmp.eq.s32.totalorder %s20, 0
    %p209 = por %p207, %p208
    %s210 = ssub.s32 %s14, %s21
    %p211 = scmp.eq.s32.totalorder %s210, 0
    %s213 = sadd.s32 %s212, 1
    %s214 = scalar_select %p211, %s212, %s213
    %p217 = pneg %p211
    %p218 = scmp.eq.s32.totalorder %s14, 1
    %p219 = por %p217, %p218
    %p220 = scmp.ne.s32.totalorder %s212, %s215
    %p221 = scmp.eq.s32.totalorder %s14, 0
    %p222 = por %p220, %p221
    %p223 = scmp.ne.s32.totalorder %s212, %s215
    %p224 = scmp.eq.s32.totalorder %s19, 1
    %p225 = por %p223, %p224
    %p226 = scmp.ne.s32.totalorder %s215, %s216
    %p227 = scmp.eq.s32.totalorder %s19, 0
    %p228 = por %p226, %p227
    %p229 = scmp.ne.s32.totalorder %s215, %s216
    %p230 = scmp.eq.s32.totalorder %s20, 1
    %p231 = por %p229, %p230
    %p233 = scmp.ne.s32.totalorder %s216, %s232
    %p234 = scmp.eq.s32.totalorder %s20, 0
    %p235 = por %p233, %p234
    %p236 = scmp.le.s32.totalorder 1, %s14
    %p237 = scmp.lt.s32.totalorder %s14, 3
    %p238 = pnand %p236, %p237
    %p239 = pneg %p238
    // Predicated region
    $region9: #{message_block.1} parent=5 // pred_check
      _
    $region10: #{message_block.1} parent=5 // pred_check_branch
      %241 = sbr.rel (%p238) target = $region12
    $region11: #{message_block.1} parent=5 // pred_region
      %s242 = ssub.s32 %s14, 1
      // Predicated region
      $region13: #{message_block.1} parent=11 // pred_check
        %p243 = pneg %p139
      $region14: #{message_block.1} parent=11 // pred_check_branch
        %245 = sbr.rel (%p243) target = $region16
      $region15: #{message_block.1} parent=11 // pred_region
        _
      $region16: #{message_block.1} parent=11 // pred_fallthru
        _
      // Predicated region
      $region17: #{message_block.1} parent=11 // pred_check
        %p246 = pneg %p160
      $region18: #{message_block.1} parent=11 // pred_check_branch
        %248 = sbr.rel (%p246) target = $region20
      $region19: #{message_block.1} parent=11 // pred_region
        _
      $region20: #{message_block.1} parent=11 // pred_fallthru
        _
      // Predicated region
      $region21: #{message_block.1} parent=11 // pred_check
        %p249 = pneg %p181
      $region22: #{message_block.1} parent=11 // pred_check_branch
        %251 = sbr.rel (%p249) target = $region24
      $region23: #{message_block.1} parent=11 // pred_region
        _
      $region24: #{message_block.1} parent=11 // pred_fallthru
        _
      // Predicated region
      $region25: #{message_block.1} parent=11 // pred_check
        %p252 = pneg %p202
      $region26: #{message_block.1} parent=11 // pred_check_branch
        %254 = sbr.rel (%p252) target = $region28
      $region27: #{message_block.1} parent=11 // pred_region
        _
      $region28: #{message_block.1} parent=11 // pred_fallthru
        _
    $region12: #{message_block.1} parent=5 // pred_fallthru
      _
    %p255 = scmp.lt.s32.totalorder %s14, 2
    // Predicated region
    $region29: #{message_block.1} parent=5 // pred_check
      %p256 = pneg %p255
    $region30: #{message_block.1} parent=5 // pred_check_branch
      %258 = sbr.rel (%p256) target = $region32
    $region31: #{message_block.1} parent=5 // pred_region
      // Predicated region
      $region33: #{message_block.1} parent=31 // pred_check
        %p259 = pneg %p34
      $region34: #{message_block.1} parent=31 // pred_check_branch
        %261 = sbr.rel (%p259) target = $region36
      $region35: #{message_block.1} parent=31 // pred_region
        %s262 = smul.u32 36, %s14
        %p263 = scmp.lt.s32.totalorder %s262, 71
        %s264 = scalar_select %p263, %s262, 71
        %s265 = smul.addr %s264, 8
        %s266 = scalar_lea.vmem %s0, %s265
        %s267 = smul.u32 36, %s14
      $region36: #{message_block.1} parent=31 // pred_fallthru
        _
      // Predicated region
      $region37: #{message_block.1} parent=31 // pred_check
        %p268 = pneg %p60
      $region38: #{message_block.1} parent=31 // pred_check_branch
        %270 = sbr.rel (%p268) target = $region40
      $region39: #{message_block.1} parent=31 // pred_region
        %s271 = smul.u32 36, %s14
        %p272 = scmp.lt.s32.totalorder %s271, 71
        %s273 = scalar_select %p272, %s271, 71
        %s274 = smul.addr %s273, 8
        %s275 = scalar_lea.vmem %s1, %s274
        %s276 = smul.u32 36, %s14
      $region40: #{message_block.1} parent=31 // pred_fallthru
        _
      // Predicated region
      $region41: #{message_block.1} parent=31 // pred_check
        %p277 = pneg %p86
      $region42: #{message_block.1} parent=31 // pred_check_branch
        %279 = sbr.rel (%p277) target = $region44
      $region43: #{message_block.1} parent=31 // pred_region
        %s280 = smul.u32 36, %s14
        %p281 = scmp.lt.s32.totalorder %s280, 71
        %s282 = scalar_select %p281, %s280, 71
        %s283 = smul.addr %s282, 3
        %s284 = smul.addr %s283, 8
        %s285 = scalar_lea.vmem %s2, %s284
        %s286 = smul.u32 36, %s14
      $region44: #{message_block.1} parent=31 // pred_fallthru
        _
      // Predicated region
      $region45: #{message_block.1} parent=31 // pred_check
        %p287 = pneg %p112
      $region46: #{message_block.1} parent=31 // pred_check_branch
        %289 = sbr.rel (%p287) target = $region48
      $region47: #{message_block.1} parent=31 // pred_region
        %s290 = smul.u32 16, %s14
        %p291 = scmp.lt.s32.totalorder %s290, 31
        %s292 = scalar_select %p291, %s290, 31
        %s293 = smul.addr %s292, 3
        %s294 = smul.addr %s293, 8
        %s295 = scalar_lea.vmem %s3, %s294
        %s296 = smul.u32 16, %s14
      $region48: #{message_block.1} parent=31 // pred_fallthru
        _
    $region32: #{message_block.1} parent=5 // pred_fallthru
      _
    %p297 = scmp.le.s32.totalorder 1, %s14
    %p298 = scmp.lt.s32.totalorder %s14, 3
    %p299 = pnand %p297, %p298
    %p300 = pneg %p299
    // Predicated region
    $region49: #{message_block.1} parent=5 // pred_check
      _
    $region50: #{message_block.1} parent=5 // pred_check_branch
      %302 = sbr.rel (%p299) target = $region52
    $region51: #{message_block.1} parent=5 // pred_region
      %s303 = ssub.s32 %s14, 1
      %s304 = smul.u32 36, %s19
      %p305 = scmp.lt.s32.totalorder %s304, 71
      %s306 = scalar_select %p305, %s304, 71
      %s307 = smul.addr %s306, 8
      %s308 = scalar_lea.vmem %s0, %s307
      %p309 = pneg %p40
      %p310 = pneg %p37
      %s311 = smul.u32 36, %s19
      %p312 = scmp.lt.s32.totalorder %s311, 71
      %s313 = scalar_select %p312, %s311, 71
      %s314 = smul.addr %s313, 8
      %s315 = scalar_lea.vmem %s1, %s314
      %p316 = pneg %p66
      %p317 = pneg %p63
      %s318 = smul.u32 36, %s19
      %p319 = scmp.lt.s32.totalorder %s318, 71
      %s320 = scalar_select %p319, %s318, 71
      %s321 = smul.addr %s320, 3
      %s322 = smul.addr %s321, 8
      %s323 = scalar_lea.vmem %s2, %s322
      %p324 = pneg %p92
      %p325 = pneg %p89
      %s326 = smul.u32 16, %s19
      %p327 = scmp.lt.s32.totalorder %s326, 31
      %s328 = scalar_select %p327, %s326, 31
      %s329 = smul.addr %s328, 3
      %s330 = smul.addr %s329, 8
      %s331 = scalar_lea.vmem %s3, %s330
      %p332 = pneg %p118
      %p333 = pneg %p115
      %p334 = pneg %p139
      %p335 = pneg %p136
      %p336 = pneg %p160
      %p337 = pneg %p157
      %p338 = pneg %p181
      %p339 = pneg %p178
      %p340 = pneg %p202
      %p341 = pneg %p199
      %p342 = pneg %p228
      %p343 = pneg %p225
      %s344 = smul.u32 16, %s19
      %p345 = scmp.lt.s32.totalorder %s344, 31
      %s346 = scalar_select %p345, %s344, 31
      %s347 = smul.addr %s346, 3
      %s348 = smul.addr %s347, 8
      %s349 = scalar_lea.vmem %s8, %s348
      %s350 = smul.u32 36, %s19
      %p351 = scmp.lt.s32.totalorder %s350, 71
      %s352 = scalar_select %p351, %s350, 71
      %s353 = smul.addr %s352, 8
      %s354 = scalar_lea.vmem %s0, %s353
      %s355 = smul.u32 36, %s19
      %s356 = smul.u32 36, %s19
      %p357 = scmp.lt.s32.totalorder %s356, 71
      %s358 = scalar_select %p357, %s356, 71
      %s359 = smul.addr %s358, 8
      %s360 = scalar_lea.vmem %s1, %s359
      %s361 = smul.u32 36, %s19
      %s362 = smul.u32 36, %s19
      %p363 = scmp.lt.s32.totalorder %s362, 71
      %s364 = scalar_select %p363, %s362, 71
      %s365 = smul.addr %s364, 3
      %s366 = smul.addr %s365, 8
      %s367 = scalar_lea.vmem %s2, %s366
      %s368 = smul.u32 36, %s19
      %s369 = smul.u32 16, %s19
      %p370 = scmp.lt.s32.totalorder %s369, 31
      %s371 = scalar_select %p370, %s369, 31
      %s372 = smul.addr %s371, 3
      %s373 = smul.addr %s372, 8
      %s374 = scalar_lea.vmem %s3, %s373
      %s375 = smul.u32 16, %s19
      %s376 = smul.u32 16, %s19
      %p377 = scmp.lt.s32.totalorder %s376, 31
      %s378 = scalar_select %p377, %s376, 31
      %s379 = smul.addr %s378, 3
      %s380 = smul.addr %s379, 8
      %s381 = scalar_lea.vmem %s8, %s380
      %s382 = smul.u32 16, %s19
      %v384 = vld [vmem:[%s7] sm:$0xff]
      %v385 = vld [vmem:[%s7 + $0x8] sm:$0xf]
      %v386 = vld [vmem:[%s354] sm:$0xff]
      %v387 = vld [vmem:[%s354 + $0x8] sm:$0xff]
      %v388 = vld [vmem:[%s354 + $0x10] sm:$0xff]
      %v389 = vld [vmem:[%s354 + $0x18] sm:$0xff]
      %v390 = vld [vmem:[%s354 + $0x20] sm:$0xff]
      %v391 = vld [vmem:[%s354 + $0x28] sm:$0xff]
      %v392 = vld [vmem:[%s354 + $0x30] sm:$0xff]
      %v393 = vld [vmem:[%s354 + $0x38] sm:$0xff]
      %v394 = vld [vmem:[%s354 + $0x40] sm:$0xff]
      %v395 = vld [vmem:[%s354 + $0x48] sm:$0xff]
      %v396 = vld [vmem:[%s354 + $0x50] sm:$0xff]
      %v397 = vld [vmem:[%s354 + $0x58] sm:$0xff]
      %v398 = vld [vmem:[%s354 + $0x60] sm:$0xff]
      %v399 = vld [vmem:[%s354 + $0x68] sm:$0xff]
      %v400 = vld [vmem:[%s354 + $0x70] sm:$0xff]
      %v401 = vld [vmem:[%s354 + $0x78] sm:$0xff]
      %v402 = vld [vmem:[%s354 + $0x80] sm:$0xff]
      %v403 = vld [vmem:[%s354 + $0x88] sm:$0xff]
      %v404 = vld [vmem:[%s354 + $0x90] sm:$0xff]
      %v405 = vld [vmem:[%s354 + $0x98] sm:$0xff]
      %v406 = vld [vmem:[%s354 + $0xa0] sm:$0xff]
      %v407 = vld [vmem:[%s354 + $0xa8] sm:$0xff]
      %v408 = vld [vmem:[%s354 + $0xb0] sm:$0xff]
      %v409 = vld [vmem:[%s354 + $0xb8] sm:$0xff]
      %v410 = vld [vmem:[%s354 + $0xc0] sm:$0xff]
      %v411 = vld [vmem:[%s354 + $0xc8] sm:$0xff]
      %v412 = vld [vmem:[%s354 + $0xd0] sm:$0xff]
      %v413 = vld [vmem:[%s354 + $0xd8] sm:$0xff]
      %v414 = vld [vmem:[%s354 + $0xe0] sm:$0xff]
      %v415 = vld [vmem:[%s354 + $0xe8] sm:$0xff]
      %v416 = vld [vmem:[%s354 + $0xf0] sm:$0xff]
      %v417 = vld [vmem:[%s354 + $0xf8] sm:$0xff]
      %v418 = vld [vmem:[%s354 + $0x100] sm:$0xff]
      %v419 = vld [vmem:[%s354 + $0x108] sm:$0xff]
      %v420 = vld [vmem:[%s354 + $0x110] sm:$0xff]
      %v421 = vld [vmem:[%s354 + $0x118] sm:$0xff]
      %v422 = vpack.c.bf16 %v387, %v386
      %v423 = vpack.c.bf16 %v389, %v388
      %v424 = vpack.c.bf16 %v391, %v390
      %v425 = vpack.c.bf16 %v393, %v392
      %v426 = vpack.c.bf16 %v395, %v394
      %v427 = vpack.c.bf16 %v397, %v396
      %v428 = vpack.c.bf16 %v399, %v398
      %v429 = vpack.c.bf16 %v401, %v400
      %v430 = vpack.c.bf16 %v403, %v402
      %v431 = vpack.c.bf16 %v405, %v404
      %v432 = vpack.c.bf16 %v407, %v406
      %v433 = vpack.c.bf16 %v409, %v408
      %v434 = vpack.c.bf16 %v411, %v410
      %v435 = vpack.c.bf16 %v413, %v412
      %v436 = vpack.c.bf16 %v415, %v414
      %v437 = vpack.c.bf16 %v417, %v416
      %v438 = vpack.c.bf16 %v419, %v418
      %v439 = vpack.c.bf16 %v421, %v420
      %v440 = vld [vmem:[%s5] sm:$0xf]
      %v441 = vld [vmem:[%s5 + $0x4] sm:$0xf]
      %v442 = vld [vmem:[%s5 + $0x8] sm:$0xf]
      %v443 = vld [vmem:[%s5 + $0xc] sm:$0xf]
      %v444 = vperm.slane %v384, 0
      %v449 = vunpack.c.l.b16 %v440
      %v450 = vunpack.c.l.b16 %v441
      %v451 = vunpack.c.l.b16 %v442
      %v452 = vunpack.c.l.b16 %v443
      %v453 = vpack.c.b16 %v450, %v449
      %v454 = vpack.c.b16 %v452, %v451
      %vm457 = vcmask 261120
      %v459 = vsel %vm457, %v422, 0
      %v462 = vsel %vm457, %v423, 0
      %v465 = vsel %vm457, %v424, 0
      %v468 = vsel %vm457, %v425, 0
      %v471 = vsel %vm457, %v426, 0
      %v474 = vsel %vm457, %v427, 0
      %v477 = vsel %vm457, %v428, 0
      %v480 = vsel %vm457, %v429, 0
      %v483 = vsel %vm457, %v430, 0
      %v486 = vsel %vm457, %v431, 0
      %v489 = vsel %vm457, %v432, 0
      %v492 = vsel %vm457, %v433, 0
      %v495 = vsel %vm457, %v434, 0
      %v498 = vsel %vm457, %v435, 0
      %v501 = vsel %vm457, %v436, 0
      %v504 = vsel %vm457, %v437, 0
      %v507 = vsel %vm457, %v438, 0
      %v510 = vsel %vm457, %v439, 0
      %512 = vmatpush.bf16.msra.mxu0 0
      %513 = vmatpush.bf16.msra.mxu0 0
      %514 = vmatpush.bf16.msra.mxu0 0
      %515 = vmatpush.bf16.msra.mxu0 0
      %516 = vmatpush.bf16.msra.mxu0 0
      %517 = vmatpush.bf16.msra.mxu0 0
      %518 = vmatpush.bf16.msra.mxu0 %v454
      %519 = vmatpush.bf16.msra.mxu0 %v453
      %520 = vmatmul.bf16.gmra.mxu0 %v459
      %v521 = vpop.f32.mrf.mxu0
      %v522 = vadd.f32 %v444, %v521
      %v523 = vpop.f32.mrf.mxu0
      %v524 = vadd.f32 %v444, %v523
      %525 = vmatmul.bf16.gmra.mxu0 %v462
      %v526 = vpop.f32.mrf.mxu0
      %v527 = vadd.f32 %v444, %v526
      %v528 = vpop.f32.mrf.mxu0
      %v529 = vadd.f32 %v444, %v528
      %530 = vmatmul.bf16.gmra.mxu0 %v465
      %v531 = vpop.f32.mrf.mxu0
      %v532 = vadd.f32 %v444, %v531
      %v533 = vpop.f32.mrf.mxu0
      %v534 = vadd.f32 %v444, %v533
      %535 = vmatmul.bf16.gmra.mxu0 %v468
      %v536 = vpop.f32.mrf.mxu0
      %v537 = vadd.f32 %v444, %v536
      %v538 = vpop.f32.mrf.mxu0
      %v539 = vadd.f32 %v444, %v538
      %540 = vmatmul.bf16.gmra.mxu0 %v471
      %v541 = vpop.f32.mrf.mxu0
      %v542 = vadd.f32 %v444, %v541
      %v543 = vpop.f32.mrf.mxu0
      %v544 = vadd.f32 %v444, %v543
      %545 = vmatmul.bf16.gmra.mxu0 %v474
      %v546 = vpop.f32.mrf.mxu0
      %v547 = vadd.f32 %v444, %v546
      %v548 = vpop.f32.mrf.mxu0
      %v549 = vadd.f32 %v444, %v548
      %550 = vmatmul.bf16.gmra.mxu0 %v477
      %v551 = vpop.f32.mrf.mxu0
      %v552 = vadd.f32 %v444, %v551
      %v553 = vpop.f32.mrf.mxu0
      %v554 = vadd.f32 %v444, %v553
      %555 = vmatmul.bf16.gmra.mxu0 %v480
      %v556 = vpop.f32.mrf.mxu0
      %v557 = vadd.f32 %v444, %v556
      %v558 = vpop.f32.mrf.mxu0
      %v559 = vadd.f32 %v444, %v558
      %560 = vmatmul.bf16.gmra.mxu0 %v483
      %v561 = vpop.f32.mrf.mxu0
      %v562 = vadd.f32 %v444, %v561
      %v563 = vpop.f32.mrf.mxu0
      %v564 = vadd.f32 %v444, %v563
      %565 = vmatmul.bf16.gmra.mxu0 %v486
      %v566 = vpop.f32.mrf.mxu0
      %v567 = vadd.f32 %v444, %v566
      %v568 = vpop.f32.mrf.mxu0
      %v569 = vadd.f32 %v444, %v568
      %570 = vmatmul.bf16.gmra.mxu0 %v489
      %v571 = vpop.f32.mrf.mxu0
      %v572 = vadd.f32 %v444, %v571
      %v573 = vpop.f32.mrf.mxu0
      %v574 = vadd.f32 %v444, %v573
      %575 = vmatmul.bf16.gmra.mxu0 %v492
      %v576 = vpop.f32.mrf.mxu0
      %v577 = vadd.f32 %v444, %v576
      %v578 = vpop.f32.mrf.mxu0
      %v579 = vadd.f32 %v444, %v578
      %580 = vmatmul.bf16.gmra.mxu0 %v495
      %v581 = vpop.f32.mrf.mxu0
      %v582 = vadd.f32 %v444, %v581
      %v583 = vpop.f32.mrf.mxu0
      %v584 = vadd.f32 %v444, %v583
      %585 = vmatmul.bf16.gmra.mxu0 %v498
      %v586 = vpop.f32.mrf.mxu0
      %v587 = vadd.f32 %v444, %v586
      %v588 = vpop.f32.mrf.mxu0
      %v589 = vadd.f32 %v444, %v588
      %590 = vmatmul.bf16.gmra.mxu0 %v501
      %v591 = vpop.f32.mrf.mxu0
      %v592 = vadd.f32 %v444, %v591
      %v593 = vpop.f32.mrf.mxu0
      %v594 = vadd.f32 %v444, %v593
      %595 = vmatmul.bf16.gmra.mxu0 %v504
      %v596 = vpop.f32.mrf.mxu0
      %v597 = vadd.f32 %v444, %v596
      %v598 = vpop.f32.mrf.mxu0
      %v599 = vadd.f32 %v444, %v598
      %600 = vmatmul.bf16.gmra.mxu0 %v507
      %v601 = vpop.f32.mrf.mxu0
      %v602 = vadd.f32 %v444, %v601
      %v603 = vpop.f32.mrf.mxu0
      %v604 = vadd.f32 %v444, %v603
      %605 = vmatmul.bf16.gmra.mxu0 %v510
      %v606 = vpop.f32.mrf.mxu0
      %v607 = vadd.f32 %v444, %v606
      %v608 = vpop.f32.mrf.mxu0
      %v609 = vadd.f32 %v444, %v608
      %610 = vdwg.mxu0
      %v611 = vxor.u32 %v522, 2147483648
      %v612 = vxor.u32 %v524, 2147483648
      %v613 = vxor.u32 %v527, 2147483648
      %v614 = vxor.u32 %v529, 2147483648
      %v615 = vxor.u32 %v532, 2147483648
      %v616 = vxor.u32 %v534, 2147483648
      %v617 = vxor.u32 %v537, 2147483648
      %v618 = vxor.u32 %v539, 2147483648
      %v619 = vxor.u32 %v542, 2147483648
      %v620 = vxor.u32 %v544, 2147483648
      %v621 = vxor.u32 %v547, 2147483648
      %v622 = vxor.u32 %v549, 2147483648
      %v623 = vxor.u32 %v552, 2147483648
      %v624 = vxor.u32 %v554, 2147483648
      %v625 = vxor.u32 %v557, 2147483648
      %v626 = vxor.u32 %v559, 2147483648
      %v627 = vxor.u32 %v562, 2147483648
      %v628 = vxor.u32 %v564, 2147483648
      %v629 = vxor.u32 %v567, 2147483648
      %v630 = vxor.u32 %v569, 2147483648
      %v631 = vxor.u32 %v572, 2147483648
      %v632 = vxor.u32 %v574, 2147483648
      %v633 = vxor.u32 %v577, 2147483648
      %v634 = vxor.u32 %v579, 2147483648
      %v635 = vxor.u32 %v582, 2147483648
      %v636 = vxor.u32 %v584, 2147483648
      %v637 = vxor.u32 %v587, 2147483648
      %v638 = vxor.u32 %v589, 2147483648
      %v639 = vxor.u32 %v592, 2147483648
      %v640 = vxor.u32 %v594, 2147483648
      %v641 = vxor.u32 %v597, 2147483648
      %v642 = vxor.u32 %v599, 2147483648
      %v643 = vxor.u32 %v602, 2147483648
      %v644 = vxor.u32 %v604, 2147483648
      %v645 = vxor.u32 %v607, 2147483648
      %v646 = vxor.u32 %v609, 2147483648
      %v647 = vmul.f32 %v611, 1.442695
      %v648 = vpow.pop %v647
      %v649 = vmul.f32 %v612, 1.442695
      %v650 = vpow.pop %v649
      %v651 = vmul.f32 %v613, 1.442695
      %v652 = vpow.pop %v651
      %v653 = vmul.f32 %v614, 1.442695
      %v654 = vpow.pop %v653
      %v655 = vmul.f32 %v615, 1.442695
      %v656 = vpow.pop %v655
      %v657 = vmul.f32 %v616, 1.442695
      %v658 = vpow.pop %v657
      %v659 = vmul.f32 %v617, 1.442695
      %v660 = vpow.pop %v659
      %v661 = vmul.f32 %v618, 1.442695
      %v662 = vpow.pop %v661
      %v663 = vmul.f32 %v619, 1.442695
      %v664 = vpow.pop %v663
      %v665 = vmul.f32 %v620, 1.442695
      %v666 = vpow.pop %v665
      %v667 = vmul.f32 %v621, 1.442695
      %v668 = vpow.pop %v667
      %v669 = vmul.f32 %v622, 1.442695
      %v670 = vpow.pop %v669
      %v671 = vmul.f32 %v623, 1.442695
      %v672 = vpow.pop %v671
      %v673 = vmul.f32 %v624, 1.442695
      %v674 = vpow.pop %v673
      %v675 = vmul.f32 %v625, 1.442695
      %v676 = vpow.pop %v675
      %v677 = vmul.f32 %v626, 1.442695
      %v678 = vpow.pop %v677
      %v679 = vmul.f32 %v627, 1.442695
      %v680 = vpow.pop %v679
      %v681 = vmul.f32 %v628, 1.442695
      %v682 = vpow.pop %v681
      %v683 = vmul.f32 %v629, 1.442695
      %v684 = vpow.pop %v683
      %v685 = vmul.f32 %v630, 1.442695
      %v686 = vpow.pop %v685
      %v687 = vmul.f32 %v631, 1.442695
      %v688 = vpow.pop %v687
      %v689 = vmul.f32 %v632, 1.442695
      %v690 = vpow.pop %v689
      %v691 = vmul.f32 %v633, 1.442695
      %v692 = vpow.pop %v691
      %v693 = vmul.f32 %v634, 1.442695
      %v694 = vpow.pop %v693
      %v695 = vmul.f32 %v635, 1.442695
      %v696 = vpow.pop %v695
      %v697 = vmul.f32 %v636, 1.442695
      %v698 = vpow.pop %v697
      %v699 = vmul.f32 %v637, 1.442695
      %v700 = vpow.pop %v699
      %v701 = vmul.f32 %v638, 1.442695
      %v702 = vpow.pop %v701
      %v703 = vmul.f32 %v639, 1.442695
      %v704 = vpow.pop %v703
      %v705 = vmul.f32 %v640, 1.442695
      %v706 = vpow.pop %v705
      %v707 = vmul.f32 %v641, 1.442695
      %v708 = vpow.pop %v707
      %v709 = vmul.f32 %v642, 1.442695
      %v710 = vpow.pop %v709
      %v711 = vmul.f32 %v643, 1.442695
      %v712 = vpow.pop %v711
      %v713 = vmul.f32 %v644, 1.442695
      %v714 = vpow.pop %v713
      %v715 = vmul.f32 %v645, 1.442695
      %v716 = vpow.pop %v715
      %v717 = vmul.f32 %v646, 1.442695
      %v718 = vpow.pop %v717
      %v719 = vadd.f32 %v648, 1.0
      %v720 = vadd.f32 %v650, 1.0
      %v721 = vadd.f32 %v652, 1.0
      %v722 = vadd.f32 %v654, 1.0
      %v723 = vadd.f32 %v656, 1.0
      %v724 = vadd.f32 %v658, 1.0
      %v725 = vadd.f32 %v660, 1.0
      %v726 = vadd.f32 %v662, 1.0
      %v727 = vadd.f32 %v664, 1.0
      %v728 = vadd.f32 %v666, 1.0
      %v729 = vadd.f32 %v668, 1.0
      %v730 = vadd.f32 %v670, 1.0
      %v731 = vadd.f32 %v672, 1.0
      %v732 = vadd.f32 %v674, 1.0
      %v733 = vadd.f32 %v676, 1.0
      %v734 = vadd.f32 %v678, 1.0
      %v735 = vadd.f32 %v680, 1.0
      %v736 = vadd.f32 %v682, 1.0
      %v737 = vadd.f32 %v684, 1.0
      %v738 = vadd.f32 %v686, 1.0
      %v739 = vadd.f32 %v688, 1.0
      %v740 = vadd.f32 %v690, 1.0
      %v741 = vadd.f32 %v692, 1.0
      %v742 = vadd.f32 %v694, 1.0
      %v743 = vadd.f32 %v696, 1.0
      %v744 = vadd.f32 %v698, 1.0
      %v745 = vadd.f32 %v700, 1.0
      %v746 = vadd.f32 %v702, 1.0
      %v747 = vadd.f32 %v704, 1.0
      %v748 = vadd.f32 %v706, 1.0
      %v749 = vadd.f32 %v708, 1.0
      %v750 = vadd.f32 %v710, 1.0
      %v751 = vadd.f32 %v712, 1.0
      %v752 = vadd.f32 %v714, 1.0
      %v753 = vadd.f32 %v716, 1.0
      %v754 = vadd.f32 %v718, 1.0
      %v755 = vrcp.pop %v719
      %v756 = vmul.f32 %v719, %v755
      %v757 = vsub.f32 1.0, %v756
      %v758 = vmul.f32 %v755, %v757
      %v759 = vadd.f32 %v755, %v758
      %vm760 = vweird.f32 %v719
      %vm761 = vweird.f32 %v755
      %vm762 = vmor %vm760, %vm761
      %v763 = vsel %vm762, %v755, %v759
      %v764 = vand.u32 2147483647, %v719
      %vm765 = vcmp.eq.f32.partialorder %v764, 8.507059e+37
      %v766 = vand.u32 %v719, 2147483648
      %v767 = vor.u32 1.1754944e-38, %v766
      %v768 = vsel %vm765, %v767, %v763
      %v769 = vmul.f32 1.0, %v768
      %v770 = vrcp.pop %v720
      %v771 = vmul.f32 %v720, %v770
      %v772 = vsub.f32 1.0, %v771
      %v773 = vmul.f32 %v770, %v772
      %v774 = vadd.f32 %v770, %v773
      %vm775 = vweird.f32 %v720
      %vm776 = vweird.f32 %v770
      %vm777 = vmor %vm775, %vm776
      %v778 = vsel %vm777, %v770, %v774
      %v779 = vand.u32 2147483647, %v720
      %vm780 = vcmp.eq.f32.partialorder %v779, 8.507059e+37
      %v781 = vand.u32 %v720, 2147483648
      %v782 = vor.u32 1.1754944e-38, %v781
      %v783 = vsel %vm780, %v782, %v778
      %v784 = vmul.f32 1.0, %v783
      %v785 = vrcp.pop %v721
      %v786 = vmul.f32 %v721, %v785
      %v787 = vsub.f32 1.0, %v786
      %v788 = vmul.f32 %v785, %v787
      %v789 = vadd.f32 %v785, %v788
      %vm790 = vweird.f32 %v721
      %vm791 = vweird.f32 %v785
      %vm792 = vmor %vm790, %vm791
      %v793 = vsel %vm792, %v785, %v789
      %v794 = vand.u32 2147483647, %v721
      %vm795 = vcmp.eq.f32.partialorder %v794, 8.507059e+37
      %v796 = vand.u32 %v721, 2147483648
      %v797 = vor.u32 1.1754944e-38, %v796
      %v798 = vsel %vm795, %v797, %v793
      %v799 = vmul.f32 1.0, %v798
      %v800 = vrcp.pop %v722
      %v801 = vmul.f32 %v722, %v800
      %v802 = vsub.f32 1.0, %v801
      %v803 = vmul.f32 %v800, %v802
      %v804 = vadd.f32 %v800, %v803
      %vm805 = vweird.f32 %v722
      %vm806 = vweird.f32 %v800
      %vm807 = vmor %vm805, %vm806
      %v808 = vsel %vm807, %v800, %v804
      %v809 = vand.u32 2147483647, %v722
      %vm810 = vcmp.eq.f32.partialorder %v809, 8.507059e+37
      %v811 = vand.u32 %v722, 2147483648
      %v812 = vor.u32 1.1754944e-38, %v811
      %v813 = vsel %vm810, %v812, %v808
      %v814 = vmul.f32 1.0, %v813
      %v815 = vrcp.pop %v723
      %v816 = vmul.f32 %v723, %v815
      %v817 = vsub.f32 1.0, %v816
      %v818 = vmul.f32 %v815, %v817
      %v819 = vadd.f32 %v815, %v818
      %vm820 = vweird.f32 %v723
      %vm821 = vweird.f32 %v815
      %vm822 = vmor %vm820, %vm821
      %v823 = vsel %vm822, %v815, %v819
      %v824 = vand.u32 2147483647, %v723
      %vm825 = vcmp.eq.f32.partialorder %v824, 8.507059e+37
      %v826 = vand.u32 %v723, 2147483648
      %v827 = vor.u32 1.1754944e-38, %v826
      %v828 = vsel %vm825, %v827, %v823
      %v829 = vmul.f32 1.0, %v828
      %v830 = vrcp.pop %v724
      %v831 = vmul.f32 %v724, %v830
      %v832 = vsub.f32 1.0, %v831
      %v833 = vmul.f32 %v830, %v832
      %v834 = vadd.f32 %v830, %v833
      %vm835 = vweird.f32 %v724
      %vm836 = vweird.f32 %v830
      %vm837 = vmor %vm835, %vm836
      %v838 = vsel %vm837, %v830, %v834
      %v839 = vand.u32 2147483647, %v724
      %vm840 = vcmp.eq.f32.partialorder %v839, 8.507059e+37
      %v841 = vand.u32 %v724, 2147483648
      %v842 = vor.u32 1.1754944e-38, %v841
      %v843 = vsel %vm840, %v842, %v838
      %v844 = vmul.f32 1.0, %v843
      %v845 = vrcp.pop %v725
      %v846 = vmul.f32 %v725, %v845
      %v847 = vsub.f32 1.0, %v846
      %v848 = vmul.f32 %v845, %v847
      %v849 = vadd.f32 %v845, %v848
      %vm850 = vweird.f32 %v725
      %vm851 = vweird.f32 %v845
      %vm852 = vmor %vm850, %vm851
      %v853 = vsel %vm852, %v845, %v849
      %v854 = vand.u32 2147483647, %v725
      %vm855 = vcmp.eq.f32.partialorder %v854, 8.507059e+37
      %v856 = vand.u32 %v725, 2147483648
      %v857 = vor.u32 1.1754944e-38, %v856
      %v858 = vsel %vm855, %v857, %v853
      %v859 = vmul.f32 1.0, %v858
      %v860 = vrcp.pop %v726
      %v861 = vmul.f32 %v726, %v860
      %v862 = vsub.f32 1.0, %v861
      %v863 = vmul.f32 %v860, %v862
      %v864 = vadd.f32 %v860, %v863
      %vm865 = vweird.f32 %v726
      %vm866 = vweird.f32 %v860
      %vm867 = vmor %vm865, %vm866
      %v868 = vsel %vm867, %v860, %v864
      %v869 = vand.u32 2147483647, %v726
      %vm870 = vcmp.eq.f32.partialorder %v869, 8.507059e+37
      %v871 = vand.u32 %v726, 2147483648
      %v872 = vor.u32 1.1754944e-38, %v871
      %v873 = vsel %vm870, %v872, %v868
      %v874 = vmul.f32 1.0, %v873
      %v875 = vrcp.pop %v727
      %v876 = vmul.f32 %v727, %v875
      %v877 = vsub.f32 1.0, %v876
      %v878 = vmul.f32 %v875, %v877
      %v879 = vadd.f32 %v875, %v878
      %vm880 = vweird.f32 %v727
      %vm881 = vweird.f32 %v875
      %vm882 = vmor %vm880, %vm881
      %v883 = vsel %vm882, %v875, %v879
      %v884 = vand.u32 2147483647, %v727
      %vm885 = vcmp.eq.f32.partialorder %v884, 8.507059e+37
      %v886 = vand.u32 %v727, 2147483648
      %v887 = vor.u32 1.1754944e-38, %v886
      %v888 = vsel %vm885, %v887, %v883
      %v889 = vmul.f32 1.0, %v888
      %v890 = vrcp.pop %v728
      %v891 = vmul.f32 %v728, %v890
      %v892 = vsub.f32 1.0, %v891
      %v893 = vmul.f32 %v890, %v892
      %v894 = vadd.f32 %v890, %v893
      %vm895 = vweird.f32 %v728
      %vm896 = vweird.f32 %v890
      %vm897 = vmor %vm895, %vm896
      %v898 = vsel %vm897, %v890, %v894
      %v899 = vand.u32 2147483647, %v728
      %vm900 = vcmp.eq.f32.partialorder %v899, 8.507059e+37
      %v901 = vand.u32 %v728, 2147483648
      %v902 = vor.u32 1.1754944e-38, %v901
      %v903 = vsel %vm900, %v902, %v898
      %v904 = vmul.f32 1.0, %v903
      %v905 = vrcp.pop %v729
      %v906 = vmul.f32 %v729, %v905
      %v907 = vsub.f32 1.0, %v906
      %v908 = vmul.f32 %v905, %v907
      %v909 = vadd.f32 %v905, %v908
      %vm910 = vweird.f32 %v729
      %vm911 = vweird.f32 %v905
      %vm912 = vmor %vm910, %vm911
      %v913 = vsel %vm912, %v905, %v909
      %v914 = vand.u32 2147483647, %v729
      %vm915 = vcmp.eq.f32.partialorder %v914, 8.507059e+37
      %v916 = vand.u32 %v729, 2147483648
      %v917 = vor.u32 1.1754944e-38, %v916
      %v918 = vsel %vm915, %v917, %v913
      %v919 = vmul.f32 1.0, %v918
      %v920 = vrcp.pop %v730
      %v921 = vmul.f32 %v730, %v920
      %v922 = vsub.f32 1.0, %v921
      %v923 = vmul.f32 %v920, %v922
      %v924 = vadd.f32 %v920, %v923
      %vm925 = vweird.f32 %v730
      %vm926 = vweird.f32 %v920
      %vm927 = vmor %vm925, %vm926
      %v928 = vsel %vm927, %v920, %v924
      %v929 = vand.u32 2147483647, %v730
      %vm930 = vcmp.eq.f32.partialorder %v929, 8.507059e+37
      %v931 = vand.u32 %v730, 2147483648
      %v932 = vor.u32 1.1754944e-38, %v931
      %v933 = vsel %vm930, %v932, %v928
      %v934 = vmul.f32 1.0, %v933
      %v935 = vrcp.pop %v731
      %v936 = vmul.f32 %v731, %v935
      %v937 = vsub.f32 1.0, %v936
      %v938 = vmul.f32 %v935, %v937
      %v939 = vadd.f32 %v935, %v938
      %vm940 = vweird.f32 %v731
      %vm941 = vweird.f32 %v935
      %vm942 = vmor %vm940, %vm941
      %v943 = vsel %vm942, %v935, %v939
      %v944 = vand.u32 2147483647, %v731
      %vm945 = vcmp.eq.f32.partialorder %v944, 8.507059e+37
      %v946 = vand.u32 %v731, 2147483648
      %v947 = vor.u32 1.1754944e-38, %v946
      %v948 = vsel %vm945, %v947, %v943
      %v949 = vmul.f32 1.0, %v948
      %v950 = vrcp.pop %v732
      %v951 = vmul.f32 %v732, %v950
      %v952 = vsub.f32 1.0, %v951
      %v953 = vmul.f32 %v950, %v952
      %v954 = vadd.f32 %v950, %v953
      %vm955 = vweird.f32 %v732
      %vm956 = vweird.f32 %v950
      %vm957 = vmor %vm955, %vm956
      %v958 = vsel %vm957, %v950, %v954
      %v959 = vand.u32 2147483647, %v732
      %vm960 = vcmp.eq.f32.partialorder %v959, 8.507059e+37
      %v961 = vand.u32 %v732, 2147483648
      %v962 = vor.u32 1.1754944e-38, %v961
      %v963 = vsel %vm960, %v962, %v958
      %v964 = vmul.f32 1.0, %v963
      %v965 = vrcp.pop %v733
      %v966 = vmul.f32 %v733, %v965
      %v967 = vsub.f32 1.0, %v966
      %v968 = vmul.f32 %v965, %v967
      %v969 = vadd.f32 %v965, %v968
      %vm970 = vweird.f32 %v733
      %vm971 = vweird.f32 %v965
      %vm972 = vmor %vm970, %vm971
      %v973 = vsel %vm972, %v965, %v969
      %v974 = vand.u32 2147483647, %v733
      %vm975 = vcmp.eq.f32.partialorder %v974, 8.507059e+37
      %v976 = vand.u32 %v733, 2147483648
      %v977 = vor.u32 1.1754944e-38, %v976
      %v978 = vsel %vm975, %v977, %v973
      %v979 = vmul.f32 1.0, %v978
      %v980 = vrcp.pop %v734
      %v981 = vmul.f32 %v734, %v980
      %v982 = vsub.f32 1.0, %v981
      %v983 = vmul.f32 %v980, %v982
      %v984 = vadd.f32 %v980, %v983
      %vm985 = vweird.f32 %v734
      %vm986 = vweird.f32 %v980
      %vm987 = vmor %vm985, %vm986
      %v988 = vsel %vm987, %v980, %v984
      %v989 = vand.u32 2147483647, %v734
      %vm990 = vcmp.eq.f32.partialorder %v989, 8.507059e+37
      %v991 = vand.u32 %v734, 2147483648
      %v992 = vor.u32 1.1754944e-38, %v991
      %v993 = vsel %vm990, %v992, %v988
      %v994 = vmul.f32 1.0, %v993
      %v995 = vrcp.pop %v735
      %v996 = vmul.f32 %v735, %v995
      %v997 = vsub.f32 1.0, %v996
      %v998 = vmul.f32 %v995, %v997
      %v999 = vadd.f32 %v995, %v998
      %vm1000 = vweird.f32 %v735
      %vm1001 = vweird.f32 %v995
      %vm1002 = vmor %vm1000, %vm1001
      %v1003 = vsel %vm1002, %v995, %v999
      %v1004 = vand.u32 2147483647, %v735
      %vm1005 = vcmp.eq.f32.partialorder %v1004, 8.507059e+37
      %v1006 = vand.u32 %v735, 2147483648
      %v1007 = vor.u32 1.1754944e-38, %v1006
      %v1008 = vsel %vm1005, %v1007, %v1003
      %v1009 = vmul.f32 1.0, %v1008
      %v1010 = vrcp.pop %v736
      %v1011 = vmul.f32 %v736, %v1010
      %v1012 = vsub.f32 1.0, %v1011
      %v1013 = vmul.f32 %v1010, %v1012
      %v1014 = vadd.f32 %v1010, %v1013
      %vm1015 = vweird.f32 %v736
      %vm1016 = vweird.f32 %v1010
      %vm1017 = vmor %vm1015, %vm1016
      %v1018 = vsel %vm1017, %v1010, %v1014
      %v1019 = vand.u32 2147483647, %v736
      %vm1020 = vcmp.eq.f32.partialorder %v1019, 8.507059e+37
      %v1021 = vand.u32 %v736, 2147483648
      %v1022 = vor.u32 1.1754944e-38, %v1021
      %v1023 = vsel %vm1020, %v1022, %v1018
      %v1024 = vmul.f32 1.0, %v1023
      %v1025 = vrcp.pop %v737
      %v1026 = vmul.f32 %v737, %v1025
      %v1027 = vsub.f32 1.0, %v1026
      %v1028 = vmul.f32 %v1025, %v1027
      %v1029 = vadd.f32 %v1025, %v1028
      %vm1030 = vweird.f32 %v737
      %vm1031 = vweird.f32 %v1025
      %vm1032 = vmor %vm1030, %vm1031
      %v1033 = vsel %vm1032, %v1025, %v1029
      %v1034 = vand.u32 2147483647, %v737
      %vm1035 = vcmp.eq.f32.partialorder %v1034, 8.507059e+37
      %v1036 = vand.u32 %v737, 2147483648
      %v1037 = vor.u32 1.1754944e-38, %v1036
      %v1038 = vsel %vm1035, %v1037, %v1033
      %v1039 = vmul.f32 1.0, %v1038
      %v1040 = vrcp.pop %v738
      %v1041 = vmul.f32 %v738, %v1040
      %v1042 = vsub.f32 1.0, %v1041
      %v1043 = vmul.f32 %v1040, %v1042
      %v1044 = vadd.f32 %v1040, %v1043
      %vm1045 = vweird.f32 %v738
      %vm1046 = vweird.f32 %v1040
      %vm1047 = vmor %vm1045, %vm1046
      %v1048 = vsel %vm1047, %v1040, %v1044
      %v1049 = vand.u32 2147483647, %v738
      %vm1050 = vcmp.eq.f32.partialorder %v1049, 8.507059e+37
      %v1051 = vand.u32 %v738, 2147483648
      %v1052 = vor.u32 1.1754944e-38, %v1051
      %v1053 = vsel %vm1050, %v1052, %v1048
      %v1054 = vmul.f32 1.0, %v1053
      %v1055 = vrcp.pop %v739
      %v1056 = vmul.f32 %v739, %v1055
      %v1057 = vsub.f32 1.0, %v1056
      %v1058 = vmul.f32 %v1055, %v1057
      %v1059 = vadd.f32 %v1055, %v1058
      %vm1060 = vweird.f32 %v739
      %vm1061 = vweird.f32 %v1055
      %vm1062 = vmor %vm1060, %vm1061
      %v1063 = vsel %vm1062, %v1055, %v1059
      %v1064 = vand.u32 2147483647, %v739
      %vm1065 = vcmp.eq.f32.partialorder %v1064, 8.507059e+37
      %v1066 = vand.u32 %v739, 2147483648
      %v1067 = vor.u32 1.1754944e-38, %v1066
      %v1068 = vsel %vm1065, %v1067, %v1063
      %v1069 = vmul.f32 1.0, %v1068
      %v1070 = vrcp.pop %v740
      %v1071 = vmul.f32 %v740, %v1070
      %v1072 = vsub.f32 1.0, %v1071
      %v1073 = vmul.f32 %v1070, %v1072
      %v1074 = vadd.f32 %v1070, %v1073
      %vm1075 = vweird.f32 %v740
      %vm1076 = vweird.f32 %v1070
      %vm1077 = vmor %vm1075, %vm1076
      %v1078 = vsel %vm1077, %v1070, %v1074
      %v1079 = vand.u32 2147483647, %v740
      %vm1080 = vcmp.eq.f32.partialorder %v1079, 8.507059e+37
      %v1081 = vand.u32 %v740, 2147483648
      %v1082 = vor.u32 1.1754944e-38, %v1081
      %v1083 = vsel %vm1080, %v1082, %v1078
      %v1084 = vmul.f32 1.0, %v1083
      %v1085 = vrcp.pop %v741
      %v1086 = vmul.f32 %v741, %v1085
      %v1087 = vsub.f32 1.0, %v1086
      %v1088 = vmul.f32 %v1085, %v1087
      %v1089 = vadd.f32 %v1085, %v1088
      %vm1090 = vweird.f32 %v741
      %vm1091 = vweird.f32 %v1085
      %vm1092 = vmor %vm1090, %vm1091
      %v1093 = vsel %vm1092, %v1085, %v1089
      %v1094 = vand.u32 2147483647, %v741
      %vm1095 = vcmp.eq.f32.partialorder %v1094, 8.507059e+37
      %v1096 = vand.u32 %v741, 2147483648
      %v1097 = vor.u32 1.1754944e-38, %v1096
      %v1098 = vsel %vm1095, %v1097, %v1093
      %v1099 = vmul.f32 1.0, %v1098
      %v1100 = vrcp.pop %v742
      %v1101 = vmul.f32 %v742, %v1100
      %v1102 = vsub.f32 1.0, %v1101
      %v1103 = vmul.f32 %v1100, %v1102
      %v1104 = vadd.f32 %v1100, %v1103
      %vm1105 = vweird.f32 %v742
      %vm1106 = vweird.f32 %v1100
      %vm1107 = vmor %vm1105, %vm1106
      %v1108 = vsel %vm1107, %v1100, %v1104
      %v1109 = vand.u32 2147483647, %v742
      %vm1110 = vcmp.eq.f32.partialorder %v1109, 8.507059e+37
      %v1111 = vand.u32 %v742, 2147483648
      %v1112 = vor.u32 1.1754944e-38, %v1111
      %v1113 = vsel %vm1110, %v1112, %v1108
      %v1114 = vmul.f32 1.0, %v1113
      %v1115 = vrcp.pop %v743
      %v1116 = vmul.f32 %v743, %v1115
      %v1117 = vsub.f32 1.0, %v1116
      %v1118 = vmul.f32 %v1115, %v1117
      %v1119 = vadd.f32 %v1115, %v1118
      %vm1120 = vweird.f32 %v743
      %vm1121 = vweird.f32 %v1115
      %vm1122 = vmor %vm1120, %vm1121
      %v1123 = vsel %vm1122, %v1115, %v1119
      %v1124 = vand.u32 2147483647, %v743
      %vm1125 = vcmp.eq.f32.partialorder %v1124, 8.507059e+37
      %v1126 = vand.u32 %v743, 2147483648
      %v1127 = vor.u32 1.1754944e-38, %v1126
      %v1128 = vsel %vm1125, %v1127, %v1123
      %v1129 = vmul.f32 1.0, %v1128
      %v1130 = vrcp.pop %v744
      %v1131 = vmul.f32 %v744, %v1130
      %v1132 = vsub.f32 1.0, %v1131
      %v1133 = vmul.f32 %v1130, %v1132
      %v1134 = vadd.f32 %v1130, %v1133
      %vm1135 = vweird.f32 %v744
      %vm1136 = vweird.f32 %v1130
      %vm1137 = vmor %vm1135, %vm1136
      %v1138 = vsel %vm1137, %v1130, %v1134
      %v1139 = vand.u32 2147483647, %v744
      %vm1140 = vcmp.eq.f32.partialorder %v1139, 8.507059e+37
      %v1141 = vand.u32 %v744, 2147483648
      %v1142 = vor.u32 1.1754944e-38, %v1141
      %v1143 = vsel %vm1140, %v1142, %v1138
      %v1144 = vmul.f32 1.0, %v1143
      %v1145 = vrcp.pop %v745
      %v1146 = vmul.f32 %v745, %v1145
      %v1147 = vsub.f32 1.0, %v1146
      %v1148 = vmul.f32 %v1145, %v1147
      %v1149 = vadd.f32 %v1145, %v1148
      %vm1150 = vweird.f32 %v745
      %vm1151 = vweird.f32 %v1145
      %vm1152 = vmor %vm1150, %vm1151
      %v1153 = vsel %vm1152, %v1145, %v1149
      %v1154 = vand.u32 2147483647, %v745
      %vm1155 = vcmp.eq.f32.partialorder %v1154, 8.507059e+37
      %v1156 = vand.u32 %v745, 2147483648
      %v1157 = vor.u32 1.1754944e-38, %v1156
      %v1158 = vsel %vm1155, %v1157, %v1153
      %v1159 = vmul.f32 1.0, %v1158
      %v1160 = vrcp.pop %v746
      %v1161 = vmul.f32 %v746, %v1160
      %v1162 = vsub.f32 1.0, %v1161
      %v1163 = vmul.f32 %v1160, %v1162
      %v1164 = vadd.f32 %v1160, %v1163
      %vm1165 = vweird.f32 %v746
      %vm1166 = vweird.f32 %v1160
      %vm1167 = vmor %vm1165, %vm1166
      %v1168 = vsel %vm1167, %v1160, %v1164
      %v1169 = vand.u32 2147483647, %v746
      %vm1170 = vcmp.eq.f32.partialorder %v1169, 8.507059e+37
      %v1171 = vand.u32 %v746, 2147483648
      %v1172 = vor.u32 1.1754944e-38, %v1171
      %v1173 = vsel %vm1170, %v1172, %v1168
      %v1174 = vmul.f32 1.0, %v1173
      %v1175 = vrcp.pop %v747
      %v1176 = vmul.f32 %v747, %v1175
      %v1177 = vsub.f32 1.0, %v1176
      %v1178 = vmul.f32 %v1175, %v1177
      %v1179 = vadd.f32 %v1175, %v1178
      %vm1180 = vweird.f32 %v747
      %vm1181 = vweird.f32 %v1175
      %vm1182 = vmor %vm1180, %vm1181
      %v1183 = vsel %vm1182, %v1175, %v1179
      %v1184 = vand.u32 2147483647, %v747
      %vm1185 = vcmp.eq.f32.partialorder %v1184, 8.507059e+37
      %v1186 = vand.u32 %v747, 2147483648
      %v1187 = vor.u32 1.1754944e-38, %v1186
      %v1188 = vsel %vm1185, %v1187, %v1183
      %v1189 = vmul.f32 1.0, %v1188
      %v1190 = vrcp.pop %v748
      %v1191 = vmul.f32 %v748, %v1190
      %v1192 = vsub.f32 1.0, %v1191
      %v1193 = vmul.f32 %v1190, %v1192
      %v1194 = vadd.f32 %v1190, %v1193
      %vm1195 = vweird.f32 %v748
      %vm1196 = vweird.f32 %v1190
      %vm1197 = vmor %vm1195, %vm1196
      %v1198 = vsel %vm1197, %v1190, %v1194
      %v1199 = vand.u32 2147483647, %v748
      %vm1200 = vcmp.eq.f32.partialorder %v1199, 8.507059e+37
      %v1201 = vand.u32 %v748, 2147483648
      %v1202 = vor.u32 1.1754944e-38, %v1201
      %v1203 = vsel %vm1200, %v1202, %v1198
      %v1204 = vmul.f32 1.0, %v1203
      %v1205 = vrcp.pop %v749
      %v1206 = vmul.f32 %v749, %v1205
      %v1207 = vsub.f32 1.0, %v1206
      %v1208 = vmul.f32 %v1205, %v1207
      %v1209 = vadd.f32 %v1205, %v1208
      %vm1210 = vweird.f32 %v749
      %vm1211 = vweird.f32 %v1205
      %vm1212 = vmor %vm1210, %vm1211
      %v1213 = vsel %vm1212, %v1205, %v1209
      %v1214 = vand.u32 2147483647, %v749
      %vm1215 = vcmp.eq.f32.partialorder %v1214, 8.507059e+37
      %v1216 = vand.u32 %v749, 2147483648
      %v1217 = vor.u32 1.1754944e-38, %v1216
      %v1218 = vsel %vm1215, %v1217, %v1213
      %v1219 = vmul.f32 1.0, %v1218
      %v1220 = vrcp.pop %v750
      %v1221 = vmul.f32 %v750, %v1220
      %v1222 = vsub.f32 1.0, %v1221
      %v1223 = vmul.f32 %v1220, %v1222
      %v1224 = vadd.f32 %v1220, %v1223
      %vm1225 = vweird.f32 %v750
      %vm1226 = vweird.f32 %v1220
      %vm1227 = vmor %vm1225, %vm1226
      %v1228 = vsel %vm1227, %v1220, %v1224
      %v1229 = vand.u32 2147483647, %v750
      %vm1230 = vcmp.eq.f32.partialorder %v1229, 8.507059e+37
      %v1231 = vand.u32 %v750, 2147483648
      %v1232 = vor.u32 1.1754944e-38, %v1231
      %v1233 = vsel %vm1230, %v1232, %v1228
      %v1234 = vmul.f32 1.0, %v1233
      %v1235 = vrcp.pop %v751
      %v1236 = vmul.f32 %v751, %v1235
      %v1237 = vsub.f32 1.0, %v1236
      %v1238 = vmul.f32 %v1235, %v1237
      %v1239 = vadd.f32 %v1235, %v1238
      %vm1240 = vweird.f32 %v751
      %vm1241 = vweird.f32 %v1235
      %vm1242 = vmor %vm1240, %vm1241
      %v1243 = vsel %vm1242, %v1235, %v1239
      %v1244 = vand.u32 2147483647, %v751
      %vm1245 = vcmp.eq.f32.partialorder %v1244, 8.507059e+37
      %v1246 = vand.u32 %v751, 2147483648
      %v1247 = vor.u32 1.1754944e-38, %v1246
      %v1248 = vsel %vm1245, %v1247, %v1243
      %v1249 = vmul.f32 1.0, %v1248
      %v1250 = vrcp.pop %v752
      %v1251 = vmul.f32 %v752, %v1250
      %v1252 = vsub.f32 1.0, %v1251
      %v1253 = vmul.f32 %v1250, %v1252
      %v1254 = vadd.f32 %v1250, %v1253
      %vm1255 = vweird.f32 %v752
      %vm1256 = vweird.f32 %v1250
      %vm1257 = vmor %vm1255, %vm1256
      %v1258 = vsel %vm1257, %v1250, %v1254
      %v1259 = vand.u32 2147483647, %v752
      %vm1260 = vcmp.eq.f32.partialorder %v1259, 8.507059e+37
      %v1261 = vand.u32 %v752, 2147483648
      %v1262 = vor.u32 1.1754944e-38, %v1261
      %v1263 = vsel %vm1260, %v1262, %v1258
      %v1264 = vmul.f32 1.0, %v1263
      %v1265 = vrcp.pop %v753
      %v1266 = vmul.f32 %v753, %v1265
      %v1267 = vsub.f32 1.0, %v1266
      %v1268 = vmul.f32 %v1265, %v1267
      %v1269 = vadd.f32 %v1265, %v1268
      %vm1270 = vweird.f32 %v753
      %vm1271 = vweird.f32 %v1265
      %vm1272 = vmor %vm1270, %vm1271
      %v1273 = vsel %vm1272, %v1265, %v1269
      %v1274 = vand.u32 2147483647, %v753
      %vm1275 = vcmp.eq.f32.partialorder %v1274, 8.507059e+37
      %v1276 = vand.u32 %v753, 2147483648
      %v1277 = vor.u32 1.1754944e-38, %v1276
      %v1278 = vsel %vm1275, %v1277, %v1273
      %v1279 = vmul.f32 1.0, %v1278
      %v1280 = vrcp.pop %v754
      %v1281 = vmul.f32 %v754, %v1280
      %v1282 = vsub.f32 1.0, %v1281
      %v1283 = vmul.f32 %v1280, %v1282
      %v1284 = vadd.f32 %v1280, %v1283
      %vm1285 = vweird.f32 %v754
      %vm1286 = vweird.f32 %v1280
      %vm1287 = vmor %vm1285, %vm1286
      %v1288 = vsel %vm1287, %v1280, %v1284
      %v1289 = vand.u32 2147483647, %v754
      %vm1290 = vcmp.eq.f32.partialorder %v1289, 8.507059e+37
      %v1291 = vand.u32 %v754, 2147483648
      %v1292 = vor.u32 1.1754944e-38, %v1291
      %v1293 = vsel %vm1290, %v1292, %v1288
      %v1294 = vmul.f32 1.0, %v1293
      %v1295 = vmul.f32 %v522, %v769
      %v1296 = vmul.f32 %v524, %v784
      %v1297 = vmul.f32 %v527, %v799
      %v1298 = vmul.f32 %v529, %v814
      %v1299 = vmul.f32 %v532, %v829
      %v1300 = vmul.f32 %v534, %v844
      %v1301 = vmul.f32 %v537, %v859
      %v1302 = vmul.f32 %v539, %v874
      %v1303 = vmul.f32 %v542, %v889
      %v1304 = vmul.f32 %v544, %v904
      %v1305 = vmul.f32 %v547, %v919
      %v1306 = vmul.f32 %v549, %v934
      %v1307 = vmul.f32 %v552, %v949
      %v1308 = vmul.f32 %v554, %v964
      %v1309 = vmul.f32 %v557, %v979
      %v1310 = vmul.f32 %v559, %v994
      %v1311 = vmul.f32 %v562, %v1009
      %v1312 = vmul.f32 %v564, %v1024
      %v1313 = vmul.f32 %v567, %v1039
      %v1314 = vmul.f32 %v569, %v1054
      %v1315 = vmul.f32 %v572, %v1069
      %v1316 = vmul.f32 %v574, %v1084
      %v1317 = vmul.f32 %v577, %v1099
      %v1318 = vmul.f32 %v579, %v1114
      %v1319 = vmul.f32 %v582, %v1129
      %v1320 = vmul.f32 %v584, %v1144
      %v1321 = vmul.f32 %v587, %v1159
      %v1322 = vmul.f32 %v589, %v1174
      %v1323 = vmul.f32 %v592, %v1189
      %v1324 = vmul.f32 %v594, %v1204
      %v1325 = vmul.f32 %v597, %v1219
      %v1326 = vmul.f32 %v599, %v1234
      %v1327 = vmul.f32 %v602, %v1249
      %v1328 = vmul.f32 %v604, %v1264
      %v1329 = vmul.f32 %v607, %v1279
      %v1330 = vmul.f32 %v609, %v1294
      %v1331 = vpack.c.bf16 %v1296, %v1295
      %v1332 = vpack.c.bf16 %v1298, %v1297
      %v1333 = vpack.c.bf16 %v1300, %v1299
      %v1334 = vpack.c.bf16 %v1302, %v1301
      %v1335 = vpack.c.bf16 %v1304, %v1303
      %v1336 = vpack.c.bf16 %v1306, %v1305
      %v1337 = vpack.c.bf16 %v1308, %v1307
      %v1338 = vpack.c.bf16 %v1310, %v1309
      %v1339 = vpack.c.bf16 %v1312, %v1311
      %v1340 = vpack.c.bf16 %v1314, %v1313
      %v1341 = vpack.c.bf16 %v1316, %v1315
      %v1342 = vpack.c.bf16 %v1318, %v1317
      %v1343 = vpack.c.bf16 %v1320, %v1319
      %v1344 = vpack.c.bf16 %v1322, %v1321
      %v1345 = vpack.c.bf16 %v1324, %v1323
      %v1346 = vpack.c.bf16 %v1326, %v1325
      %v1347 = vpack.c.bf16 %v1328, %v1327
      %v1348 = vpack.c.bf16 %v1330, %v1329
      %v1349 = vld [vmem:[%s6] sm:$0xff]
      %v1350 = vld [vmem:[%s6 + $0x8] sm:$0xf]
      %v1351 = vld [vmem:[%s6 + $0xc] sm:$0xff]
      %v1352 = vld [vmem:[%s6 + $0x14] sm:$0xf]
      %v1353 = vld [vmem:[%s6 + $0x18] sm:$0xff]
      %v1354 = vld [vmem:[%s6 + $0x20] sm:$0xf]
      %v1355 = vld [vmem:[%s6 + $0x24] sm:$0xff]
      %v1356 = vld [vmem:[%s6 + $0x2c] sm:$0xf]
      %v1357 = vld [vmem:[%s6 + $0x30] sm:$0xff]
      %v1358 = vld [vmem:[%s6 + $0x38] sm:$0xf]
      %v1359 = vld [vmem:[%s6 + $0x3c] sm:$0xff]
      %v1360 = vld [vmem:[%s6 + $0x44] sm:$0xf]
      %v1361 = vld [vmem:[%s6 + $0x48] sm:$0xff]
      %v1362 = vld [vmem:[%s6 + $0x50] sm:$0xf]
      %v1363 = vld [vmem:[%s6 + $0x54] sm:$0xff]
      %v1364 = vld [vmem:[%s6 + $0x5c] sm:$0xf]
      %v1365 = vld [vmem:[%s6 + $0x60] sm:$0xff]
      %v1366 = vld [vmem:[%s6 + $0x68] sm:$0xf]
      %v1367 = vld [vmem:[%s6 + $0x6c] sm:$0xff]
      %v1368 = vld [vmem:[%s6 + $0x74] sm:$0xf]
      %v1369 = vld [vmem:[%s6 + $0x78] sm:$0xff]
      %v1370 = vld [vmem:[%s6 + $0x80] sm:$0xf]
      %v1371 = vld [vmem:[%s6 + $0x84] sm:$0xff]
      %v1372 = vld [vmem:[%s6 + $0x8c] sm:$0xf]
      %v1373 = vld [vmem:[%s6 + $0x90] sm:$0xff]
      %v1374 = vld [vmem:[%s6 + $0x98] sm:$0xf]
      %v1375 = vld [vmem:[%s6 + $0x9c] sm:$0xff]
      %v1376 = vld [vmem:[%s6 + $0xa4] sm:$0xf]
      %v1377 = vld [vmem:[%s6 + $0xa8] sm:$0xff]
      %v1378 = vld [vmem:[%s6 + $0xb0] sm:$0xf]
      %v1379 = vld [vmem:[%s6 + $0xb4] sm:$0xff]
      %v1380 = vld [vmem:[%s6 + $0xbc] sm:$0xf]
      %v1383 = vperm.slane %v384, 1
      %v1384 = vperm.slane %v384, 5
      %v1385 = vperm.slane %v385, 1
      %v1389 = vperm.slane %v1383, 1
      %v1390 = vperm.slane %v1384, 1
      %v1391 = vperm.slane %v1385, 1
      %v1424 = vunpack.c.l.b16 %v1349
      %v1425 = vunpack.c.h.b16 %v1349
      %v1426 = vunpack.c.l.b16 %v1350
      %v1427 = vunpack.c.l.b16 %v1351
      %v1428 = vunpack.c.h.b16 %v1351
      %v1429 = vunpack.c.l.b16 %v1352
      %v1430 = vunpack.c.l.b16 %v1353
      %v1431 = vunpack.c.h.b16 %v1353
      %v1432 = vunpack.c.l.b16 %v1354
      %v1433 = vunpack.c.l.b16 %v1355
      %v1434 = vunpack.c.h.b16 %v1355
      %v1435 = vunpack.c.l.b16 %v1356
      %v1436 = vunpack.c.l.b16 %v1357
      %v1437 = vunpack.c.h.b16 %v1357
      %v1438 = vunpack.c.l.b16 %v1358
      %v1439 = vunpack.c.l.b16 %v1359
      %v1440 = vunpack.c.h.b16 %v1359
      %v1441 = vunpack.c.l.b16 %v1360
      %v1442 = vunpack.c.l.b16 %v1361
      %v1443 = vunpack.c.h.b16 %v1361
      %v1444 = vunpack.c.l.b16 %v1362
      %v1445 = vunpack.c.l.b16 %v1363
      %v1446 = vunpack.c.h.b16 %v1363
      %v1447 = vunpack.c.l.b16 %v1364
      %v1448 = vunpack.c.l.b16 %v1365
      %v1449 = vunpack.c.h.b16 %v1365
      %v1450 = vunpack.c.l.b16 %v1366
      %v1451 = vunpack.c.l.b16 %v1367
      %v1452 = vunpack.c.h.b16 %v1367
      %v1453 = vunpack.c.l.b16 %v1368
      %v1454 = vunpack.c.l.b16 %v1369
      %v1455 = vunpack.c.h.b16 %v1369
      %v1456 = vunpack.c.l.b16 %v1370
      %v1457 = vunpack.c.l.b16 %v1371
      %v1458 = vunpack.c.h.b16 %v1371
      %v1459 = vunpack.c.l.b16 %v1372
      %v1460 = vunpack.c.l.b16 %v1373
      %v1461 = vunpack.c.h.b16 %v1373
      %v1462 = vunpack.c.l.b16 %v1374
      %v1463 = vunpack.c.l.b16 %v1375
      %v1464 = vunpack.c.h.b16 %v1375
      %v1465 = vunpack.c.l.b16 %v1376
      %v1466 = vunpack.c.l.b16 %v1377
      %v1467 = vunpack.c.h.b16 %v1377
      %v1468 = vunpack.c.l.b16 %v1378
      %v1469 = vunpack.c.l.b16 %v1379
      %v1470 = vunpack.c.h.b16 %v1379
      %v1471 = vunpack.c.l.b16 %v1380
      %v1472 = vpack.c.b16 %v1427, %v1424
      %v1473 = vpack.c.b16 %v1428, %v1425
      %v1474 = vpack.c.b16 %v1429, %v1426
      %v1475 = vpack.c.b16 %v1433, %v1430
      %v1476 = vpack.c.b16 %v1434, %v1431
      %v1477 = vpack.c.b16 %v1435, %v1432
      %v1478 = vpack.c.b16 %v1439, %v1436
      %v1479 = vpack.c.b16 %v1440, %v1437
      %v1480 = vpack.c.b16 %v1441, %v1438
      %v1481 = vpack.c.b16 %v1445, %v1442
      %v1482 = vpack.c.b16 %v1446, %v1443
      %v1483 = vpack.c.b16 %v1447, %v1444
      %v1484 = vpack.c.b16 %v1451, %v1448
      %v1485 = vpack.c.b16 %v1452, %v1449
      %v1486 = vpack.c.b16 %v1453, %v1450
      %v1487 = vpack.c.b16 %v1457, %v1454
      %v1488 = vpack.c.b16 %v1458, %v1455
      %v1489 = vpack.c.b16 %v1459, %v1456
      %v1490 = vpack.c.b16 %v1463, %v1460
      %v1491 = vpack.c.b16 %v1464, %v1461
      %v1492 = vpack.c.b16 %v1465, %v1462
      %v1493 = vpack.c.b16 %v1469, %v1466
      %v1494 = vpack.c.b16 %v1470, %v1467
      %v1495 = vpack.c.b16 %v1471, %v1468
      %1520 = vmatpush.bf16.msra.mxu0 %v1493
      %1521 = vmatpush.bf16.msra.mxu0 %v1490
      %1522 = vmatpush.bf16.msra.mxu0 %v1487
      %1523 = vmatpush.bf16.msra.mxu0 %v1484
      %1524 = vmatpush.bf16.msra.mxu0 %v1481
      %1525 = vmatpush.bf16.msra.mxu0 %v1478
      %1526 = vmatpush.bf16.msra.mxu0 %v1475
      %1527 = vmatpush.bf16.msra.mxu0 %v1472
      %1528 = vmatmul.bf16.gmra.mxu0 %v1331
      %v1529 = vpop.f32.mrf.mxu0
      %v1530 = vadd.f32 %v1389, %v1529
      %v1531 = vpop.f32.mrf.mxu0
      %v1532 = vadd.f32 %v1389, %v1531
      %1533 = vmatmul.bf16.gmra.mxu0 %v1332
      %v1534 = vpop.f32.mrf.mxu0
      %v1535 = vadd.f32 %v1389, %v1534
      %v1536 = vpop.f32.mrf.mxu0
      %v1537 = vadd.f32 %v1389, %v1536
      %1538 = vmatmul.bf16.gmra.mxu0 %v1333
      %v1539 = vpop.f32.mrf.mxu0
      %v1540 = vadd.f32 %v1389, %v1539
      %v1541 = vpop.f32.mrf.mxu0
      %v1542 = vadd.f32 %v1389, %v1541
      %1543 = vmatmul.bf16.gmra.mxu0 %v1334
      %v1544 = vpop.f32.mrf.mxu0
      %v1545 = vadd.f32 %v1389, %v1544
      %v1546 = vpop.f32.mrf.mxu0
      %v1547 = vadd.f32 %v1389, %v1546
      %1548 = vmatmul.bf16.gmra.mxu0 %v1335
      %v1549 = vpop.f32.mrf.mxu0
      %v1550 = vadd.f32 %v1389, %v1549
      %v1551 = vpop.f32.mrf.mxu0
      %v1552 = vadd.f32 %v1389, %v1551
      %1553 = vmatmul.bf16.gmra.mxu0 %v1336
      %v1554 = vpop.f32.mrf.mxu0
      %v1555 = vadd.f32 %v1389, %v1554
      %v1556 = vpop.f32.mrf.mxu0
      %v1557 = vadd.f32 %v1389, %v1556
      %1558 = vmatmul.bf16.gmra.mxu0 %v1337
      %v1559 = vpop.f32.mrf.mxu0
      %v1560 = vadd.f32 %v1389, %v1559
      %v1561 = vpop.f32.mrf.mxu0
      %v1562 = vadd.f32 %v1389, %v1561
      %1563 = vmatmul.bf16.gmra.mxu0 %v1338
      %v1564 = vpop.f32.mrf.mxu0
      %v1565 = vadd.f32 %v1389, %v1564
      %v1566 = vpop.f32.mrf.mxu0
      %v1567 = vadd.f32 %v1389, %v1566
      %1568 = vmatmul.bf16.gmra.mxu0 %v1339
      %v1569 = vpop.f32.mrf.mxu0
      %v1570 = vadd.f32 %v1389, %v1569
      %v1571 = vpop.f32.mrf.mxu0
      %v1572 = vadd.f32 %v1389, %v1571
      %1573 = vmatmul.bf16.gmra.mxu0 %v1340
      %v1574 = vpop.f32.mrf.mxu0
      %v1575 = vadd.f32 %v1389, %v1574
      %v1576 = vpop.f32.mrf.mxu0
      %v1577 = vadd.f32 %v1389, %v1576
      %1578 = vmatmul.bf16.gmra.mxu0 %v1341
      %v1579 = vpop.f32.mrf.mxu0
      %v1580 = vadd.f32 %v1389, %v1579
      %v1581 = vpop.f32.mrf.mxu0
      %v1582 = vadd.f32 %v1389, %v1581
      %1583 = vmatmul.bf16.gmra.mxu0 %v1342
      %v1584 = vpop.f32.mrf.mxu0
      %v1585 = vadd.f32 %v1389, %v1584
      %v1586 = vpop.f32.mrf.mxu0
      %v1587 = vadd.f32 %v1389, %v1586
      %1588 = vmatmul.bf16.gmra.mxu0 %v1343
      %v1589 = vpop.f32.mrf.mxu0
      %v1590 = vadd.f32 %v1389, %v1589
      %v1591 = vpop.f32.mrf.mxu0
      %v1592 = vadd.f32 %v1389, %v1591
      %1593 = vmatmul.bf16.gmra.mxu0 %v1344
      %v1594 = vpop.f32.mrf.mxu0
      %v1595 = vadd.f32 %v1389, %v1594
      %v1596 = vpop.f32.mrf.mxu0
      %v1597 = vadd.f32 %v1389, %v1596
      %1598 = vmatmul.bf16.gmra.mxu0 %v1345
      %v1599 = vpop.f32.mrf.mxu0
      %v1600 = vadd.f32 %v1389, %v1599
      %v1601 = vpop.f32.mrf.mxu0
      %v1602 = vadd.f32 %v1389, %v1601
      %1603 = vmatmul.bf16.gmra.mxu0 %v1346
      %v1604 = vpop.f32.mrf.mxu0
      %v1605 = vadd.f32 %v1389, %v1604
      %v1606 = vpop.f32.mrf.mxu0
      %v1607 = vadd.f32 %v1389, %v1606
      %1608 = vmatmul.bf16.gmra.mxu0 %v1347
      %v1609 = vpop.f32.mrf.mxu0
      %v1610 = vadd.f32 %v1389, %v1609
      %v1611 = vpop.f32.mrf.mxu0
      %v1612 = vadd.f32 %v1389, %v1611
      %1613 = vmatmul.bf16.gmra.mxu0 %v1348
      %v1614 = vpop.f32.mrf.mxu0
      %v1615 = vadd.f32 %v1389, %v1614
      %v1616 = vpop.f32.mrf.mxu0
      %v1617 = vadd.f32 %v1389, %v1616
      %1618 = vdwg.mxu0
      %1619 = vmatpush.bf16.msra.mxu0 %v1494
      %1620 = vmatpush.bf16.msra.mxu0 %v1491
      %1621 = vmatpush.bf16.msra.mxu0 %v1488
      %1622 = vmatpush.bf16.msra.mxu0 %v1485
      %1623 = vmatpush.bf16.msra.mxu0 %v1482
      %1624 = vmatpush.bf16.msra.mxu0 %v1479
      %1625 = vmatpush.bf16.msra.mxu0 %v1476
      %1626 = vmatpush.bf16.msra.mxu0 %v1473
      %1627 = vmatmul.bf16.gmra.mxu0 %v1331
      %v1628 = vpop.f32.mrf.mxu0
      %v1629 = vadd.f32 %v1390, %v1628
      %v1630 = vpop.f32.mrf.mxu0
      %v1631 = vadd.f32 %v1390, %v1630
      %1632 = vmatmul.bf16.gmra.mxu0 %v1332
      %v1633 = vpop.f32.mrf.mxu0
      %v1634 = vadd.f32 %v1390, %v1633
      %v1635 = vpop.f32.mrf.mxu0
      %v1636 = vadd.f32 %v1390, %v1635
      %1637 = vmatmul.bf16.gmra.mxu0 %v1333
      %v1638 = vpop.f32.mrf.mxu0
      %v1639 = vadd.f32 %v1390, %v1638
      %v1640 = vpop.f32.mrf.mxu0
      %v1641 = vadd.f32 %v1390, %v1640
      %1642 = vmatmul.bf16.gmra.mxu0 %v1334
      %v1643 = vpop.f32.mrf.mxu0
      %v1644 = vadd.f32 %v1390, %v1643
      %v1645 = vpop.f32.mrf.mxu0
      %v1646 = vadd.f32 %v1390, %v1645
      %1647 = vmatmul.bf16.gmra.mxu0 %v1335
      %v1648 = vpop.f32.mrf.mxu0
      %v1649 = vadd.f32 %v1390, %v1648
      %v1650 = vpop.f32.mrf.mxu0
      %v1651 = vadd.f32 %v1390, %v1650
      %1652 = vmatmul.bf16.gmra.mxu0 %v1336
      %v1653 = vpop.f32.mrf.mxu0
      %v1654 = vadd.f32 %v1390, %v1653
      %v1655 = vpop.f32.mrf.mxu0
      %v1656 = vadd.f32 %v1390, %v1655
      %1657 = vmatmul.bf16.gmra.mxu0 %v1337
      %v1658 = vpop.f32.mrf.mxu0
      %v1659 = vadd.f32 %v1390, %v1658
      %v1660 = vpop.f32.mrf.mxu0
      %v1661 = vadd.f32 %v1390, %v1660
      %1662 = vmatmul.bf16.gmra.mxu0 %v1338
      %v1663 = vpop.f32.mrf.mxu0
      %v1664 = vadd.f32 %v1390, %v1663
      %v1665 = vpop.f32.mrf.mxu0
      %v1666 = vadd.f32 %v1390, %v1665
      %1667 = vmatmul.bf16.gmra.mxu0 %v1339
      %v1668 = vpop.f32.mrf.mxu0
      %v1669 = vadd.f32 %v1390, %v1668
      %v1670 = vpop.f32.mrf.mxu0
      %v1671 = vadd.f32 %v1390, %v1670
      %1672 = vmatmul.bf16.gmra.mxu0 %v1340
      %v1673 = vpop.f32.mrf.mxu0
      %v1674 = vadd.f32 %v1390, %v1673
      %v1675 = vpop.f32.mrf.mxu0
      %v1676 = vadd.f32 %v1390, %v1675
      %1677 = vmatmul.bf16.gmra.mxu0 %v1341
      %v1678 = vpop.f32.mrf.mxu0
      %v1679 = vadd.f32 %v1390, %v1678
      %v1680 = vpop.f32.mrf.mxu0
      %v1681 = vadd.f32 %v1390, %v1680
      %1682 = vmatmul.bf16.gmra.mxu0 %v1342
      %v1683 = vpop.f32.mrf.mxu0
      %v1684 = vadd.f32 %v1390, %v1683
      %v1685 = vpop.f32.mrf.mxu0
      %v1686 = vadd.f32 %v1390, %v1685
      %1687 = vmatmul.bf16.gmra.mxu0 %v1343
      %v1688 = vpop.f32.mrf.mxu0
      %v1689 = vadd.f32 %v1390, %v1688
      %v1690 = vpop.f32.mrf.mxu0
      %v1691 = vadd.f32 %v1390, %v1690
      %1692 = vmatmul.bf16.gmra.mxu0 %v1344
      %v1693 = vpop.f32.mrf.mxu0
      %v1694 = vadd.f32 %v1390, %v1693
      %v1695 = vpop.f32.mrf.mxu0
      %v1696 = vadd.f32 %v1390, %v1695
      %1697 = vmatmul.bf16.gmra.mxu0 %v1345
      %v1698 = vpop.f32.mrf.mxu0
      %v1699 = vadd.f32 %v1390, %v1698
      %v1700 = vpop.f32.mrf.mxu0
      %v1701 = vadd.f32 %v1390, %v1700
      %1702 = vmatmul.bf16.gmra.mxu0 %v1346
      %v1703 = vpop.f32.mrf.mxu0
      %v1704 = vadd.f32 %v1390, %v1703
      %v1705 = vpop.f32.mrf.mxu0
      %v1706 = vadd.f32 %v1390, %v1705
      %1707 = vmatmul.bf16.gmra.mxu0 %v1347
      %v1708 = vpop.f32.mrf.mxu0
      %v1709 = vadd.f32 %v1390, %v1708
      %v1710 = vpop.f32.mrf.mxu0
      %v1711 = vadd.f32 %v1390, %v1710
      %1712 = vmatmul.bf16.gmra.mxu0 %v1348
      %v1713 = vpop.f32.mrf.mxu0
      %v1714 = vadd.f32 %v1390, %v1713
      %v1715 = vpop.f32.mrf.mxu0
      %v1716 = vadd.f32 %v1390, %v1715
      %1717 = vdwg.mxu0
      %1718 = vmatpush.bf16.msra.mxu0 %v1495
      %1719 = vmatpush.bf16.msra.mxu0 %v1492
      %1720 = vmatpush.bf16.msra.mxu0 %v1489
      %1721 = vmatpush.bf16.msra.mxu0 %v1486
      %1722 = vmatpush.bf16.msra.mxu0 %v1483
      %1723 = vmatpush.bf16.msra.mxu0 %v1480
      %1724 = vmatpush.bf16.msra.mxu0 %v1477
      %1725 = vmatpush.bf16.msra.mxu0 %v1474
      %1726 = vmatmul.bf16.gmra.mxu0 %v1331
      %v1727 = vpop.f32.mrf.mxu0
      %v1728 = vadd.f32 %v1391, %v1727
      %v1729 = vpop.f32.mrf.mxu0
      %v1730 = vadd.f32 %v1391, %v1729
      %1731 = vmatmul.bf16.gmra.mxu0 %v1332
      %v1732 = vpop.f32.mrf.mxu0
      %v1733 = vadd.f32 %v1391, %v1732
      %v1734 = vpop.f32.mrf.mxu0
      %v1735 = vadd.f32 %v1391, %v1734
      %1736 = vmatmul.bf16.gmra.mxu0 %v1333
      %v1737 = vpop.f32.mrf.mxu0
      %v1738 = vadd.f32 %v1391, %v1737
      %v1739 = vpop.f32.mrf.mxu0
      %v1740 = vadd.f32 %v1391, %v1739
      %1741 = vmatmul.bf16.gmra.mxu0 %v1334
      %v1742 = vpop.f32.mrf.mxu0
      %v1743 = vadd.f32 %v1391, %v1742
      %v1744 = vpop.f32.mrf.mxu0
      %v1745 = vadd.f32 %v1391, %v1744
      %1746 = vmatmul.bf16.gmra.mxu0 %v1335
      %v1747 = vpop.f32.mrf.mxu0
      %v1748 = vadd.f32 %v1391, %v1747
      %v1749 = vpop.f32.mrf.mxu0
      %v1750 = vadd.f32 %v1391, %v1749
      %1751 = vmatmul.bf16.gmra.mxu0 %v1336
      %v1752 = vpop.f32.mrf.mxu0
      %v1753 = vadd.f32 %v1391, %v1752
      %v1754 = vpop.f32.mrf.mxu0
      %v1755 = vadd.f32 %v1391, %v1754
      %1756 = vmatmul.bf16.gmra.mxu0 %v1337
      %v1757 = vpop.f32.mrf.mxu0
      %v1758 = vadd.f32 %v1391, %v1757
      %v1759 = vpop.f32.mrf.mxu0
      %v1760 = vadd.f32 %v1391, %v1759
      %1761 = vmatmul.bf16.gmra.mxu0 %v1338
      %v1762 = vpop.f32.mrf.mxu0
      %v1763 = vadd.f32 %v1391, %v1762
      %v1764 = vpop.f32.mrf.mxu0
      %v1765 = vadd.f32 %v1391, %v1764
      %1766 = vmatmul.bf16.gmra.mxu0 %v1339
      %v1767 = vpop.f32.mrf.mxu0
      %v1768 = vadd.f32 %v1391, %v1767
      %v1769 = vpop.f32.mrf.mxu0
      %v1770 = vadd.f32 %v1391, %v1769
      %1771 = vmatmul.bf16.gmra.mxu0 %v1340
      %v1772 = vpop.f32.mrf.mxu0
      %v1773 = vadd.f32 %v1391, %v1772
      %v1774 = vpop.f32.mrf.mxu0
      %v1775 = vadd.f32 %v1391, %v1774
      %1776 = vmatmul.bf16.gmra.mxu0 %v1341
      %v1777 = vpop.f32.mrf.mxu0
      %v1778 = vadd.f32 %v1391, %v1777
      %v1779 = vpop.f32.mrf.mxu0
      %v1780 = vadd.f32 %v1391, %v1779
      %1781 = vmatmul.bf16.gmra.mxu0 %v1342
      %v1782 = vpop.f32.mrf.mxu0
      %v1783 = vadd.f32 %v1391, %v1782
      %v1784 = vpop.f32.mrf.mxu0
      %v1785 = vadd.f32 %v1391, %v1784
      %1786 = vmatmul.bf16.gmra.mxu0 %v1343
      %v1787 = vpop.f32.mrf.mxu0
      %v1788 = vadd.f32 %v1391, %v1787
      %v1789 = vpop.f32.mrf.mxu0
      %v1790 = vadd.f32 %v1391, %v1789
      %1791 = vmatmul.bf16.gmra.mxu0 %v1344
      %v1792 = vpop.f32.mrf.mxu0
      %v1793 = vadd.f32 %v1391, %v1792
      %v1794 = vpop.f32.mrf.mxu0
      %v1795 = vadd.f32 %v1391, %v1794
      %1796 = vmatmul.bf16.gmra.mxu0 %v1345
      %v1797 = vpop.f32.mrf.mxu0
      %v1798 = vadd.f32 %v1391, %v1797
      %v1799 = vpop.f32.mrf.mxu0
      %v1800 = vadd.f32 %v1391, %v1799
      %1801 = vmatmul.bf16.gmra.mxu0 %v1346
      %v1802 = vpop.f32.mrf.mxu0
      %v1803 = vadd.f32 %v1391, %v1802
      %v1804 = vpop.f32.mrf.mxu0
      %v1805 = vadd.f32 %v1391, %v1804
      %1806 = vmatmul.bf16.gmra.mxu0 %v1347
      %v1807 = vpop.f32.mrf.mxu0
      %v1808 = vadd.f32 %v1391, %v1807
      %v1809 = vpop.f32.mrf.mxu0
      %v1810 = vadd.f32 %v1391, %v1809
      %1811 = vmatmul.bf16.gmra.mxu0 %v1348
      %v1812 = vpop.f32.mrf.mxu0
      %v1813 = vadd.f32 %v1391, %v1812
      %v1814 = vpop.f32.mrf.mxu0
      %v1815 = vadd.f32 %v1391, %v1814
      %1816 = vdwg.mxu0
      %v1817 = vld [vmem:[%s360] sm:$0xff]
      %v1818 = vld [vmem:[%s360 + $0x8] sm:$0xff]
      %v1819 = vld [vmem:[%s360 + $0x10] sm:$0xff]
      %v1820 = vld [vmem:[%s360 + $0x18] sm:$0xff]
      %v1821 = vld [vmem:[%s360 + $0x20] sm:$0xff]
      %v1822 = vld [vmem:[%s360 + $0x28] sm:$0xff]
      %v1823 = vld [vmem:[%s360 + $0x30] sm:$0xff]
      %v1824 = vld [vmem:[%s360 + $0x38] sm:$0xff]
      %v1825 = vld [vmem:[%s360 + $0x40] sm:$0xff]
      %v1826 = vld [vmem:[%s360 + $0x48] sm:$0xff]
      %v1827 = vld [vmem:[%s360 + $0x50] sm:$0xff]
      %v1828 = vld [vmem:[%s360 + $0x58] sm:$0xff]
      %v1829 = vld [vmem:[%s360 + $0x60] sm:$0xff]
      %v1830 = vld [vmem:[%s360 + $0x68] sm:$0xff]
      %v1831 = vld [vmem:[%s360 + $0x70] sm:$0xff]
      %v1832 = vld [vmem:[%s360 + $0x78] sm:$0xff]
      %v1833 = vld [vmem:[%s360 + $0x80] sm:$0xff]
      %v1834 = vld [vmem:[%s360 + $0x88] sm:$0xff]
      %v1835 = vld [vmem:[%s360 + $0x90] sm:$0xff]
      %v1836 = vld [vmem:[%s360 + $0x98] sm:$0xff]
      %v1837 = vld [vmem:[%s360 + $0xa0] sm:$0xff]
      %v1838 = vld [vmem:[%s360 + $0xa8] sm:$0xff]
      %v1839 = vld [vmem:[%s360 + $0xb0] sm:$0xff]
      %v1840 = vld [vmem:[%s360 + $0xb8] sm:$0xff]
      %v1841 = vld [vmem:[%s360 + $0xc0] sm:$0xff]
      %v1842 = vld [vmem:[%s360 + $0xc8] sm:$0xff]
      %v1843 = vld [vmem:[%s360 + $0xd0] sm:$0xff]
      %v1844 = vld [vmem:[%s360 + $0xd8] sm:$0xff]
      %v1845 = vld [vmem:[%s360 + $0xe0] sm:$0xff]
      %v1846 = vld [vmem:[%s360 + $0xe8] sm:$0xff]
      %v1847 = vld [vmem:[%s360 + $0xf0] sm:$0xff]
      %v1848 = vld [vmem:[%s360 + $0xf8] sm:$0xff]
      %v1849 = vld [vmem:[%s360 + $0x100] sm:$0xff]
      %v1850 = vld [vmem:[%s360 + $0x108] sm:$0xff]
      %v1851 = vld [vmem:[%s360 + $0x110] sm:$0xff]
      %v1852 = vld [vmem:[%s360 + $0x118] sm:$0xff]
      %1854 = vset.pattern.permute.xlu0 0
      %1855 = vperm.xlu0 %1854, %v1817
      %v1856 = vpop.permute.xlu0 %1855
      %1859 = vset.pattern.permute.xlu0 0
      %1860 = vperm.xlu0 %1859, %v1818
      %v1861 = vpop.permute.xlu0 %1860
      %1864 = vset.pattern.permute.xlu0 0
      %1865 = vperm.xlu0 %1864, %v1819
      %v1866 = vpop.permute.xlu0 %1865
      %1869 = vset.pattern.permute.xlu0 0
      %1870 = vperm.xlu0 %1869, %v1820
      %v1871 = vpop.permute.xlu0 %1870
      %1874 = vset.pattern.permute.xlu0 0
      %1875 = vperm.xlu0 %1874, %v1821
      %v1876 = vpop.permute.xlu0 %1875
      %1879 = vset.pattern.permute.xlu0 0
      %1880 = vperm.xlu0 %1879, %v1822
      %v1881 = vpop.permute.xlu0 %1880
      %1884 = vset.pattern.permute.xlu0 0
      %1885 = vperm.xlu0 %1884, %v1823
      %v1886 = vpop.permute.xlu0 %1885
      %1889 = vset.pattern.permute.xlu0 0
      %1890 = vperm.xlu0 %1889, %v1824
      %v1891 = vpop.permute.xlu0 %1890
      %1894 = vset.pattern.permute.xlu0 0
      %1895 = vperm.xlu0 %1894, %v1825
      %v1896 = vpop.permute.xlu0 %1895
      %1899 = vset.pattern.permute.xlu0 0
      %1900 = vperm.xlu0 %1899, %v1826
      %v1901 = vpop.permute.xlu0 %1900
      %1904 = vset.pattern.permute.xlu0 0
      %1905 = vperm.xlu0 %1904, %v1827
      %v1906 = vpop.permute.xlu0 %1905
      %1909 = vset.pattern.permute.xlu0 0
      %1910 = vperm.xlu0 %1909, %v1828
      %v1911 = vpop.permute.xlu0 %1910
      %1914 = vset.pattern.permute.xlu0 0
      %1915 = vperm.xlu0 %1914, %v1829
      %v1916 = vpop.permute.xlu0 %1915
      %1919 = vset.pattern.permute.xlu0 0
      %1920 = vperm.xlu0 %1919, %v1830
      %v1921 = vpop.permute.xlu0 %1920
      %1924 = vset.pattern.permute.xlu0 0
      %1925 = vperm.xlu0 %1924, %v1831
      %v1926 = vpop.permute.xlu0 %1925
      %1929 = vset.pattern.permute.xlu0 0
      %1930 = vperm.xlu0 %1929, %v1832
      %v1931 = vpop.permute.xlu0 %1930
      %1934 = vset.pattern.permute.xlu0 0
      %1935 = vperm.xlu0 %1934, %v1833
      %v1936 = vpop.permute.xlu0 %1935
      %1939 = vset.pattern.permute.xlu0 0
      %1940 = vperm.xlu0 %1939, %v1834
      %v1941 = vpop.permute.xlu0 %1940
      %1944 = vset.pattern.permute.xlu0 0
      %1945 = vperm.xlu0 %1944, %v1835
      %v1946 = vpop.permute.xlu0 %1945
      %1949 = vset.pattern.permute.xlu0 0
      %1950 = vperm.xlu0 %1949, %v1836
      %v1951 = vpop.permute.xlu0 %1950
      %1954 = vset.pattern.permute.xlu0 0
      %1955 = vperm.xlu0 %1954, %v1837
      %v1956 = vpop.permute.xlu0 %1955
      %1959 = vset.pattern.permute.xlu0 0
      %1960 = vperm.xlu0 %1959, %v1838
      %v1961 = vpop.permute.xlu0 %1960
      %1964 = vset.pattern.permute.xlu0 0
      %1965 = vperm.xlu0 %1964, %v1839
      %v1966 = vpop.permute.xlu0 %1965
      %1969 = vset.pattern.permute.xlu0 0
      %1970 = vperm.xlu0 %1969, %v1840
      %v1971 = vpop.permute.xlu0 %1970
      %1974 = vset.pattern.permute.xlu0 0
      %1975 = vperm.xlu0 %1974, %v1841
      %v1976 = vpop.permute.xlu0 %1975
      %1979 = vset.pattern.permute.xlu0 0
      %1980 = vperm.xlu0 %1979, %v1842
      %v1981 = vpop.permute.xlu0 %1980
      %1984 = vset.pattern.permute.xlu0 0
      %1985 = vperm.xlu0 %1984, %v1843
      %v1986 = vpop.permute.xlu0 %1985
      %1989 = vset.pattern.permute.xlu0 0
      %1990 = vperm.xlu0 %1989, %v1844
      %v1991 = vpop.permute.xlu0 %1990
      %1994 = vset.pattern.permute.xlu0 0
      %1995 = vperm.xlu0 %1994, %v1845
      %v1996 = vpop.permute.xlu0 %1995
      %1999 = vset.pattern.permute.xlu0 0
      %2000 = vperm.xlu0 %1999, %v1846
      %v2001 = vpop.permute.xlu0 %2000
      %2004 = vset.pattern.permute.xlu0 0
      %2005 = vperm.xlu0 %2004, %v1847
      %v2006 = vpop.permute.xlu0 %2005
      %2009 = vset.pattern.permute.xlu0 0
      %2010 = vperm.xlu0 %2009, %v1848
      %v2011 = vpop.permute.xlu0 %2010
      %2014 = vset.pattern.permute.xlu0 0
      %2015 = vperm.xlu0 %2014, %v1849
      %v2016 = vpop.permute.xlu0 %2015
      %2019 = vset.pattern.permute.xlu0 0
      %2020 = vperm.xlu0 %2019, %v1850
      %v2021 = vpop.permute.xlu0 %2020
      %2024 = vset.pattern.permute.xlu0 0
      %2025 = vperm.xlu0 %2024, %v1851
      %v2026 = vpop.permute.xlu0 %2025
      %2029 = vset.pattern.permute.xlu0 0
      %2030 = vperm.xlu0 %2029, %v1852
      %v2031 = vpop.permute.xlu0 %2030
      %v2033 = vperm.slane %v384, 2
      %v2034 = vperm.slane %v384, 6
      %v2035 = vperm.slane %v385, 2
      %v2039 = vperm.slane %v2033, 2
      %v2040 = vperm.slane %v2034, 2
      %v2041 = vperm.slane %v2035, 2
      %v2042 = vmul.f32 %v1856, %v2039
      %v2043 = vmul.f32 %v1856, %v2040
      %v2044 = vmul.f32 %v1856, %v2041
      %v2045 = vmul.f32 %v1861, %v2039
      %v2046 = vmul.f32 %v1861, %v2040
      %v2047 = vmul.f32 %v1861, %v2041
      %v2048 = vmul.f32 %v1866, %v2039
      %v2049 = vmul.f32 %v1866, %v2040
      %v2050 = vmul.f32 %v1866, %v2041
      %v2051 = vmul.f32 %v1871, %v2039
      %v2052 = vmul.f32 %v1871, %v2040
      %v2053 = vmul.f32 %v1871, %v2041
      %v2054 = vmul.f32 %v1876, %v2039
      %v2055 = vmul.f32 %v1876, %v2040
      %v2056 = vmul.f32 %v1876, %v2041
      %v2057 = vmul.f32 %v1881, %v2039
      %v2058 = vmul.f32 %v1881, %v2040
      %v2059 = vmul.f32 %v1881, %v2041
      %v2060 = vmul.f32 %v1886, %v2039
      %v2061 = vmul.f32 %v1886, %v2040
      %v2062 = vmul.f32 %v1886, %v2041
      %v2063 = vmul.f32 %v1891, %v2039
      %v2064 = vmul.f32 %v1891, %v2040
      %v2065 = vmul.f32 %v1891, %v2041
      %v2066 = vmul.f32 %v1896, %v2039
      %v2067 = vmul.f32 %v1896, %v2040
      %v2068 = vmul.f32 %v1896, %v2041
      %v2069 = vmul.f32 %v1901, %v2039
      %v2070 = vmul.f32 %v1901, %v2040
      %v2071 = vmul.f32 %v1901, %v2041
      %v2072 = vmul.f32 %v1906, %v2039
      %v2073 = vmul.f32 %v1906, %v2040
      %v2074 = vmul.f32 %v1906, %v2041
      %v2075 = vmul.f32 %v1911, %v2039
      %v2076 = vmul.f32 %v1911, %v2040
      %v2077 = vmul.f32 %v1911, %v2041
      %v2078 = vmul.f32 %v1916, %v2039
      %v2079 = vmul.f32 %v1916, %v2040
      %v2080 = vmul.f32 %v1916, %v2041
      %v2081 = vmul.f32 %v1921, %v2039
      %v2082 = vmul.f32 %v1921, %v2040
      %v2083 = vmul.f32 %v1921, %v2041
      %v2084 = vmul.f32 %v1926, %v2039
      %v2085 = vmul.f32 %v1926, %v2040
      %v2086 = vmul.f32 %v1926, %v2041
      %v2087 = vmul.f32 %v1931, %v2039
      %v2088 = vmul.f32 %v1931, %v2040
      %v2089 = vmul.f32 %v1931, %v2041
      %v2090 = vmul.f32 %v1936, %v2039
      %v2091 = vmul.f32 %v1936, %v2040
      %v2092 = vmul.f32 %v1936, %v2041
      %v2093 = vmul.f32 %v1941, %v2039
      %v2094 = vmul.f32 %v1941, %v2040
      %v2095 = vmul.f32 %v1941, %v2041
      %v2096 = vmul.f32 %v1946, %v2039
      %v2097 = vmul.f32 %v1946, %v2040
      %v2098 = vmul.f32 %v1946, %v2041
      %v2099 = vmul.f32 %v1951, %v2039
      %v2100 = vmul.f32 %v1951, %v2040
      %v2101 = vmul.f32 %v1951, %v2041
      %v2102 = vmul.f32 %v1956, %v2039
      %v2103 = vmul.f32 %v1956, %v2040
      %v2104 = vmul.f32 %v1956, %v2041
      %v2105 = vmul.f32 %v1961, %v2039
      %v2106 = vmul.f32 %v1961, %v2040
      %v2107 = vmul.f32 %v1961, %v2041
      %v2108 = vmul.f32 %v1966, %v2039
      %v2109 = vmul.f32 %v1966, %v2040
      %v2110 = vmul.f32 %v1966, %v2041
      %v2111 = vmul.f32 %v1971, %v2039
      %v2112 = vmul.f32 %v1971, %v2040
      %v2113 = vmul.f32 %v1971, %v2041
      %v2114 = vmul.f32 %v1976, %v2039
      %v2115 = vmul.f32 %v1976, %v2040
      %v2116 = vmul.f32 %v1976, %v2041
      %v2117 = vmul.f32 %v1981, %v2039
      %v2118 = vmul.f32 %v1981, %v2040
      %v2119 = vmul.f32 %v1981, %v2041
      %v2120 = vmul.f32 %v1986, %v2039
      %v2121 = vmul.f32 %v1986, %v2040
      %v2122 = vmul.f32 %v1986, %v2041
      %v2123 = vmul.f32 %v1991, %v2039
      %v2124 = vmul.f32 %v1991, %v2040
      %v2125 = vmul.f32 %v1991, %v2041
      %v2126 = vmul.f32 %v1996, %v2039
      %v2127 = vmul.f32 %v1996, %v2040
      %v2128 = vmul.f32 %v1996, %v2041
      %v2129 = vmul.f32 %v2001, %v2039
      %v2130 = vmul.f32 %v2001, %v2040
      %v2131 = vmul.f32 %v2001, %v2041
      %v2132 = vmul.f32 %v2006, %v2039
      %v2133 = vmul.f32 %v2006, %v2040
      %v2134 = vmul.f32 %v2006, %v2041
      %v2135 = vmul.f32 %v2011, %v2039
      %v2136 = vmul.f32 %v2011, %v2040
      %v2137 = vmul.f32 %v2011, %v2041
      %v2138 = vmul.f32 %v2016, %v2039
      %v2139 = vmul.f32 %v2016, %v2040
      %v2140 = vmul.f32 %v2016, %v2041
      %v2141 = vmul.f32 %v2021, %v2039
      %v2142 = vmul.f32 %v2021, %v2040
      %v2143 = vmul.f32 %v2021, %v2041
      %v2144 = vmul.f32 %v2026, %v2039
      %v2145 = vmul.f32 %v2026, %v2040
      %v2146 = vmul.f32 %v2026, %v2041
      %v2147 = vmul.f32 %v2031, %v2039
      %v2148 = vmul.f32 %v2031, %v2040
      %v2149 = vmul.f32 %v2031, %v2041
      %v2150 = vperm.slane %v384, 3
      %v2151 = vperm.slane %v384, 7
      %v2152 = vperm.slane %v385, 3
      %v2156 = vperm.slane %v2150, 3
      %v2157 = vperm.slane %v2151, 3
      %v2158 = vperm.slane %v2152, 3
      %v2159 = vadd.f32 %v2042, %v2156
      %v2160 = vadd.f32 %v2043, %v2157
      %v2161 = vadd.f32 %v2044, %v2158
      %v2162 = vadd.f32 %v2045, %v2156
      %v2163 = vadd.f32 %v2046, %v2157
      %v2164 = vadd.f32 %v2047, %v2158
      %v2165 = vadd.f32 %v2048, %v2156
      %v2166 = vadd.f32 %v2049, %v2157
      %v2167 = vadd.f32 %v2050, %v2158
      %v2168 = vadd.f32 %v2051, %v2156
      %v2169 = vadd.f32 %v2052, %v2157
      %v2170 = vadd.f32 %v2053, %v2158
      %v2171 = vadd.f32 %v2054, %v2156
      %v2172 = vadd.f32 %v2055, %v2157
      %v2173 = vadd.f32 %v2056, %v2158
      %v2174 = vadd.f32 %v2057, %v2156
      %v2175 = vadd.f32 %v2058, %v2157
      %v2176 = vadd.f32 %v2059, %v2158
      %v2177 = vadd.f32 %v2060, %v2156
      %v2178 = vadd.f32 %v2061, %v2157
      %v2179 = vadd.f32 %v2062, %v2158
      %v2180 = vadd.f32 %v2063, %v2156
      %v2181 = vadd.f32 %v2064, %v2157
      %v2182 = vadd.f32 %v2065, %v2158
      %v2183 = vadd.f32 %v2066, %v2156
      %v2184 = vadd.f32 %v2067, %v2157
      %v2185 = vadd.f32 %v2068, %v2158
      %v2186 = vadd.f32 %v2069, %v2156
      %v2187 = vadd.f32 %v2070, %v2157
      %v2188 = vadd.f32 %v2071, %v2158
      %v2189 = vadd.f32 %v2072, %v2156
      %v2190 = vadd.f32 %v2073, %v2157
      %v2191 = vadd.f32 %v2074, %v2158
      %v2192 = vadd.f32 %v2075, %v2156
      %v2193 = vadd.f32 %v2076, %v2157
      %v2194 = vadd.f32 %v2077, %v2158
      %v2195 = vadd.f32 %v2078, %v2156
      %v2196 = vadd.f32 %v2079, %v2157
      %v2197 = vadd.f32 %v2080, %v2158
      %v2198 = vadd.f32 %v2081, %v2156
      %v2199 = vadd.f32 %v2082, %v2157
      %v2200 = vadd.f32 %v2083, %v2158
      %v2201 = vadd.f32 %v2084, %v2156
      %v2202 = vadd.f32 %v2085, %v2157
      %v2203 = vadd.f32 %v2086, %v2158
      %v2204 = vadd.f32 %v2087, %v2156
      %v2205 = vadd.f32 %v2088, %v2157
      %v2206 = vadd.f32 %v2089, %v2158
      %v2207 = vadd.f32 %v2090, %v2156
      %v2208 = vadd.f32 %v2091, %v2157
      %v2209 = vadd.f32 %v2092, %v2158
      %v2210 = vadd.f32 %v2093, %v2156
      %v2211 = vadd.f32 %v2094, %v2157
      %v2212 = vadd.f32 %v2095, %v2158
      %v2213 = vadd.f32 %v2096, %v2156
      %v2214 = vadd.f32 %v2097, %v2157
      %v2215 = vadd.f32 %v2098, %v2158
      %v2216 = vadd.f32 %v2099, %v2156
      %v2217 = vadd.f32 %v2100, %v2157
      %v2218 = vadd.f32 %v2101, %v2158
      %v2219 = vadd.f32 %v2102, %v2156
      %v2220 = vadd.f32 %v2103, %v2157
      %v2221 = vadd.f32 %v2104, %v2158
      %v2222 = vadd.f32 %v2105, %v2156
      %v2223 = vadd.f32 %v2106, %v2157
      %v2224 = vadd.f32 %v2107, %v2158
      %v2225 = vadd.f32 %v2108, %v2156
      %v2226 = vadd.f32 %v2109, %v2157
      %v2227 = vadd.f32 %v2110, %v2158
      %v2228 = vadd.f32 %v2111, %v2156
      %v2229 = vadd.f32 %v2112, %v2157
      %v2230 = vadd.f32 %v2113, %v2158
      %v2231 = vadd.f32 %v2114, %v2156
      %v2232 = vadd.f32 %v2115, %v2157
      %v2233 = vadd.f32 %v2116, %v2158
      %v2234 = vadd.f32 %v2117, %v2156
      %v2235 = vadd.f32 %v2118, %v2157
      %v2236 = vadd.f32 %v2119, %v2158
      %v2237 = vadd.f32 %v2120, %v2156
      %v2238 = vadd.f32 %v2121, %v2157
      %v2239 = vadd.f32 %v2122, %v2158
      %v2240 = vadd.f32 %v2123, %v2156
      %v2241 = vadd.f32 %v2124, %v2157
      %v2242 = vadd.f32 %v2125, %v2158
      %v2243 = vadd.f32 %v2126, %v2156
      %v2244 = vadd.f32 %v2127, %v2157
      %v2245 = vadd.f32 %v2128, %v2158
      %v2246 = vadd.f32 %v2129, %v2156
      %v2247 = vadd.f32 %v2130, %v2157
      %v2248 = vadd.f32 %v2131, %v2158
      %v2249 = vadd.f32 %v2132, %v2156
      %v2250 = vadd.f32 %v2133, %v2157
      %v2251 = vadd.f32 %v2134, %v2158
      %v2252 = vadd.f32 %v2135, %v2156
      %v2253 = vadd.f32 %v2136, %v2157
      %v2254 = vadd.f32 %v2137, %v2158
      %v2255 = vadd.f32 %v2138, %v2156
      %v2256 = vadd.f32 %v2139, %v2157
      %v2257 = vadd.f32 %v2140, %v2158
      %v2258 = vadd.f32 %v2141, %v2156
      %v2259 = vadd.f32 %v2142, %v2157
      %v2260 = vadd.f32 %v2143, %v2158
      %v2261 = vadd.f32 %v2144, %v2156
      %v2262 = vadd.f32 %v2145, %v2157
      %v2263 = vadd.f32 %v2146, %v2158
      %v2264 = vadd.f32 %v2147, %v2156
      %v2265 = vadd.f32 %v2148, %v2157
      %v2266 = vadd.f32 %v2149, %v2158
      %2267 = vset.pattern.permute.xlu0 1
      %2268 = vperm.xlu0 %2267, %v1817
      %v2269 = vpop.permute.xlu0 %2268
      %2271 = vset.pattern.permute.xlu0 1
      %2272 = vperm.xlu0 %2271, %v1818
      %v2273 = vpop.permute.xlu0 %2272
      %2275 = vset.pattern.permute.xlu0 1
      %2276 = vperm.xlu0 %2275, %v1819
      %v2277 = vpop.permute.xlu0 %2276
      %2279 = vset.pattern.permute.xlu0 1
      %2280 = vperm.xlu0 %2279, %v1820
      %v2281 = vpop.permute.xlu0 %2280
      %2283 = vset.pattern.permute.xlu0 1
      %2284 = vperm.xlu0 %2283, %v1821
      %v2285 = vpop.permute.xlu0 %2284
      %2287 = vset.pattern.permute.xlu0 1
      %2288 = vperm.xlu0 %2287, %v1822
      %v2289 = vpop.permute.xlu0 %2288
      %2291 = vset.pattern.permute.xlu0 1
      %2292 = vperm.xlu0 %2291, %v1823
      %v2293 = vpop.permute.xlu0 %2292
      %2295 = vset.pattern.permute.xlu0 1
      %2296 = vperm.xlu0 %2295, %v1824
      %v2297 = vpop.permute.xlu0 %2296
      %2299 = vset.pattern.permute.xlu0 1
      %2300 = vperm.xlu0 %2299, %v1825
      %v2301 = vpop.permute.xlu0 %2300
      %2303 = vset.pattern.permute.xlu0 1
      %2304 = vperm.xlu0 %2303, %v1826
      %v2305 = vpop.permute.xlu0 %2304
      %2307 = vset.pattern.permute.xlu0 1
      %2308 = vperm.xlu0 %2307, %v1827
      %v2309 = vpop.permute.xlu0 %2308
      %2311 = vset.pattern.permute.xlu0 1
      %2312 = vperm.xlu0 %2311, %v1828
      %v2313 = vpop.permute.xlu0 %2312
      %2315 = vset.pattern.permute.xlu0 1
      %2316 = vperm.xlu0 %2315, %v1829
      %v2317 = vpop.permute.xlu0 %2316
      %2319 = vset.pattern.permute.xlu0 1
      %2320 = vperm.xlu0 %2319, %v1830
      %v2321 = vpop.permute.xlu0 %2320
      %2323 = vset.pattern.permute.xlu0 1
      %2324 = vperm.xlu0 %2323, %v1831
      %v2325 = vpop.permute.xlu0 %2324
      %2327 = vset.pattern.permute.xlu0 1
      %2328 = vperm.xlu0 %2327, %v1832
      %v2329 = vpop.permute.xlu0 %2328
      %2331 = vset.pattern.permute.xlu0 1
      %2332 = vperm.xlu0 %2331, %v1833
      %v2333 = vpop.permute.xlu0 %2332
      %2335 = vset.pattern.permute.xlu0 1
      %2336 = vperm.xlu0 %2335, %v1834
      %v2337 = vpop.permute.xlu0 %2336
      %2339 = vset.pattern.permute.xlu0 1
      %2340 = vperm.xlu0 %2339, %v1835
      %v2341 = vpop.permute.xlu0 %2340
      %2343 = vset.pattern.permute.xlu0 1
      %2344 = vperm.xlu0 %2343, %v1836
      %v2345 = vpop.permute.xlu0 %2344
      %2347 = vset.pattern.permute.xlu0 1
      %2348 = vperm.xlu0 %2347, %v1837
      %v2349 = vpop.permute.xlu0 %2348
      %2351 = vset.pattern.permute.xlu0 1
      %2352 = vperm.xlu0 %2351, %v1838
      %v2353 = vpop.permute.xlu0 %2352
      %2355 = vset.pattern.permute.xlu0 1
      %2356 = vperm.xlu0 %2355, %v1839
      %v2357 = vpop.permute.xlu0 %2356
      %2359 = vset.pattern.permute.xlu0 1
      %2360 = vperm.xlu0 %2359, %v1840
      %v2361 = vpop.permute.xlu0 %2360
      %2363 = vset.pattern.permute.xlu0 1
      %2364 = vperm.xlu0 %2363, %v1841
      %v2365 = vpop.permute.xlu0 %2364
      %2367 = vset.pattern.permute.xlu0 1
      %2368 = vperm.xlu0 %2367, %v1842
      %v2369 = vpop.permute.xlu0 %2368
      %2371 = vset.pattern.permute.xlu0 1
      %2372 = vperm.xlu0 %2371, %v1843
      %v2373 = vpop.permute.xlu0 %2372
      %2375 = vset.pattern.permute.xlu0 1
      %2376 = vperm.xlu0 %2375, %v1844
      %v2377 = vpop.permute.xlu0 %2376
      %2379 = vset.pattern.permute.xlu0 1
      %2380 = vperm.xlu0 %2379, %v1845
      %v2381 = vpop.permute.xlu0 %2380
      %2383 = vset.pattern.permute.xlu0 1
      %2384 = vperm.xlu0 %2383, %v1846
      %v2385 = vpop.permute.xlu0 %2384
      %2387 = vset.pattern.permute.xlu0 1
      %2388 = vperm.xlu0 %2387, %v1847
      %v2389 = vpop.permute.xlu0 %2388
      %2391 = vset.pattern.permute.xlu0 1
      %2392 = vperm.xlu0 %2391, %v1848
      %v2393 = vpop.permute.xlu0 %2392
      %2395 = vset.pattern.permute.xlu0 1
      %2396 = vperm.xlu0 %2395, %v1849
      %v2397 = vpop.permute.xlu0 %2396
      %2399 = vset.pattern.permute.xlu0 1
      %2400 = vperm.xlu0 %2399, %v1850
      %v2401 = vpop.permute.xlu0 %2400
      %2403 = vset.pattern.permute.xlu0 1
      %2404 = vperm.xlu0 %2403, %v1851
      %v2405 = vpop.permute.xlu0 %2404
      %2407 = vset.pattern.permute.xlu0 1
      %2408 = vperm.xlu0 %2407, %v1852
      %v2409 = vpop.permute.xlu0 %2408
      %v2411 = vmul.f32 %v2159, %v2269
      %v2412 = vmul.f32 %v2160, %v2269
      %v2413 = vmul.f32 %v2161, %v2269
      %v2414 = vmul.f32 %v2162, %v2273
      %v2415 = vmul.f32 %v2163, %v2273
      %v2416 = vmul.f32 %v2164, %v2273
      %v2417 = vmul.f32 %v2165, %v2277
      %v2418 = vmul.f32 %v2166, %v2277
      %v2419 = vmul.f32 %v2167, %v2277
      %v2420 = vmul.f32 %v2168, %v2281
      %v2421 = vmul.f32 %v2169, %v2281
      %v2422 = vmul.f32 %v2170, %v2281
      %v2423 = vmul.f32 %v2171, %v2285
      %v2424 = vmul.f32 %v2172, %v2285
      %v2425 = vmul.f32 %v2173, %v2285
      %v2426 = vmul.f32 %v2174, %v2289
      %v2427 = vmul.f32 %v2175, %v2289
      %v2428 = vmul.f32 %v2176, %v2289
      %v2429 = vmul.f32 %v2177, %v2293
      %v2430 = vmul.f32 %v2178, %v2293
      %v2431 = vmul.f32 %v2179, %v2293
      %v2432 = vmul.f32 %v2180, %v2297
      %v2433 = vmul.f32 %v2181, %v2297
      %v2434 = vmul.f32 %v2182, %v2297
      %v2435 = vmul.f32 %v2183, %v2301
      %v2436 = vmul.f32 %v2184, %v2301
      %v2437 = vmul.f32 %v2185, %v2301
      %v2438 = vmul.f32 %v2186, %v2305
      %v2439 = vmul.f32 %v2187, %v2305
      %v2440 = vmul.f32 %v2188, %v2305
      %v2441 = vmul.f32 %v2189, %v2309
      %v2442 = vmul.f32 %v2190, %v2309
      %v2443 = vmul.f32 %v2191, %v2309
      %v2444 = vmul.f32 %v2192, %v2313
      %v2445 = vmul.f32 %v2193, %v2313
      %v2446 = vmul.f32 %v2194, %v2313
      %v2447 = vmul.f32 %v2195, %v2317
      %v2448 = vmul.f32 %v2196, %v2317
      %v2449 = vmul.f32 %v2197, %v2317
      %v2450 = vmul.f32 %v2198, %v2321
      %v2451 = vmul.f32 %v2199, %v2321
      %v2452 = vmul.f32 %v2200, %v2321
      %v2453 = vmul.f32 %v2201, %v2325
      %v2454 = vmul.f32 %v2202, %v2325
      %v2455 = vmul.f32 %v2203, %v2325
      %v2456 = vmul.f32 %v2204, %v2329
      %v2457 = vmul.f32 %v2205, %v2329
      %v2458 = vmul.f32 %v2206, %v2329
      %v2459 = vmul.f32 %v2207, %v2333
      %v2460 = vmul.f32 %v2208, %v2333
      %v2461 = vmul.f32 %v2209, %v2333
      %v2462 = vmul.f32 %v2210, %v2337
      %v2463 = vmul.f32 %v2211, %v2337
      %v2464 = vmul.f32 %v2212, %v2337
      %v2465 = vmul.f32 %v2213, %v2341
      %v2466 = vmul.f32 %v2214, %v2341
      %v2467 = vmul.f32 %v2215, %v2341
      %v2468 = vmul.f32 %v2216, %v2345
      %v2469 = vmul.f32 %v2217, %v2345
      %v2470 = vmul.f32 %v2218, %v2345
      %v2471 = vmul.f32 %v2219, %v2349
      %v2472 = vmul.f32 %v2220, %v2349
      %v2473 = vmul.f32 %v2221, %v2349
      %v2474 = vmul.f32 %v2222, %v2353
      %v2475 = vmul.f32 %v2223, %v2353
      %v2476 = vmul.f32 %v2224, %v2353
      %v2477 = vmul.f32 %v2225, %v2357
      %v2478 = vmul.f32 %v2226, %v2357
      %v2479 = vmul.f32 %v2227, %v2357
      %v2480 = vmul.f32 %v2228, %v2361
      %v2481 = vmul.f32 %v2229, %v2361
      %v2482 = vmul.f32 %v2230, %v2361
      %v2483 = vmul.f32 %v2231, %v2365
      %v2484 = vmul.f32 %v2232, %v2365
      %v2485 = vmul.f32 %v2233, %v2365
      %v2486 = vmul.f32 %v2234, %v2369
      %v2487 = vmul.f32 %v2235, %v2369
      %v2488 = vmul.f32 %v2236, %v2369
      %v2489 = vmul.f32 %v2237, %v2373
      %v2490 = vmul.f32 %v2238, %v2373
      %v2491 = vmul.f32 %v2239, %v2373
      %v2492 = vmul.f32 %v2240, %v2377
      %v2493 = vmul.f32 %v2241, %v2377
      %v2494 = vmul.f32 %v2242, %v2377
      %v2495 = vmul.f32 %v2243, %v2381
      %v2496 = vmul.f32 %v2244, %v2381
      %v2497 = vmul.f32 %v2245, %v2381
      %v2498 = vmul.f32 %v2246, %v2385
      %v2499 = vmul.f32 %v2247, %v2385
      %v2500 = vmul.f32 %v2248, %v2385
      %v2501 = vmul.f32 %v2249, %v2389
      %v2502 = vmul.f32 %v2250, %v2389
      %v2503 = vmul.f32 %v2251, %v2389
      %v2504 = vmul.f32 %v2252, %v2393
      %v2505 = vmul.f32 %v2253, %v2393
      %v2506 = vmul.f32 %v2254, %v2393
      %v2507 = vmul.f32 %v2255, %v2397
      %v2508 = vmul.f32 %v2256, %v2397
      %v2509 = vmul.f32 %v2257, %v2397
      %v2510 = vmul.f32 %v2258, %v2401
      %v2511 = vmul.f32 %v2259, %v2401
      %v2512 = vmul.f32 %v2260, %v2401
      %v2513 = vmul.f32 %v2261, %v2405
      %v2514 = vmul.f32 %v2262, %v2405
      %v2515 = vmul.f32 %v2263, %v2405
      %v2516 = vmul.f32 %v2264, %v2409
      %v2517 = vmul.f32 %v2265, %v2409
      %v2518 = vmul.f32 %v2266, %v2409
      %v2519 = vmul.f32 %v1530, %v2411
      %v2520 = vmul.f32 %v1629, %v2412
      %v2521 = vmul.f32 %v1728, %v2413
      %v2522 = vmul.f32 %v1532, %v2414
      %v2523 = vmul.f32 %v1631, %v2415
      %v2524 = vmul.f32 %v1730, %v2416
      %v2525 = vmul.f32 %v1535, %v2417
      %v2526 = vmul.f32 %v1634, %v2418
      %v2527 = vmul.f32 %v1733, %v2419
      %v2528 = vmul.f32 %v1537, %v2420
      %v2529 = vmul.f32 %v1636, %v2421
      %v2530 = vmul.f32 %v1735, %v2422
      %v2531 = vmul.f32 %v1540, %v2423
      %v2532 = vmul.f32 %v1639, %v2424
      %v2533 = vmul.f32 %v1738, %v2425
      %v2534 = vmul.f32 %v1542, %v2426
      %v2535 = vmul.f32 %v1641, %v2427
      %v2536 = vmul.f32 %v1740, %v2428
      %v2537 = vmul.f32 %v1545, %v2429
      %v2538 = vmul.f32 %v1644, %v2430
      %v2539 = vmul.f32 %v1743, %v2431
      %v2540 = vmul.f32 %v1547, %v2432
      %v2541 = vmul.f32 %v1646, %v2433
      %v2542 = vmul.f32 %v1745, %v2434
      %v2543 = vmul.f32 %v1550, %v2435
      %v2544 = vmul.f32 %v1649, %v2436
      %v2545 = vmul.f32 %v1748, %v2437
      %v2546 = vmul.f32 %v1552, %v2438
      %v2547 = vmul.f32 %v1651, %v2439
      %v2548 = vmul.f32 %v1750, %v2440
      %v2549 = vmul.f32 %v1555, %v2441
      %v2550 = vmul.f32 %v1654, %v2442
      %v2551 = vmul.f32 %v1753, %v2443
      %v2552 = vmul.f32 %v1557, %v2444
      %v2553 = vmul.f32 %v1656, %v2445
      %v2554 = vmul.f32 %v1755, %v2446
      %v2555 = vmul.f32 %v1560, %v2447
      %v2556 = vmul.f32 %v1659, %v2448
      %v2557 = vmul.f32 %v1758, %v2449
      %v2558 = vmul.f32 %v1562, %v2450
      %v2559 = vmul.f32 %v1661, %v2451
      %v2560 = vmul.f32 %v1760, %v2452
      %v2561 = vmul.f32 %v1565, %v2453
      %v2562 = vmul.f32 %v1664, %v2454
      %v2563 = vmul.f32 %v1763, %v2455
      %v2564 = vmul.f32 %v1567, %v2456
      %v2565 = vmul.f32 %v1666, %v2457
      %v2566 = vmul.f32 %v1765, %v2458
      %v2567 = vmul.f32 %v1570, %v2459
      %v2568 = vmul.f32 %v1669, %v2460
      %v2569 = vmul.f32 %v1768, %v2461
      %v2570 = vmul.f32 %v1572, %v2462
      %v2571 = vmul.f32 %v1671, %v2463
      %v2572 = vmul.f32 %v1770, %v2464
      %v2573 = vmul.f32 %v1575, %v2465
      %v2574 = vmul.f32 %v1674, %v2466
      %v2575 = vmul.f32 %v1773, %v2467
      %v2576 = vmul.f32 %v1577, %v2468
      %v2577 = vmul.f32 %v1676, %v2469
      %v2578 = vmul.f32 %v1775, %v2470
      %v2579 = vmul.f32 %v1580, %v2471
      %v2580 = vmul.f32 %v1679, %v2472
      %v2581 = vmul.f32 %v1778, %v2473
      %v2582 = vmul.f32 %v1582, %v2474
      %v2583 = vmul.f32 %v1681, %v2475
      %v2584 = vmul.f32 %v1780, %v2476
      %v2585 = vmul.f32 %v1585, %v2477
      %v2586 = vmul.f32 %v1684, %v2478
      %v2587 = vmul.f32 %v1783, %v2479
      %v2588 = vmul.f32 %v1587, %v2480
      %v2589 = vmul.f32 %v1686, %v2481
      %v2590 = vmul.f32 %v1785, %v2482
      %v2591 = vmul.f32 %v1590, %v2483
      %v2592 = vmul.f32 %v1689, %v2484
      %v2593 = vmul.f32 %v1788, %v2485
      %v2594 = vmul.f32 %v1592, %v2486
      %v2595 = vmul.f32 %v1691, %v2487
      %v2596 = vmul.f32 %v1790, %v2488
      %v2597 = vmul.f32 %v1595, %v2489
      %v2598 = vmul.f32 %v1694, %v2490
      %v2599 = vmul.f32 %v1793, %v2491
      %v2600 = vmul.f32 %v1597, %v2492
      %v2601 = vmul.f32 %v1696, %v2493
      %v2602 = vmul.f32 %v1795, %v2494
      %v2603 = vmul.f32 %v1600, %v2495
      %v2604 = vmul.f32 %v1699, %v2496
      %v2605 = vmul.f32 %v1798, %v2497
      %v2606 = vmul.f32 %v1602, %v2498
      %v2607 = vmul.f32 %v1701, %v2499
      %v2608 = vmul.f32 %v1800, %v2500
      %v2609 = vmul.f32 %v1605, %v2501
      %v2610 = vmul.f32 %v1704, %v2502
      %v2611 = vmul.f32 %v1803, %v2503
      %v2612 = vmul.f32 %v1607, %v2504
      %v2613 = vmul.f32 %v1706, %v2505
      %v2614 = vmul.f32 %v1805, %v2506
      %v2615 = vmul.f32 %v1610, %v2507
      %v2616 = vmul.f32 %v1709, %v2508
      %v2617 = vmul.f32 %v1808, %v2509
      %v2618 = vmul.f32 %v1612, %v2510
      %v2619 = vmul.f32 %v1711, %v2511
      %v2620 = vmul.f32 %v1810, %v2512
      %v2621 = vmul.f32 %v1615, %v2513
      %v2622 = vmul.f32 %v1714, %v2514
      %v2623 = vmul.f32 %v1813, %v2515
      %v2624 = vmul.f32 %v1617, %v2516
      %v2625 = vmul.f32 %v1716, %v2517
      %v2626 = vmul.f32 %v1815, %v2518
      %v2627 = vld [vmem:[%s367] sm:$0xff]
      %v2628 = vld [vmem:[%s367 + $0x8] sm:$0xff]
      %v2629 = vld [vmem:[%s367 + $0x10] sm:$0xff]
      %v2630 = vld [vmem:[%s367 + $0x18] sm:$0xff]
      %v2631 = vld [vmem:[%s367 + $0x20] sm:$0xff]
      %v2632 = vld [vmem:[%s367 + $0x28] sm:$0xff]
      %v2633 = vld [vmem:[%s367 + $0x30] sm:$0xff]
      %v2634 = vld [vmem:[%s367 + $0x38] sm:$0xff]
      %v2635 = vld [vmem:[%s367 + $0x40] sm:$0xff]
      %v2636 = vld [vmem:[%s367 + $0x48] sm:$0xff]
      %v2637 = vld [vmem:[%s367 + $0x50] sm:$0xff]
      %v2638 = vld [vmem:[%s367 + $0x58] sm:$0xff]
      %v2639 = vld [vmem:[%s367 + $0x60] sm:$0xff]
      %v2640 = vld [vmem:[%s367 + $0x68] sm:$0xff]
      %v2641 = vld [vmem:[%s367 + $0x70] sm:$0xff]
      %v2642 = vld [vmem:[%s367 + $0x78] sm:$0xff]
      %v2643 = vld [vmem:[%s367 + $0x80] sm:$0xff]
      %v2644 = vld [vmem:[%s367 + $0x88] sm:$0xff]
      %v2645 = vld [vmem:[%s367 + $0x90] sm:$0xff]
      %v2646 = vld [vmem:[%s367 + $0x98] sm:$0xff]
      %v2647 = vld [vmem:[%s367 + $0xa0] sm:$0xff]
      %v2648 = vld [vmem:[%s367 + $0xa8] sm:$0xff]
      %v2649 = vld [vmem:[%s367 + $0xb0] sm:$0xff]
      %v2650 = vld [vmem:[%s367 + $0xb8] sm:$0xff]
      %v2651 = vld [vmem:[%s367 + $0xc0] sm:$0xff]
      %v2652 = vld [vmem:[%s367 + $0xc8] sm:$0xff]
      %v2653 = vld [vmem:[%s367 + $0xd0] sm:$0xff]
      %v2654 = vld [vmem:[%s367 + $0xd8] sm:$0xff]
      %v2655 = vld [vmem:[%s367 + $0xe0] sm:$0xff]
      %v2656 = vld [vmem:[%s367 + $0xe8] sm:$0xff]
      %v2657 = vld [vmem:[%s367 + $0xf0] sm:$0xff]
      %v2658 = vld [vmem:[%s367 + $0xf8] sm:$0xff]
      %v2659 = vld [vmem:[%s367 + $0x100] sm:$0xff]
      %v2660 = vld [vmem:[%s367 + $0x108] sm:$0xff]
      %v2661 = vld [vmem:[%s367 + $0x110] sm:$0xff]
      %v2662 = vld [vmem:[%s367 + $0x118] sm:$0xff]
      %v2663 = vld [vmem:[%s367 + $0x120] sm:$0xff]
      %v2664 = vld [vmem:[%s367 + $0x128] sm:$0xff]
      %v2665 = vld [vmem:[%s367 + $0x130] sm:$0xff]
      %v2666 = vld [vmem:[%s367 + $0x138] sm:$0xff]
      %v2667 = vld [vmem:[%s367 + $0x140] sm:$0xff]
      %v2668 = vld [vmem:[%s367 + $0x148] sm:$0xff]
      %v2669 = vld [vmem:[%s367 + $0x150] sm:$0xff]
      %v2670 = vld [vmem:[%s367 + $0x158] sm:$0xff]
      %v2671 = vld [vmem:[%s367 + $0x160] sm:$0xff]
      %v2672 = vld [vmem:[%s367 + $0x168] sm:$0xff]
      %v2673 = vld [vmem:[%s367 + $0x170] sm:$0xff]
      %v2674 = vld [vmem:[%s367 + $0x178] sm:$0xff]
      %v2675 = vld [vmem:[%s367 + $0x180] sm:$0xff]
      %v2676 = vld [vmem:[%s367 + $0x188] sm:$0xff]
      %v2677 = vld [vmem:[%s367 + $0x190] sm:$0xff]
      %v2678 = vld [vmem:[%s367 + $0x198] sm:$0xff]
      %v2679 = vld [vmem:[%s367 + $0x1a0] sm:$0xff]
      %v2680 = vld [vmem:[%s367 + $0x1a8] sm:$0xff]
      %v2681 = vld [vmem:[%s367 + $0x1b0] sm:$0xff]
      %v2682 = vld [vmem:[%s367 + $0x1b8] sm:$0xff]
      %v2683 = vld [vmem:[%s367 + $0x1c0] sm:$0xff]
      %v2684 = vld [vmem:[%s367 + $0x1c8] sm:$0xff]
      %v2685 = vld [vmem:[%s367 + $0x1d0] sm:$0xff]
      %v2686 = vld [vmem:[%s367 + $0x1d8] sm:$0xff]
      %v2687 = vld [vmem:[%s367 + $0x1e0] sm:$0xff]
      %v2688 = vld [vmem:[%s367 + $0x1e8] sm:$0xff]
      %v2689 = vld [vmem:[%s367 + $0x1f0] sm:$0xff]
      %v2690 = vld [vmem:[%s367 + $0x1f8] sm:$0xff]
      %v2691 = vld [vmem:[%s367 + $0x200] sm:$0xff]
      %v2692 = vld [vmem:[%s367 + $0x208] sm:$0xff]
      %v2693 = vld [vmem:[%s367 + $0x210] sm:$0xff]
      %v2694 = vld [vmem:[%s367 + $0x218] sm:$0xff]
      %v2695 = vld [vmem:[%s367 + $0x220] sm:$0xff]
      %v2696 = vld [vmem:[%s367 + $0x228] sm:$0xff]
      %v2697 = vld [vmem:[%s367 + $0x230] sm:$0xff]
      %v2698 = vld [vmem:[%s367 + $0x238] sm:$0xff]
      %v2699 = vld [vmem:[%s367 + $0x240] sm:$0xff]
      %v2700 = vld [vmem:[%s367 + $0x248] sm:$0xff]
      %v2701 = vld [vmem:[%s367 + $0x250] sm:$0xff]
      %v2702 = vld [vmem:[%s367 + $0x258] sm:$0xff]
      %v2703 = vld [vmem:[%s367 + $0x260] sm:$0xff]
      %v2704 = vld [vmem:[%s367 + $0x268] sm:$0xff]
      %v2705 = vld [vmem:[%s367 + $0x270] sm:$0xff]
      %v2706 = vld [vmem:[%s367 + $0x278] sm:$0xff]
      %v2707 = vld [vmem:[%s367 + $0x280] sm:$0xff]
      %v2708 = vld [vmem:[%s367 + $0x288] sm:$0xff]
      %v2709 = vld [vmem:[%s367 + $0x290] sm:$0xff]
      %v2710 = vld [vmem:[%s367 + $0x298] sm:$0xff]
      %v2711 = vld [vmem:[%s367 + $0x2a0] sm:$0xff]
      %v2712 = vld [vmem:[%s367 + $0x2a8] sm:$0xff]
      %v2713 = vld [vmem:[%s367 + $0x2b0] sm:$0xff]
      %v2714 = vld [vmem:[%s367 + $0x2b8] sm:$0xff]
      %v2715 = vld [vmem:[%s367 + $0x2c0] sm:$0xff]
      %v2716 = vld [vmem:[%s367 + $0x2c8] sm:$0xff]
      %v2717 = vld [vmem:[%s367 + $0x2d0] sm:$0xff]
      %v2718 = vld [vmem:[%s367 + $0x2d8] sm:$0xff]
      %v2719 = vld [vmem:[%s367 + $0x2e0] sm:$0xff]
      %v2720 = vld [vmem:[%s367 + $0x2e8] sm:$0xff]
      %v2721 = vld [vmem:[%s367 + $0x2f0] sm:$0xff]
      %v2722 = vld [vmem:[%s367 + $0x2f8] sm:$0xff]
      %v2723 = vld [vmem:[%s367 + $0x300] sm:$0xff]
      %v2724 = vld [vmem:[%s367 + $0x308] sm:$0xff]
      %v2725 = vld [vmem:[%s367 + $0x310] sm:$0xff]
      %v2726 = vld [vmem:[%s367 + $0x318] sm:$0xff]
      %v2727 = vld [vmem:[%s367 + $0x320] sm:$0xff]
      %v2728 = vld [vmem:[%s367 + $0x328] sm:$0xff]
      %v2729 = vld [vmem:[%s367 + $0x330] sm:$0xff]
      %v2730 = vld [vmem:[%s367 + $0x338] sm:$0xff]
      %v2731 = vld [vmem:[%s367 + $0x340] sm:$0xff]
      %v2732 = vld [vmem:[%s367 + $0x348] sm:$0xff]
      %v2733 = vld [vmem:[%s367 + $0x350] sm:$0xff]
      %v2734 = vld [vmem:[%s367 + $0x358] sm:$0xff]
      %v2735 = vmul.f32 %v2519, %v2627
      %v2736 = vmul.f32 %v2520, %v2628
      %v2737 = vmul.f32 %v2521, %v2629
      %v2738 = vmul.f32 %v2522, %v2630
      %v2739 = vmul.f32 %v2523, %v2631
      %v2740 = vmul.f32 %v2524, %v2632
      %v2741 = vmul.f32 %v2525, %v2633
      %v2742 = vmul.f32 %v2526, %v2634
      %v2743 = vmul.f32 %v2527, %v2635
      %v2744 = vmul.f32 %v2528, %v2636
      %v2745 = vmul.f32 %v2529, %v2637
      %v2746 = vmul.f32 %v2530, %v2638
      %v2747 = vmul.f32 %v2531, %v2639
      %v2748 = vmul.f32 %v2532, %v2640
      %v2749 = vmul.f32 %v2533, %v2641
      %v2750 = vmul.f32 %v2534, %v2642
      %v2751 = vmul.f32 %v2535, %v2643
      %v2752 = vmul.f32 %v2536, %v2644
      %v2753 = vmul.f32 %v2537, %v2645
      %v2754 = vmul.f32 %v2538, %v2646
      %v2755 = vmul.f32 %v2539, %v2647
      %v2756 = vmul.f32 %v2540, %v2648
      %v2757 = vmul.f32 %v2541, %v2649
      %v2758 = vmul.f32 %v2542, %v2650
      %v2759 = vmul.f32 %v2543, %v2651
      %v2760 = vmul.f32 %v2544, %v2652
      %v2761 = vmul.f32 %v2545, %v2653
      %v2762 = vmul.f32 %v2546, %v2654
      %v2763 = vmul.f32 %v2547, %v2655
      %v2764 = vmul.f32 %v2548, %v2656
      %v2765 = vmul.f32 %v2549, %v2657
      %v2766 = vmul.f32 %v2550, %v2658
      %v2767 = vmul.f32 %v2551, %v2659
      %v2768 = vmul.f32 %v2552, %v2660
      %v2769 = vmul.f32 %v2553, %v2661
      %v2770 = vmul.f32 %v2554, %v2662
      %v2771 = vmul.f32 %v2555, %v2663
      %v2772 = vmul.f32 %v2556, %v2664
      %v2773 = vmul.f32 %v2557, %v2665
      %v2774 = vmul.f32 %v2558, %v2666
      %v2775 = vmul.f32 %v2559, %v2667
      %v2776 = vmul.f32 %v2560, %v2668
      %v2777 = vmul.f32 %v2561, %v2669
      %v2778 = vmul.f32 %v2562, %v2670
      %v2779 = vmul.f32 %v2563, %v2671
      %v2780 = vmul.f32 %v2564, %v2672
      %v2781 = vmul.f32 %v2565, %v2673
      %v2782 = vmul.f32 %v2566, %v2674
      %v2783 = vmul.f32 %v2567, %v2675
      %v2784 = vmul.f32 %v2568, %v2676
      %v2785 = vmul.f32 %v2569, %v2677
      %v2786 = vmul.f32 %v2570, %v2678
      %v2787 = vmul.f32 %v2571, %v2679
      %v2788 = vmul.f32 %v2572, %v2680
      %v2789 = vmul.f32 %v2573, %v2681
      %v2790 = vmul.f32 %v2574, %v2682
      %v2791 = vmul.f32 %v2575, %v2683
      %v2792 = vmul.f32 %v2576, %v2684
      %v2793 = vmul.f32 %v2577, %v2685
      %v2794 = vmul.f32 %v2578, %v2686
      %v2795 = vmul.f32 %v2579, %v2687
      %v2796 = vmul.f32 %v2580, %v2688
      %v2797 = vmul.f32 %v2581, %v2689
      %v2798 = vmul.f32 %v2582, %v2690
      %v2799 = vmul.f32 %v2583, %v2691
      %v2800 = vmul.f32 %v2584, %v2692
      %v2801 = vmul.f32 %v2585, %v2693
      %v2802 = vmul.f32 %v2586, %v2694
      %v2803 = vmul.f32 %v2587, %v2695
      %v2804 = vmul.f32 %v2588, %v2696
      %v2805 = vmul.f32 %v2589, %v2697
      %v2806 = vmul.f32 %v2590, %v2698
      %v2807 = vmul.f32 %v2591, %v2699
      %v2808 = vmul.f32 %v2592, %v2700
      %v2809 = vmul.f32 %v2593, %v2701
      %v2810 = vmul.f32 %v2594, %v2702
      %v2811 = vmul.f32 %v2595, %v2703
      %v2812 = vmul.f32 %v2596, %v2704
      %v2813 = vmul.f32 %v2597, %v2705
      %v2814 = vmul.f32 %v2598, %v2706
      %v2815 = vmul.f32 %v2599, %v2707
      %v2816 = vmul.f32 %v2600, %v2708
      %v2817 = vmul.f32 %v2601, %v2709
      %v2818 = vmul.f32 %v2602, %v2710
      %v2819 = vmul.f32 %v2603, %v2711
      %v2820 = vmul.f32 %v2604, %v2712
      %v2821 = vmul.f32 %v2605, %v2713
      %v2822 = vmul.f32 %v2606, %v2714
      %v2823 = vmul.f32 %v2607, %v2715
      %v2824 = vmul.f32 %v2608, %v2716
      %v2825 = vmul.f32 %v2609, %v2717
      %v2826 = vmul.f32 %v2610, %v2718
      %v2827 = vmul.f32 %v2611, %v2719
      %v2828 = vmul.f32 %v2612, %v2720
      %v2829 = vmul.f32 %v2613, %v2721
      %v2830 = vmul.f32 %v2614, %v2722
      %v2831 = vmul.f32 %v2615, %v2723
      %v2832 = vmul.f32 %v2616, %v2724
      %v2833 = vmul.f32 %v2617, %v2725
      %v2834 = vmul.f32 %v2618, %v2726
      %v2835 = vmul.f32 %v2619, %v2727
      %v2836 = vmul.f32 %v2620, %v2728
      %v2837 = vmul.f32 %v2621, %v2729
      %v2838 = vmul.f32 %v2622, %v2730
      %v2839 = vmul.f32 %v2623, %v2731
      %v2840 = vmul.f32 %v2624, %v2732
      %v2841 = vmul.f32 %v2625, %v2733
      %v2842 = vmul.f32 %v2626, %v2734
      %v2843 = vld [vmem:[%s4] sm:$0xff]
      %v2844 = vld [vmem:[%s4 + $0x8] sm:$0xff]
      %v2845 = vld [vmem:[%s4 + $0x10] sm:$0xff]
      %v2846 = vld [vmem:[%s4 + $0x18] sm:$0xff]
      %v2847 = vld [vmem:[%s4 + $0x20] sm:$0xff]
      %v2848 = vld [vmem:[%s4 + $0x28] sm:$0xff]
      %v2849 = vld [vmem:[%s4 + $0x30] sm:$0xff]
      %v2850 = vld [vmem:[%s4 + $0x38] sm:$0xff]
      %v2851 = vld [vmem:[%s4 + $0x40] sm:$0xff]
      %v2852 = vld [vmem:[%s4 + $0x48] sm:$0xff]
      %v2853 = vld [vmem:[%s4 + $0x50] sm:$0xff]
      %v2854 = vld [vmem:[%s4 + $0x58] sm:$0xff]
      %v2855 = vld [vmem:[%s4 + $0x60] sm:$0xff]
      %v2856 = vld [vmem:[%s4 + $0x68] sm:$0xff]
      %v2857 = vld [vmem:[%s4 + $0x70] sm:$0xff]
      %v2858 = vld [vmem:[%s4 + $0x78] sm:$0xff]
      %v2859 = vld [vmem:[%s4 + $0x80] sm:$0xff]
      %v2860 = vld [vmem:[%s4 + $0x88] sm:$0xff]
      %v2861 = vld [vmem:[%s4 + $0x90] sm:$0xff]
      %v2862 = vld [vmem:[%s4 + $0x98] sm:$0xff]
      %v2863 = vld [vmem:[%s4 + $0xa0] sm:$0xff]
      %v2864 = vld [vmem:[%s4 + $0xa8] sm:$0xff]
      %v2865 = vld [vmem:[%s4 + $0xb0] sm:$0xff]
      %v2866 = vld [vmem:[%s4 + $0xb8] sm:$0xff]
      %v2867 = vld [vmem:[%s4 + $0xc0] sm:$0xff]
      %v2868 = vld [vmem:[%s4 + $0xc8] sm:$0xff]
      %v2869 = vld [vmem:[%s4 + $0xd0] sm:$0xff]
      %v2870 = vld [vmem:[%s4 + $0xd8] sm:$0xff]
      %v2871 = vld [vmem:[%s4 + $0xe0] sm:$0xff]
      %v2872 = vld [vmem:[%s4 + $0xe8] sm:$0xff]
      %v2873 = vld [vmem:[%s4 + $0xf0] sm:$0xff]
      %v2874 = vld [vmem:[%s4 + $0xf8] sm:$0xff]
      %v2875 = vld [vmem:[%s4 + $0x100] sm:$0xff]
      %v2876 = vld [vmem:[%s4 + $0x108] sm:$0xff]
      %v2877 = vld [vmem:[%s4 + $0x110] sm:$0xff]
      %v2878 = vld [vmem:[%s4 + $0x118] sm:$0xff]
      %v2879 = vld [vmem:[%s4 + $0x120] sm:$0xff]
      %v2880 = vld [vmem:[%s4 + $0x128] sm:$0xff]
      %v2881 = vld [vmem:[%s4 + $0x130] sm:$0xff]
      %v2882 = vld [vmem:[%s4 + $0x138] sm:$0xff]
      %v2883 = vld [vmem:[%s4 + $0x140] sm:$0xff]
      %v2884 = vld [vmem:[%s4 + $0x148] sm:$0xff]
      %v2885 = vld [vmem:[%s4 + $0x150] sm:$0xff]
      %v2886 = vld [vmem:[%s4 + $0x158] sm:$0xff]
      %v2887 = vld [vmem:[%s4 + $0x160] sm:$0xff]
      %v2888 = vld [vmem:[%s4 + $0x168] sm:$0xff]
      %v2889 = vld [vmem:[%s4 + $0x170] sm:$0xff]
      %v2890 = vld [vmem:[%s4 + $0x178] sm:$0xff]
      %v2892 = vsel %vm457, %v2845, 0
      %v2895 = vsel %vm457, %v2848, 0
      %v2898 = vsel %vm457, %v2851, 0
      %v2901 = vsel %vm457, %v2854, 0
      %v2904 = vsel %vm457, %v2857, 0
      %v2907 = vsel %vm457, %v2860, 0
      %v2910 = vsel %vm457, %v2863, 0
      %v2913 = vsel %vm457, %v2866, 0
      %v2916 = vsel %vm457, %v2869, 0
      %v2919 = vsel %vm457, %v2872, 0
      %v2922 = vsel %vm457, %v2875, 0
      %v2925 = vsel %vm457, %v2878, 0
      %v2928 = vsel %vm457, %v2881, 0
      %v2931 = vsel %vm457, %v2884, 0
      %v2934 = vsel %vm457, %v2887, 0
      %v2937 = vsel %vm457, %v2890, 0
      %2939 = vmatpush.msra.mxu0 %v2780
      %2940 = vmatpush.msra.mxu0 %v2777
      %2941 = vmatpush.msra.mxu0 %v2774
      %2942 = vmatpush.msra.mxu0 %v2771
      %2943 = vmatpush.msra.mxu0 %v2768
      %2944 = vmatpush.msra.mxu0 %v2765
      %2945 = vmatpush.msra.mxu0 %v2762
      %2946 = vmatpush.msra.mxu0 %v2759
      %2947 = vmatpush.msra.mxu0 %v2756
      %2948 = vmatpush.msra.mxu0 %v2753
      %2949 = vmatpush.msra.mxu0 %v2750
      %2950 = vmatpush.msra.mxu0 %v2747
      %2951 = vmatpush.msra.mxu0 %v2744
      %2952 = vmatpush.msra.mxu0 %v2741
      %2953 = vmatpush.msra.mxu0 %v2738
      %2954 = vmatpush.msra.mxu0 %v2735
      %2955 = vmatmul.f32.gmra.mxu0 %v2843
      %v2956 = vpop.f32.mrf.mxu0
      %v2957 = vadd.f32 0.0, %v2956
      %2958 = vmatmul.f32.gmra.mxu0 %v2846
      %v2959 = vpop.f32.mrf.mxu0
      %v2960 = vadd.f32 0.0, %v2959
      %2961 = vmatmul.f32.gmra.mxu0 %v2849
      %v2962 = vpop.f32.mrf.mxu0
      %v2963 = vadd.f32 0.0, %v2962
      %2964 = vmatmul.f32.gmra.mxu0 %v2852
      %v2965 = vpop.f32.mrf.mxu0
      %v2966 = vadd.f32 0.0, %v2965
      %2967 = vmatmul.f32.gmra.mxu0 %v2855
      %v2968 = vpop.f32.mrf.mxu0
      %v2969 = vadd.f32 0.0, %v2968
      %2970 = vmatmul.f32.gmra.mxu0 %v2858
      %v2971 = vpop.f32.mrf.mxu0
      %v2972 = vadd.f32 0.0, %v2971
      %2973 = vmatmul.f32.gmra.mxu0 %v2861
      %v2974 = vpop.f32.mrf.mxu0
      %v2975 = vadd.f32 0.0, %v2974
      %2976 = vmatmul.f32.gmra.mxu0 %v2864
      %v2977 = vpop.f32.mrf.mxu0
      %v2978 = vadd.f32 0.0, %v2977
      %2979 = vmatmul.f32.gmra.mxu0 %v2867
      %v2980 = vpop.f32.mrf.mxu0
      %v2981 = vadd.f32 0.0, %v2980
      %2982 = vmatmul.f32.gmra.mxu0 %v2870
      %v2983 = vpop.f32.mrf.mxu0
      %v2984 = vadd.f32 0.0, %v2983
      %2985 = vmatmul.f32.gmra.mxu0 %v2873
      %v2986 = vpop.f32.mrf.mxu0
      %v2987 = vadd.f32 0.0, %v2986
      %2988 = vmatmul.f32.gmra.mxu0 %v2876
      %v2989 = vpop.f32.mrf.mxu0
      %v2990 = vadd.f32 0.0, %v2989
      %2991 = vmatmul.f32.gmra.mxu0 %v2879
      %v2992 = vpop.f32.mrf.mxu0
      %v2993 = vadd.f32 0.0, %v2992
      %2994 = vmatmul.f32.gmra.mxu0 %v2882
      %v2995 = vpop.f32.mrf.mxu0
      %v2996 = vadd.f32 0.0, %v2995
      %2997 = vmatmul.f32.gmra.mxu0 %v2885
      %v2998 = vpop.f32.mrf.mxu0
      %v2999 = vadd.f32 0.0, %v2998
      %3000 = vmatmul.f32.gmra.mxu0 %v2888
      %v3001 = vpop.f32.mrf.mxu0
      %v3002 = vadd.f32 0.0, %v3001
      %3003 = vdwg.mxu0
      %3004 = vmatpush.msra.mxu0 %v2828
      %3005 = vmatpush.msra.mxu0 %v2825
      %3006 = vmatpush.msra.mxu0 %v2822
      %3007 = vmatpush.msra.mxu0 %v2819
      %3008 = vmatpush.msra.mxu0 %v2816
      %3009 = vmatpush.msra.mxu0 %v2813
      %3010 = vmatpush.msra.mxu0 %v2810
      %3011 = vmatpush.msra.mxu0 %v2807
      %3012 = vmatpush.msra.mxu0 %v2804
      %3013 = vmatpush.msra.mxu0 %v2801
      %3014 = vmatpush.msra.mxu0 %v2798
      %3015 = vmatpush.msra.mxu0 %v2795
      %3016 = vmatpush.msra.mxu0 %v2792
      %3017 = vmatpush.msra.mxu0 %v2789
      %3018 = vmatpush.msra.mxu0 %v2786
      %3019 = vmatpush.msra.mxu0 %v2783
      %3020 = vmatmul.f32.gmra.mxu0 %v2844
      %v3021 = vpop.f32.mrf.mxu0
      %v3022 = vadd.f32 %v2957, %v3021
      %3023 = vmatmul.f32.gmra.mxu0 %v2847
      %v3024 = vpop.f32.mrf.mxu0
      %v3025 = vadd.f32 %v2960, %v3024
      %3026 = vmatmul.f32.gmra.mxu0 %v2850
      %v3027 = vpop.f32.mrf.mxu0
      %v3028 = vadd.f32 %v2963, %v3027
      %3029 = vmatmul.f32.gmra.mxu0 %v2853
      %v3030 = vpop.f32.mrf.mxu0
      %v3031 = vadd.f32 %v2966, %v3030
      %3032 = vmatmul.f32.gmra.mxu0 %v2856
      %v3033 = vpop.f32.mrf.mxu0
      %v3034 = vadd.f32 %v2969, %v3033
      %3035 = vmatmul.f32.gmra.mxu0 %v2859
      %v3036 = vpop.f32.mrf.mxu0
      %v3037 = vadd.f32 %v2972, %v3036
      %3038 = vmatmul.f32.gmra.mxu0 %v2862
      %v3039 = vpop.f32.mrf.mxu0
      %v3040 = vadd.f32 %v2975, %v3039
      %3041 = vmatmul.f32.gmra.mxu0 %v2865
      %v3042 = vpop.f32.mrf.mxu0
      %v3043 = vadd.f32 %v2978, %v3042
      %3044 = vmatmul.f32.gmra.mxu0 %v2868
      %v3045 = vpop.f32.mrf.mxu0
      %v3046 = vadd.f32 %v2981, %v3045
      %3047 = vmatmul.f32.gmra.mxu0 %v2871
      %v3048 = vpop.f32.mrf.mxu0
      %v3049 = vadd.f32 %v2984, %v3048
      %3050 = vmatmul.f32.gmra.mxu0 %v2874
      %v3051 = vpop.f32.mrf.mxu0
      %v3052 = vadd.f32 %v2987, %v3051
      %3053 = vmatmul.f32.gmra.mxu0 %v2877
      %v3054 = vpop.f32.mrf.mxu0
      %v3055 = vadd.f32 %v2990, %v3054
      %3056 = vmatmul.f32.gmra.mxu0 %v2880
      %v3057 = vpop.f32.mrf.mxu0
      %v3058 = vadd.f32 %v2993, %v3057
      %3059 = vmatmul.f32.gmra.mxu0 %v2883
      %v3060 = vpop.f32.mrf.mxu0
      %v3061 = vadd.f32 %v2996, %v3060
      %3062 = vmatmul.f32.gmra.mxu0 %v2886
      %v3063 = vpop.f32.mrf.mxu0
      %v3064 = vadd.f32 %v2999, %v3063
      %3065 = vmatmul.f32.gmra.mxu0 %v2889
      %v3066 = vpop.f32.mrf.mxu0
      %v3067 = vadd.f32 %v3002, %v3066
      %3068 = vdwg.mxu0
      %3069 = vmatpush.msra.mxu0 0.0
      %3070 = vmatpush.msra.mxu0 0.0
      %3071 = vmatpush.msra.mxu0 0.0
      %3072 = vmatpush.msra.mxu0 0.0
      %3073 = vmatpush.msra.mxu0 0.0
      %3074 = vmatpush.msra.mxu0 0.0
      %3075 = vmatpush.msra.mxu0 0.0
      %3076 = vmatpush.msra.mxu0 0.0
      %3077 = vmatpush.msra.mxu0 0.0
      %3078 = vmatpush.msra.mxu0 0.0
      %3079 = vmatpush.msra.mxu0 0.0
      %3080 = vmatpush.msra.mxu0 0.0
      %3081 = vmatpush.msra.mxu0 %v2840
      %3082 = vmatpush.msra.mxu0 %v2837
      %3083 = vmatpush.msra.mxu0 %v2834
      %3084 = vmatpush.msra.mxu0 %v2831
      %3085 = vmatmul.f32.gmra.mxu0 %v2892
      %v3086 = vpop.f32.mrf.mxu0
      %v3087 = vadd.f32 %v3022, %v3086
      %3088 = vmatmul.f32.gmra.mxu0 %v2895
      %v3089 = vpop.f32.mrf.mxu0
      %v3090 = vadd.f32 %v3025, %v3089
      %3091 = vmatmul.f32.gmra.mxu0 %v2898
      %v3092 = vpop.f32.mrf.mxu0
      %v3093 = vadd.f32 %v3028, %v3092
      %3094 = vmatmul.f32.gmra.mxu0 %v2901
      %v3095 = vpop.f32.mrf.mxu0
      %v3096 = vadd.f32 %v3031, %v3095
      %3097 = vmatmul.f32.gmra.mxu0 %v2904
      %v3098 = vpop.f32.mrf.mxu0
      %v3099 = vadd.f32 %v3034, %v3098
      %3100 = vmatmul.f32.gmra.mxu0 %v2907
      %v3101 = vpop.f32.mrf.mxu0
      %v3102 = vadd.f32 %v3037, %v3101
      %3103 = vmatmul.f32.gmra.mxu0 %v2910
      %v3104 = vpop.f32.mrf.mxu0
      %v3105 = vadd.f32 %v3040, %v3104
      %3106 = vmatmul.f32.gmra.mxu0 %v2913
      %v3107 = vpop.f32.mrf.mxu0
      %v3108 = vadd.f32 %v3043, %v3107
      %3109 = vmatmul.f32.gmra.mxu0 %v2916
      %v3110 = vpop.f32.mrf.mxu0
      %v3111 = vadd.f32 %v3046, %v3110
      %3112 = vmatmul.f32.gmra.mxu0 %v2919
      %v3113 = vpop.f32.mrf.mxu0
      %v3114 = vadd.f32 %v3049, %v3113
      %3115 = vmatmul.f32.gmra.mxu0 %v2922
      %v3116 = vpop.f32.mrf.mxu0
      %v3117 = vadd.f32 %v3052, %v3116
      %3118 = vmatmul.f32.gmra.mxu0 %v2925
      %v3119 = vpop.f32.mrf.mxu0
      %v3120 = vadd.f32 %v3055, %v3119
      %3121 = vmatmul.f32.gmra.mxu0 %v2928
      %v3122 = vpop.f32.mrf.mxu0
      %v3123 = vadd.f32 %v3058, %v3122
      %3124 = vmatmul.f32.gmra.mxu0 %v2931
      %v3125 = vpop.f32.mrf.mxu0
      %v3126 = vadd.f32 %v3061, %v3125
      %3127 = vmatmul.f32.gmra.mxu0 %v2934
      %v3128 = vpop.f32.mrf.mxu0
      %v3129 = vadd.f32 %v3064, %v3128
      %3130 = vmatmul.f32.gmra.mxu0 %v2937
      %v3131 = vpop.f32.mrf.mxu0
      %v3132 = vadd.f32 %v3067, %v3131
      %3133 = vdwg.mxu0
      %3134 = vmatpush.msra.mxu0 %v2781
      %3135 = vmatpush.msra.mxu0 %v2778
      %3136 = vmatpush.msra.mxu0 %v2775
      %3137 = vmatpush.msra.mxu0 %v2772
      %3138 = vmatpush.msra.mxu0 %v2769
      %3139 = vmatpush.msra.mxu0 %v2766
      %3140 = vmatpush.msra.mxu0 %v2763
      %3141 = vmatpush.msra.mxu0 %v2760
      %3142 = vmatpush.msra.mxu0 %v2757
      %3143 = vmatpush.msra.mxu0 %v2754
      %3144 = vmatpush.msra.mxu0 %v2751
      %3145 = vmatpush.msra.mxu0 %v2748
      %3146 = vmatpush.msra.mxu0 %v2745
      %3147 = vmatpush.msra.mxu0 %v2742
      %3148 = vmatpush.msra.mxu0 %v2739
      %3149 = vmatpush.msra.mxu0 %v2736
      %3150 = vmatmul.f32.gmra.mxu0 %v2843
      %v3151 = vpop.f32.mrf.mxu0
      %v3152 = vadd.f32 0.0, %v3151
      %3153 = vmatmul.f32.gmra.mxu0 %v2846
      %v3154 = vpop.f32.mrf.mxu0
      %v3155 = vadd.f32 0.0, %v3154
      %3156 = vmatmul.f32.gmra.mxu0 %v2849
      %v3157 = vpop.f32.mrf.mxu0
      %v3158 = vadd.f32 0.0, %v3157
      %3159 = vmatmul.f32.gmra.mxu0 %v2852
      %v3160 = vpop.f32.mrf.mxu0
      %v3161 = vadd.f32 0.0, %v3160
      %3162 = vmatmul.f32.gmra.mxu0 %v2855
      %v3163 = vpop.f32.mrf.mxu0
      %v3164 = vadd.f32 0.0, %v3163
      %3165 = vmatmul.f32.gmra.mxu0 %v2858
      %v3166 = vpop.f32.mrf.mxu0
      %v3167 = vadd.f32 0.0, %v3166
      %3168 = vmatmul.f32.gmra.mxu0 %v2861
      %v3169 = vpop.f32.mrf.mxu0
      %v3170 = vadd.f32 0.0, %v3169
      %3171 = vmatmul.f32.gmra.mxu0 %v2864
      %v3172 = vpop.f32.mrf.mxu0
      %v3173 = vadd.f32 0.0, %v3172
      %3174 = vmatmul.f32.gmra.mxu0 %v2867
      %v3175 = vpop.f32.mrf.mxu0
      %v3176 = vadd.f32 0.0, %v3175
      %3177 = vmatmul.f32.gmra.mxu0 %v2870
      %v3178 = vpop.f32.mrf.mxu0
      %v3179 = vadd.f32 0.0, %v3178
      %3180 = vmatmul.f32.gmra.mxu0 %v2873
      %v3181 = vpop.f32.mrf.mxu0
      %v3182 = vadd.f32 0.0, %v3181
      %3183 = vmatmul.f32.gmra.mxu0 %v2876
      %v3184 = vpop.f32.mrf.mxu0
      %v3185 = vadd.f32 0.0, %v3184
      %3186 = vmatmul.f32.gmra.mxu0 %v2879
      %v3187 = vpop.f32.mrf.mxu0
      %v3188 = vadd.f32 0.0, %v3187
      %3189 = vmatmul.f32.gmra.mxu0 %v2882
      %v3190 = vpop.f32.mrf.mxu0
      %v3191 = vadd.f32 0.0, %v3190
      %3192 = vmatmul.f32.gmra.mxu0 %v2885
      %v3193 = vpop.f32.mrf.mxu0
      %v3194 = vadd.f32 0.0, %v3193
      %3195 = vmatmul.f32.gmra.mxu0 %v2888
      %v3196 = vpop.f32.mrf.mxu0
      %v3197 = vadd.f32 0.0, %v3196
      %3198 = vdwg.mxu0
      %3199 = vmatpush.msra.mxu0 %v2829
      %3200 = vmatpush.msra.mxu0 %v2826
      %3201 = vmatpush.msra.mxu0 %v2823
      %3202 = vmatpush.msra.mxu0 %v2820
      %3203 = vmatpush.msra.mxu0 %v2817
      %3204 = vmatpush.msra.mxu0 %v2814
      %3205 = vmatpush.msra.mxu0 %v2811
      %3206 = vmatpush.msra.mxu0 %v2808
      %3207 = vmatpush.msra.mxu0 %v2805
      %3208 = vmatpush.msra.mxu0 %v2802
      %3209 = vmatpush.msra.mxu0 %v2799
      %3210 = vmatpush.msra.mxu0 %v2796
      %3211 = vmatpush.msra.mxu0 %v2793
      %3212 = vmatpush.msra.mxu0 %v2790
      %3213 = vmatpush.msra.mxu0 %v2787
      %3214 = vmatpush.msra.mxu0 %v2784
      %3215 = vmatmul.f32.gmra.mxu0 %v2844
      %v3216 = vpop.f32.mrf.mxu0
      %v3217 = vadd.f32 %v3152, %v3216
      %3218 = vmatmul.f32.gmra.mxu0 %v2847
      %v3219 = vpop.f32.mrf.mxu0
      %v3220 = vadd.f32 %v3155, %v3219
      %3221 = vmatmul.f32.gmra.mxu0 %v2850
      %v3222 = vpop.f32.mrf.mxu0
      %v3223 = vadd.f32 %v3158, %v3222
      %3224 = vmatmul.f32.gmra.mxu0 %v2853
      %v3225 = vpop.f32.mrf.mxu0
      %v3226 = vadd.f32 %v3161, %v3225
      %3227 = vmatmul.f32.gmra.mxu0 %v2856
      %v3228 = vpop.f32.mrf.mxu0
      %v3229 = vadd.f32 %v3164, %v3228
      %3230 = vmatmul.f32.gmra.mxu0 %v2859
      %v3231 = vpop.f32.mrf.mxu0
      %v3232 = vadd.f32 %v3167, %v3231
      %3233 = vmatmul.f32.gmra.mxu0 %v2862
      %v3234 = vpop.f32.mrf.mxu0
      %v3235 = vadd.f32 %v3170, %v3234
      %3236 = vmatmul.f32.gmra.mxu0 %v2865
      %v3237 = vpop.f32.mrf.mxu0
      %v3238 = vadd.f32 %v3173, %v3237
      %3239 = vmatmul.f32.gmra.mxu0 %v2868
      %v3240 = vpop.f32.mrf.mxu0
      %v3241 = vadd.f32 %v3176, %v3240
      %3242 = vmatmul.f32.gmra.mxu0 %v2871
      %v3243 = vpop.f32.mrf.mxu0
      %v3244 = vadd.f32 %v3179, %v3243
      %3245 = vmatmul.f32.gmra.mxu0 %v2874
      %v3246 = vpop.f32.mrf.mxu0
      %v3247 = vadd.f32 %v3182, %v3246
      %3248 = vmatmul.f32.gmra.mxu0 %v2877
      %v3249 = vpop.f32.mrf.mxu0
      %v3250 = vadd.f32 %v3185, %v3249
      %3251 = vmatmul.f32.gmra.mxu0 %v2880
      %v3252 = vpop.f32.mrf.mxu0
      %v3253 = vadd.f32 %v3188, %v3252
      %3254 = vmatmul.f32.gmra.mxu0 %v2883
      %v3255 = vpop.f32.mrf.mxu0
      %v3256 = vadd.f32 %v3191, %v3255
      %3257 = vmatmul.f32.gmra.mxu0 %v2886
      %v3258 = vpop.f32.mrf.mxu0
      %v3259 = vadd.f32 %v3194, %v3258
      %3260 = vmatmul.f32.gmra.mxu0 %v2889
      %v3261 = vpop.f32.mrf.mxu0
      %v3262 = vadd.f32 %v3197, %v3261
      %3263 = vdwg.mxu0
      %3264 = vmatpush.msra.mxu0 0.0
      %3265 = vmatpush.msra.mxu0 0.0
      %3266 = vmatpush.msra.mxu0 0.0
      %3267 = vmatpush.msra.mxu0 0.0
      %3268 = vmatpush.msra.mxu0 0.0
      %3269 = vmatpush.msra.mxu0 0.0
      %3270 = vmatpush.msra.mxu0 0.0
      %3271 = vmatpush.msra.mxu0 0.0
      %3272 = vmatpush.msra.mxu0 0.0
      %3273 = vmatpush.msra.mxu0 0.0
      %3274 = vmatpush.msra.mxu0 0.0
      %3275 = vmatpush.msra.mxu0 0.0
      %3276 = vmatpush.msra.mxu0 %v2841
      %3277 = vmatpush.msra.mxu0 %v2838
      %3278 = vmatpush.msra.mxu0 %v2835
      %3279 = vmatpush.msra.mxu0 %v2832
      %3280 = vmatmul.f32.gmra.mxu0 %v2892
      %v3281 = vpop.f32.mrf.mxu0
      %v3282 = vadd.f32 %v3217, %v3281
      %3283 = vmatmul.f32.gmra.mxu0 %v2895
      %v3284 = vpop.f32.mrf.mxu0
      %v3285 = vadd.f32 %v3220, %v3284
      %3286 = vmatmul.f32.gmra.mxu0 %v2898
      %v3287 = vpop.f32.mrf.mxu0
      %v3288 = vadd.f32 %v3223, %v3287
      %3289 = vmatmul.f32.gmra.mxu0 %v2901
      %v3290 = vpop.f32.mrf.mxu0
      %v3291 = vadd.f32 %v3226, %v3290
      %3292 = vmatmul.f32.gmra.mxu0 %v2904
      %v3293 = vpop.f32.mrf.mxu0
      %v3294 = vadd.f32 %v3229, %v3293
      %3295 = vmatmul.f32.gmra.mxu0 %v2907
      %v3296 = vpop.f32.mrf.mxu0
      %v3297 = vadd.f32 %v3232, %v3296
      %3298 = vmatmul.f32.gmra.mxu0 %v2910
      %v3299 = vpop.f32.mrf.mxu0
      %v3300 = vadd.f32 %v3235, %v3299
      %3301 = vmatmul.f32.gmra.mxu0 %v2913
      %v3302 = vpop.f32.mrf.mxu0
      %v3303 = vadd.f32 %v3238, %v3302
      %3304 = vmatmul.f32.gmra.mxu0 %v2916
      %v3305 = vpop.f32.mrf.mxu0
      %v3306 = vadd.f32 %v3241, %v3305
      %3307 = vmatmul.f32.gmra.mxu0 %v2919
      %v3308 = vpop.f32.mrf.mxu0
      %v3309 = vadd.f32 %v3244, %v3308
      %3310 = vmatmul.f32.gmra.mxu0 %v2922
      %v3311 = vpop.f32.mrf.mxu0
      %v3312 = vadd.f32 %v3247, %v3311
      %3313 = vmatmul.f32.gmra.mxu0 %v2925
      %v3314 = vpop.f32.mrf.mxu0
      %v3315 = vadd.f32 %v3250, %v3314
      %3316 = vmatmul.f32.gmra.mxu0 %v2928
      %v3317 = vpop.f32.mrf.mxu0
      %v3318 = vadd.f32 %v3253, %v3317
      %3319 = vmatmul.f32.gmra.mxu0 %v2931
      %v3320 = vpop.f32.mrf.mxu0
      %v3321 = vadd.f32 %v3256, %v3320
      %3322 = vmatmul.f32.gmra.mxu0 %v2934
      %v3323 = vpop.f32.mrf.mxu0
      %v3324 = vadd.f32 %v3259, %v3323
      %3325 = vmatmul.f32.gmra.mxu0 %v2937
      %v3326 = vpop.f32.mrf.mxu0
      %v3327 = vadd.f32 %v3262, %v3326
      %3328 = vdwg.mxu0
      %3329 = vmatpush.msra.mxu0 %v2782
      %3330 = vmatpush.msra.mxu0 %v2779
      %3331 = vmatpush.msra.mxu0 %v2776
      %3332 = vmatpush.msra.mxu0 %v2773
      %3333 = vmatpush.msra.mxu0 %v2770
      %3334 = vmatpush.msra.mxu0 %v2767
      %3335 = vmatpush.msra.mxu0 %v2764
      %3336 = vmatpush.msra.mxu0 %v2761
      %3337 = vmatpush.msra.mxu0 %v2758
      %3338 = vmatpush.msra.mxu0 %v2755
      %3339 = vmatpush.msra.mxu0 %v2752
      %3340 = vmatpush.msra.mxu0 %v2749
      %3341 = vmatpush.msra.mxu0 %v2746
      %3342 = vmatpush.msra.mxu0 %v2743
      %3343 = vmatpush.msra.mxu0 %v2740
      %3344 = vmatpush.msra.mxu0 %v2737
      %3345 = vmatmul.f32.gmra.mxu0 %v2843
      %v3346 = vpop.f32.mrf.mxu0
      %v3347 = vadd.f32 0.0, %v3346
      %3348 = vmatmul.f32.gmra.mxu0 %v2846
      %v3349 = vpop.f32.mrf.mxu0
      %v3350 = vadd.f32 0.0, %v3349
      %3351 = vmatmul.f32.gmra.mxu0 %v2849
      %v3352 = vpop.f32.mrf.mxu0
      %v3353 = vadd.f32 0.0, %v3352
      %3354 = vmatmul.f32.gmra.mxu0 %v2852
      %v3355 = vpop.f32.mrf.mxu0
      %v3356 = vadd.f32 0.0, %v3355
      %3357 = vmatmul.f32.gmra.mxu0 %v2855
      %v3358 = vpop.f32.mrf.mxu0
      %v3359 = vadd.f32 0.0, %v3358
      %3360 = vmatmul.f32.gmra.mxu0 %v2858
      %v3361 = vpop.f32.mrf.mxu0
      %v3362 = vadd.f32 0.0, %v3361
      %3363 = vmatmul.f32.gmra.mxu0 %v2861
      %v3364 = vpop.f32.mrf.mxu0
      %v3365 = vadd.f32 0.0, %v3364
      %3366 = vmatmul.f32.gmra.mxu0 %v2864
      %v3367 = vpop.f32.mrf.mxu0
      %v3368 = vadd.f32 0.0, %v3367
      %3369 = vmatmul.f32.gmra.mxu0 %v2867
      %v3370 = vpop.f32.mrf.mxu0
      %v3371 = vadd.f32 0.0, %v3370
      %3372 = vmatmul.f32.gmra.mxu0 %v2870
      %v3373 = vpop.f32.mrf.mxu0
      %v3374 = vadd.f32 0.0, %v3373
      %3375 = vmatmul.f32.gmra.mxu0 %v2873
      %v3376 = vpop.f32.mrf.mxu0
      %v3377 = vadd.f32 0.0, %v3376
      %3378 = vmatmul.f32.gmra.mxu0 %v2876
      %v3379 = vpop.f32.mrf.mxu0
      %v3380 = vadd.f32 0.0, %v3379
      %3381 = vmatmul.f32.gmra.mxu0 %v2879
      %v3382 = vpop.f32.mrf.mxu0
      %v3383 = vadd.f32 0.0, %v3382
      %3384 = vmatmul.f32.gmra.mxu0 %v2882
      %v3385 = vpop.f32.mrf.mxu0
      %v3386 = vadd.f32 0.0, %v3385
      %3387 = vmatmul.f32.gmra.mxu0 %v2885
      %v3388 = vpop.f32.mrf.mxu0
      %v3389 = vadd.f32 0.0, %v3388
      %3390 = vmatmul.f32.gmra.mxu0 %v2888
      %v3391 = vpop.f32.mrf.mxu0
      %v3392 = vadd.f32 0.0, %v3391
      %3393 = vdwg.mxu0
      %3394 = vmatpush.msra.mxu0 %v2830
      %3395 = vmatpush.msra.mxu0 %v2827
      %3396 = vmatpush.msra.mxu0 %v2824
      %3397 = vmatpush.msra.mxu0 %v2821
      %3398 = vmatpush.msra.mxu0 %v2818
      %3399 = vmatpush.msra.mxu0 %v2815
      %3400 = vmatpush.msra.mxu0 %v2812
      %3401 = vmatpush.msra.mxu0 %v2809
      %3402 = vmatpush.msra.mxu0 %v2806
      %3403 = vmatpush.msra.mxu0 %v2803
      %3404 = vmatpush.msra.mxu0 %v2800
      %3405 = vmatpush.msra.mxu0 %v2797
      %3406 = vmatpush.msra.mxu0 %v2794
      %3407 = vmatpush.msra.mxu0 %v2791
      %3408 = vmatpush.msra.mxu0 %v2788
      %3409 = vmatpush.msra.mxu0 %v2785
      %3410 = vmatmul.f32.gmra.mxu0 %v2844
      %v3411 = vpop.f32.mrf.mxu0
      %v3412 = vadd.f32 %v3347, %v3411
      %3413 = vmatmul.f32.gmra.mxu0 %v2847
      %v3414 = vpop.f32.mrf.mxu0
      %v3415 = vadd.f32 %v3350, %v3414
      %3416 = vmatmul.f32.gmra.mxu0 %v2850
      %v3417 = vpop.f32.mrf.mxu0
      %v3418 = vadd.f32 %v3353, %v3417
      %3419 = vmatmul.f32.gmra.mxu0 %v2853
      %v3420 = vpop.f32.mrf.mxu0
      %v3421 = vadd.f32 %v3356, %v3420
      %3422 = vmatmul.f32.gmra.mxu0 %v2856
      %v3423 = vpop.f32.mrf.mxu0
      %v3424 = vadd.f32 %v3359, %v3423
      %3425 = vmatmul.f32.gmra.mxu0 %v2859
      %v3426 = vpop.f32.mrf.mxu0
      %v3427 = vadd.f32 %v3362, %v3426
      %3428 = vmatmul.f32.gmra.mxu0 %v2862
      %v3429 = vpop.f32.mrf.mxu0
      %v3430 = vadd.f32 %v3365, %v3429
      %3431 = vmatmul.f32.gmra.mxu0 %v2865
      %v3432 = vpop.f32.mrf.mxu0
      %v3433 = vadd.f32 %v3368, %v3432
      %3434 = vmatmul.f32.gmra.mxu0 %v2868
      %v3435 = vpop.f32.mrf.mxu0
      %v3436 = vadd.f32 %v3371, %v3435
      %3437 = vmatmul.f32.gmra.mxu0 %v2871
      %v3438 = vpop.f32.mrf.mxu0
      %v3439 = vadd.f32 %v3374, %v3438
      %3440 = vmatmul.f32.gmra.mxu0 %v2874
      %v3441 = vpop.f32.mrf.mxu0
      %v3442 = vadd.f32 %v3377, %v3441
      %3443 = vmatmul.f32.gmra.mxu0 %v2877
      %v3444 = vpop.f32.mrf.mxu0
      %v3445 = vadd.f32 %v3380, %v3444
      %3446 = vmatmul.f32.gmra.mxu0 %v2880
      %v3447 = vpop.f32.mrf.mxu0
      %v3448 = vadd.f32 %v3383, %v3447
      %3449 = vmatmul.f32.gmra.mxu0 %v2883
      %v3450 = vpop.f32.mrf.mxu0
      %v3451 = vadd.f32 %v3386, %v3450
      %3452 = vmatmul.f32.gmra.mxu0 %v2886
      %v3453 = vpop.f32.mrf.mxu0
      %v3454 = vadd.f32 %v3389, %v3453
      %3455 = vmatmul.f32.gmra.mxu0 %v2889
      %v3456 = vpop.f32.mrf.mxu0
      %v3457 = vadd.f32 %v3392, %v3456
      %3458 = vdwg.mxu0
      %3459 = vmatpush.msra.mxu0 0.0
      %3460 = vmatpush.msra.mxu0 0.0
      %3461 = vmatpush.msra.mxu0 0.0
      %3462 = vmatpush.msra.mxu0 0.0
      %3463 = vmatpush.msra.mxu0 0.0
      %3464 = vmatpush.msra.mxu0 0.0
      %3465 = vmatpush.msra.mxu0 0.0
      %3466 = vmatpush.msra.mxu0 0.0
      %3467 = vmatpush.msra.mxu0 0.0
      %3468 = vmatpush.msra.mxu0 0.0
      %3469 = vmatpush.msra.mxu0 0.0
      %3470 = vmatpush.msra.mxu0 0.0
      %3471 = vmatpush.msra.mxu0 %v2842
      %3472 = vmatpush.msra.mxu0 %v2839
      %3473 = vmatpush.msra.mxu0 %v2836
      %3474 = vmatpush.msra.mxu0 %v2833
      %3475 = vmatmul.f32.gmra.mxu0 %v2892
      %v3476 = vpop.f32.mrf.mxu0
      %v3477 = vadd.f32 %v3412, %v3476
      %3478 = vmatmul.f32.gmra.mxu0 %v2895
      %v3479 = vpop.f32.mrf.mxu0
      %v3480 = vadd.f32 %v3415, %v3479
      %3481 = vmatmul.f32.gmra.mxu0 %v2898
      %v3482 = vpop.f32.mrf.mxu0
      %v3483 = vadd.f32 %v3418, %v3482
      %3484 = vmatmul.f32.gmra.mxu0 %v2901
      %v3485 = vpop.f32.mrf.mxu0
      %v3486 = vadd.f32 %v3421, %v3485
      %3487 = vmatmul.f32.gmra.mxu0 %v2904
      %v3488 = vpop.f32.mrf.mxu0
      %v3489 = vadd.f32 %v3424, %v3488
      %3490 = vmatmul.f32.gmra.mxu0 %v2907
      %v3491 = vpop.f32.mrf.mxu0
      %v3492 = vadd.f32 %v3427, %v3491
      %3493 = vmatmul.f32.gmra.mxu0 %v2910
      %v3494 = vpop.f32.mrf.mxu0
      %v3495 = vadd.f32 %v3430, %v3494
      %3496 = vmatmul.f32.gmra.mxu0 %v2913
      %v3497 = vpop.f32.mrf.mxu0
      %v3498 = vadd.f32 %v3433, %v3497
      %3499 = vmatmul.f32.gmra.mxu0 %v2916
      %v3500 = vpop.f32.mrf.mxu0
      %v3501 = vadd.f32 %v3436, %v3500
      %3502 = vmatmul.f32.gmra.mxu0 %v2919
      %v3503 = vpop.f32.mrf.mxu0
      %v3504 = vadd.f32 %v3439, %v3503
      %3505 = vmatmul.f32.gmra.mxu0 %v2922
      %v3506 = vpop.f32.mrf.mxu0
      %v3507 = vadd.f32 %v3442, %v3506
      %3508 = vmatmul.f32.gmra.mxu0 %v2925
      %v3509 = vpop.f32.mrf.mxu0
      %v3510 = vadd.f32 %v3445, %v3509
      %3511 = vmatmul.f32.gmra.mxu0 %v2928
      %v3512 = vpop.f32.mrf.mxu0
      %v3513 = vadd.f32 %v3448, %v3512
      %3514 = vmatmul.f32.gmra.mxu0 %v2931
      %v3515 = vpop.f32.mrf.mxu0
      %v3516 = vadd.f32 %v3451, %v3515
      %3517 = vmatmul.f32.gmra.mxu0 %v2934
      %v3518 = vpop.f32.mrf.mxu0
      %v3519 = vadd.f32 %v3454, %v3518
      %3520 = vmatmul.f32.gmra.mxu0 %v2937
      %v3521 = vpop.f32.mrf.mxu0
      %v3522 = vadd.f32 %v3457, %v3521
      %3523 = vdwg.mxu0
      %v3524 = vadd.f32 %v3087, %v3282
      %v3525 = vadd.f32 %v3524, %v3477
      %3526 = vadd.xlane.f32.xlu0 %v3525
      %v3527 = vpop.xlane.xlu0 %3526
      %v3528 = vadd.f32 %v3090, %v3285
      %v3529 = vadd.f32 %v3528, %v3480
      %3530 = vadd.xlane.f32.xlu0 %v3529
      %v3531 = vpop.xlane.xlu0 %3530
      %v3532 = vadd.f32 %v3093, %v3288
      %v3533 = vadd.f32 %v3532, %v3483
      %3534 = vadd.xlane.f32.xlu0 %v3533
      %v3535 = vpop.xlane.xlu0 %3534
      %v3536 = vadd.f32 %v3096, %v3291
      %v3537 = vadd.f32 %v3536, %v3486
      %3538 = vadd.xlane.f32.xlu0 %v3537
      %v3539 = vpop.xlane.xlu0 %3538
      %v3540 = vadd.f32 %v3099, %v3294
      %v3541 = vadd.f32 %v3540, %v3489
      %3542 = vadd.xlane.f32.xlu0 %v3541
      %v3543 = vpop.xlane.xlu0 %3542
      %v3544 = vadd.f32 %v3102, %v3297
      %v3545 = vadd.f32 %v3544, %v3492
      %3546 = vadd.xlane.f32.xlu0 %v3545
      %v3547 = vpop.xlane.xlu0 %3546
      %v3548 = vadd.f32 %v3105, %v3300
      %v3549 = vadd.f32 %v3548, %v3495
      %3550 = vadd.xlane.f32.xlu0 %v3549
      %v3551 = vpop.xlane.xlu0 %3550
      %v3552 = vadd.f32 %v3108, %v3303
      %v3553 = vadd.f32 %v3552, %v3498
      %3554 = vadd.xlane.f32.xlu0 %v3553
      %v3555 = vpop.xlane.xlu0 %3554
      %v3556 = vadd.f32 %v3111, %v3306
      %v3557 = vadd.f32 %v3556, %v3501
      %3558 = vadd.xlane.f32.xlu0 %v3557
      %v3559 = vpop.xlane.xlu0 %3558
      %v3560 = vadd.f32 %v3114, %v3309
      %v3561 = vadd.f32 %v3560, %v3504
      %3562 = vadd.xlane.f32.xlu0 %v3561
      %v3563 = vpop.xlane.xlu0 %3562
      %v3564 = vadd.f32 %v3117, %v3312
      %v3565 = vadd.f32 %v3564, %v3507
      %3566 = vadd.xlane.f32.xlu0 %v3565
      %v3567 = vpop.xlane.xlu0 %3566
      %v3568 = vadd.f32 %v3120, %v3315
      %v3569 = vadd.f32 %v3568, %v3510
      %3570 = vadd.xlane.f32.xlu0 %v3569
      %v3571 = vpop.xlane.xlu0 %3570
      %v3572 = vadd.f32 %v3123, %v3318
      %v3573 = vadd.f32 %v3572, %v3513
      %3574 = vadd.xlane.f32.xlu0 %v3573
      %v3575 = vpop.xlane.xlu0 %3574
      %v3576 = vadd.f32 %v3126, %v3321
      %v3577 = vadd.f32 %v3576, %v3516
      %3578 = vadd.xlane.f32.xlu0 %v3577
      %v3579 = vpop.xlane.xlu0 %3578
      %v3580 = vadd.f32 %v3129, %v3324
      %v3581 = vadd.f32 %v3580, %v3519
      %3582 = vadd.xlane.f32.xlu0 %v3581
      %v3583 = vpop.xlane.xlu0 %3582
      %v3584 = vadd.f32 %v3132, %v3327
      %v3585 = vadd.f32 %v3584, %v3522
      %3586 = vadd.xlane.f32.xlu0 %v3585
      %v3587 = vpop.xlane.xlu0 %3586
      %v3588 = vld [vmem:[%s374] sm:$0xff]
      %v3589 = vld [vmem:[%s374 + $0x8] sm:$0xff]
      %v3590 = vld [vmem:[%s374 + $0x10] sm:$0xff]
      %v3591 = vld [vmem:[%s374 + $0x18] sm:$0xff]
      %v3592 = vld [vmem:[%s374 + $0x20] sm:$0xff]
      %v3593 = vld [vmem:[%s374 + $0x28] sm:$0xff]
      %v3594 = vld [vmem:[%s374 + $0x30] sm:$0xff]
      %v3595 = vld [vmem:[%s374 + $0x38] sm:$0xff]
      %v3596 = vld [vmem:[%s374 + $0x40] sm:$0xff]
      %v3597 = vld [vmem:[%s374 + $0x48] sm:$0xff]
      %v3598 = vld [vmem:[%s374 + $0x50] sm:$0xff]
      %v3599 = vld [vmem:[%s374 + $0x58] sm:$0xff]
      %v3600 = vld [vmem:[%s374 + $0x60] sm:$0xff]
      %v3601 = vld [vmem:[%s374 + $0x68] sm:$0xff]
      %v3602 = vld [vmem:[%s374 + $0x70] sm:$0xff]
      %v3603 = vld [vmem:[%s374 + $0x78] sm:$0xff]
      %v3604 = vld [vmem:[%s374 + $0x80] sm:$0xff]
      %v3605 = vld [vmem:[%s374 + $0x88] sm:$0xff]
      %v3606 = vld [vmem:[%s374 + $0x90] sm:$0xff]
      %v3607 = vld [vmem:[%s374 + $0x98] sm:$0xff]
      %v3608 = vld [vmem:[%s374 + $0xa0] sm:$0xff]
      %v3609 = vld [vmem:[%s374 + $0xa8] sm:$0xff]
      %v3610 = vld [vmem:[%s374 + $0xb0] sm:$0xff]
      %v3611 = vld [vmem:[%s374 + $0xb8] sm:$0xff]
      %v3612 = vld [vmem:[%s374 + $0xc0] sm:$0xff]
      %v3613 = vld [vmem:[%s374 + $0xc8] sm:$0xff]
      %v3614 = vld [vmem:[%s374 + $0xd0] sm:$0xff]
      %v3615 = vld [vmem:[%s374 + $0xd8] sm:$0xff]
      %v3616 = vld [vmem:[%s374 + $0xe0] sm:$0xff]
      %v3617 = vld [vmem:[%s374 + $0xe8] sm:$0xff]
      %v3618 = vld [vmem:[%s374 + $0xf0] sm:$0xff]
      %v3619 = vld [vmem:[%s374 + $0xf8] sm:$0xff]
      %v3620 = vld [vmem:[%s374 + $0x100] sm:$0xff]
      %v3621 = vld [vmem:[%s374 + $0x108] sm:$0xff]
      %v3622 = vld [vmem:[%s374 + $0x110] sm:$0xff]
      %v3623 = vld [vmem:[%s374 + $0x118] sm:$0xff]
      %v3624 = vld [vmem:[%s374 + $0x120] sm:$0xff]
      %v3625 = vld [vmem:[%s374 + $0x128] sm:$0xff]
      %v3626 = vld [vmem:[%s374 + $0x130] sm:$0xff]
      %v3627 = vld [vmem:[%s374 + $0x138] sm:$0xff]
      %v3628 = vld [vmem:[%s374 + $0x140] sm:$0xff]
      %v3629 = vld [vmem:[%s374 + $0x148] sm:$0xff]
      %v3630 = vld [vmem:[%s374 + $0x150] sm:$0xff]
      %v3631 = vld [vmem:[%s374 + $0x158] sm:$0xff]
      %v3632 = vld [vmem:[%s374 + $0x160] sm:$0xff]
      %v3633 = vld [vmem:[%s374 + $0x168] sm:$0xff]
      %v3634 = vld [vmem:[%s374 + $0x170] sm:$0xff]
      %v3635 = vld [vmem:[%s374 + $0x178] sm:$0xff]
      %v3636 = vadd.f32 %v3527, %v3588
      %v3637 = vadd.f32 %v3527, %v3589
      %v3638 = vadd.f32 %v3527, %v3590
      %v3639 = vadd.f32 %v3531, %v3591
      %v3640 = vadd.f32 %v3531, %v3592
      %v3641 = vadd.f32 %v3531, %v3593
      %v3642 = vadd.f32 %v3535, %v3594
      %v3643 = vadd.f32 %v3535, %v3595
      %v3644 = vadd.f32 %v3535, %v3596
      %v3645 = vadd.f32 %v3539, %v3597
      %v3646 = vadd.f32 %v3539, %v3598
      %v3647 = vadd.f32 %v3539, %v3599
      %v3648 = vadd.f32 %v3543, %v3600
      %v3649 = vadd.f32 %v3543, %v3601
      %v3650 = vadd.f32 %v3543, %v3602
      %v3651 = vadd.f32 %v3547, %v3603
      %v3652 = vadd.f32 %v3547, %v3604
      %v3653 = vadd.f32 %v3547, %v3605
      %v3654 = vadd.f32 %v3551, %v3606
      %v3655 = vadd.f32 %v3551, %v3607
      %v3656 = vadd.f32 %v3551, %v3608
      %v3657 = vadd.f32 %v3555, %v3609
      %v3658 = vadd.f32 %v3555, %v3610
      %v3659 = vadd.f32 %v3555, %v3611
      %v3660 = vadd.f32 %v3559, %v3612
      %v3661 = vadd.f32 %v3559, %v3613
      %v3662 = vadd.f32 %v3559, %v3614
      %v3663 = vadd.f32 %v3563, %v3615
      %v3664 = vadd.f32 %v3563, %v3616
      %v3665 = vadd.f32 %v3563, %v3617
      %v3666 = vadd.f32 %v3567, %v3618
      %v3667 = vadd.f32 %v3567, %v3619
      %v3668 = vadd.f32 %v3567, %v3620
      %v3669 = vadd.f32 %v3571, %v3621
      %v3670 = vadd.f32 %v3571, %v3622
      %v3671 = vadd.f32 %v3571, %v3623
      %v3672 = vadd.f32 %v3575, %v3624
      %v3673 = vadd.f32 %v3575, %v3625
      %v3674 = vadd.f32 %v3575, %v3626
      %v3675 = vadd.f32 %v3579, %v3627
      %v3676 = vadd.f32 %v3579, %v3628
      %v3677 = vadd.f32 %v3579, %v3629
      %v3678 = vadd.f32 %v3583, %v3630
      %v3679 = vadd.f32 %v3583, %v3631
      %v3680 = vadd.f32 %v3583, %v3632
      %v3681 = vadd.f32 %v3587, %v3633
      %v3682 = vadd.f32 %v3587, %v3634
      %v3683 = vadd.f32 %v3587, %v3635
      %3684 = vst [vmem:[%s381] sm:$0xff] %v3636
      %3685 = vst [vmem:[%s381 + $0x8] sm:$0xff] %v3637
      %3686 = vst [vmem:[%s381 + $0x10] sm:$0xff] %v3638
      %3687 = vst [vmem:[%s381 + $0x18] sm:$0xff] %v3639
      %3688 = vst [vmem:[%s381 + $0x20] sm:$0xff] %v3640
      %3689 = vst [vmem:[%s381 + $0x28] sm:$0xff] %v3641
      %3690 = vst [vmem:[%s381 + $0x30] sm:$0xff] %v3642
      %3691 = vst [vmem:[%s381 + $0x38] sm:$0xff] %v3643
      %3692 = vst [vmem:[%s381 + $0x40] sm:$0xff] %v3644
      %3693 = vst [vmem:[%s381 + $0x48] sm:$0xff] %v3645
      %3694 = vst [vmem:[%s381 + $0x50] sm:$0xff] %v3646
      %3695 = vst [vmem:[%s381 + $0x58] sm:$0xff] %v3647
      %3696 = vst [vmem:[%s381 + $0x60] sm:$0xff] %v3648
      %3697 = vst [vmem:[%s381 + $0x68] sm:$0xff] %v3649
      %3698 = vst [vmem:[%s381 + $0x70] sm:$0xff] %v3650
      %3699 = vst [vmem:[%s381 + $0x78] sm:$0xff] %v3651
      %3700 = vst [vmem:[%s381 + $0x80] sm:$0xff] %v3652
      %3701 = vst [vmem:[%s381 + $0x88] sm:$0xff] %v3653
      %3702 = vst [vmem:[%s381 + $0x90] sm:$0xff] %v3654
      %3703 = vst [vmem:[%s381 + $0x98] sm:$0xff] %v3655
      %3704 = vst [vmem:[%s381 + $0xa0] sm:$0xff] %v3656
      %3705 = vst [vmem:[%s381 + $0xa8] sm:$0xff] %v3657
      %3706 = vst [vmem:[%s381 + $0xb0] sm:$0xff] %v3658
      %3707 = vst [vmem:[%s381 + $0xb8] sm:$0xff] %v3659
      %3708 = vst [vmem:[%s381 + $0xc0] sm:$0xff] %v3660
      %3709 = vst [vmem:[%s381 + $0xc8] sm:$0xff] %v3661
      %3710 = vst [vmem:[%s381 + $0xd0] sm:$0xff] %v3662
      %3711 = vst [vmem:[%s381 + $0xd8] sm:$0xff] %v3663
      %3712 = vst [vmem:[%s381 + $0xe0] sm:$0xff] %v3664
      %3713 = vst [vmem:[%s381 + $0xe8] sm:$0xff] %v3665
      %3714 = vst [vmem:[%s381 + $0xf0] sm:$0xff] %v3666
      %3715 = vst [vmem:[%s381 + $0xf8] sm:$0xff] %v3667
      %3716 = vst [vmem:[%s381 + $0x100] sm:$0xff] %v3668
      %3717 = vst [vmem:[%s381 + $0x108] sm:$0xff] %v3669
      %3718 = vst [vmem:[%s381 + $0x110] sm:$0xff] %v3670
      %3719 = vst [vmem:[%s381 + $0x118] sm:$0xff] %v3671
      %3720 = vst [vmem:[%s381 + $0x120] sm:$0xff] %v3672
      %3721 = vst [vmem:[%s381 + $0x128] sm:$0xff] %v3673
      %3722 = vst [vmem:[%s381 + $0x130] sm:$0xff] %v3674
      %3723 = vst [vmem:[%s381 + $0x138] sm:$0xff] %v3675
      %3724 = vst [vmem:[%s381 + $0x140] sm:$0xff] %v3676
      %3725 = vst [vmem:[%s381 + $0x148] sm:$0xff] %v3677
      %3726 = vst [vmem:[%s381 + $0x150] sm:$0xff] %v3678
      %3727 = vst [vmem:[%s381 + $0x158] sm:$0xff] %v3679
      %3728 = vst [vmem:[%s381 + $0x160] sm:$0xff] %v3680
      %3729 = vst [vmem:[%s381 + $0x168] sm:$0xff] %v3681
      %3730 = vst [vmem:[%s381 + $0x170] sm:$0xff] %v3682
      %3731 = vst [vmem:[%s381 + $0x178] sm:$0xff] %v3683
      %s3732 = smul.u32 16, %s19
      %p3733 = scmp.lt.s32.totalorder %s3732, 31
      %s3734 = scalar_select %p3733, %s3732, 31
      %s3735 = smul.addr %s3734, 3
      %s3736 = smul.addr %s3735, 8
      %s3737 = scalar_lea.vmem %s8, %s3736
      // Predicated region
      $region53: #{message_block.1} parent=51 // pred_check
        %p3738 = pneg %p225
      $region54: #{message_block.1} parent=51 // pred_check_branch
        %3740 = sbr.rel (%p3738) target = $region56
      $region55: #{message_block.1} parent=51 // pred_region
        %s3741 = smul.u32 16, %s19
      $region56: #{message_block.1} parent=51 // pred_fallthru
        _
    $region52: #{message_block.1} parent=5 // pred_fallthru
      _
    %p3742 = scmp.le.s32.totalorder 2, %s14
    // Predicated region
    $region57: #{message_block.1} parent=5 // pred_check
      %p3743 = pneg %p3742
    $region58: #{message_block.1} parent=5 // pred_check_branch
      %3745 = sbr.rel (%p3743) target = $region60
    $region59: #{message_block.1} parent=5 // pred_region
      %s3746 = ssub.s32 %s14, 2
      // Predicated region
      $region61: #{message_block.1} parent=59 // pred_check
        %p3747 = pneg %p231
      $region62: #{message_block.1} parent=59 // pred_check_branch
        %3749 = sbr.rel (%p3747) target = $region64
      $region63: #{message_block.1} parent=59 // pred_region
        %s3750 = smul.u32 16, %s20
        %p3751 = scmp.lt.s32.totalorder %s3750, 31
        %s3752 = scalar_select %p3751, %s3750, 31
        %s3753 = smul.addr %s3752, 3
        %s3754 = smul.addr %s3753, 8
        %s3755 = scalar_lea.vmem %s8, %s3754
      $region64: #{message_block.1} parent=59 // pred_fallthru
        _
    $region60: #{message_block.1} parent=5 // pred_fallthru
      _
  $region6: #{message_block.1} parent=0 // loop_footer
    %s18 = sadd.s32 1, %s14
  $region7: #{message_block.1} parent=0 // loop_footer_branch
    %13 = sbr.rel target = $region3
  $region8: #{message_block.1} parent=0 // loop_exit
    _

</llo_original>
